<compile_context>
chip_gen: v6e
topology: v6e:2x2x1
jax: 0.10.0
libtpu: 0.0.40
codegen_flags: <defaults>
</compile_context>

<pallas_src>
import math

import jax
import jax.numpy as jnp
from jax import lax
from jax.experimental import pallas as pl
from jax.experimental.pallas import tpu as pltpu

D_MODEL = 512
NUM_HEADS = 8
D_K = D_MODEL // NUM_HEADS


# ------------------------------ fused kernel ------------------------------- #

def _mha_fused_kernel(q_ref, k_ref, v_ref,
                      wq_ref, wk_ref, wv_ref, wo_ref,
                      bq_ref, bk_ref, bv_ref, bo_ref,
                      o_ref,
                      qp_ref, kp_ref, vp_ref):
    """One grid step = one batch element.

    Blocks:  q/k/v_ref, o_ref: (1, S, D);  w*_ref: (D, D) in (in, out) layout;
             b*_ref: (1, D);  qp/kp/vp_ref: (S, D) f32 VMEM scratch.
    """
    scale = 1.0 / math.sqrt(D_K)

    # Q/K/V projections on the MXU with f32 accumulation.
    # 1/sqrt(d_k) is folded into Q once (cheaper than scaling every score tile).
    qp_ref[...] = (jnp.dot(q_ref[0], wq_ref[...],
                           preferred_element_type=jnp.float32)
                   + bq_ref[...]) * scale
    kp_ref[...] = (jnp.dot(k_ref[0], wk_ref[...],
                           preferred_element_type=jnp.float32) + bk_ref[...])
    vp_ref[...] = (jnp.dot(v_ref[0], wv_ref[...],
                           preferred_element_type=jnp.float32) + bv_ref[...])

    s, d = qp_ref.shape

    # Initialize the output accumulator with the (broadcast) output-proj bias so
    # the epilogue is a plain cast + store.
    acc = jnp.broadcast_to(bo_ref[...], (s, d)).astype(jnp.float32)

    # Per-head attention; output projection fused into the loop so heads are
    # combined without any transpose / concatenate.  Static Python unroll over
    # 8 heads keeps all slices static (strided vector loads, no gathers).
    for h in range(NUM_HEADS):
        lo = h * D_K
        qh = qp_ref[:, lo:lo + D_K]                        # (S, d_k)
        kh = kp_ref[:, lo:lo + D_K]                        # (S, d_k)
        vh = vp_ref[:, lo:lo + D_K]                        # (S, d_k)

        # q . k^T without transposing K: contract the last dims of both operands.
        scores = lax.dot_general(qh, kh, (((1,), (1,)), ((), ())),
                                 preferred_element_type=jnp.float32)  # (S, S)

        # Numerically-stable softmax, f32; denominator via approx EUP reciprocal.
        m = jnp.max(scores, axis=-1, keepdims=True)
        p = jnp.exp(scores - m)
        p = p * pl.reciprocal(jnp.sum(p, axis=-1, keepdims=True), approx=True)

        ctx = jnp.dot(p, vh, preferred_element_type=jnp.float32)      # (S, d_k)
        # Fused output projection: acc += ctx_h @ W_o[rows of head h]  -> (S, D)
        acc = acc + jnp.dot(ctx, wo_ref[lo:lo + D_K, :],
                            preferred_element_type=jnp.float32)

    o_ref[0] = acc.astype(o_ref.dtype)


# ------------------------------ python wrapper ------------------------------ #

def prepare_params(params):
    """One-time layout prep: PyTorch (out, in) weights -> (in, out); biases -> (1, D)."""
    prep = {}
    for name in ("q", "k", "v", "o"):
        prep[f"w{name}_t"] = jnp.asarray(params[f"W_{name}"]).T
        prep[f"b{name}"] = jnp.asarray(params[f"b_{name}"]).reshape(1, -1)
    return prep


def multi_head_attention(prep, Q, K, V, mask=None):
    if mask is not None:
        # TODO(synk): masked_fill path not implemented in the fused kernel.
        raise NotImplementedError("mask is not supported by this Pallas MHA kernel")

    b, s, d = Q.shape
    assert d == D_MODEL

    x_spec = pl.BlockSpec((1, s, d), lambda i: (i, 0, 0))
    w_spec = pl.BlockSpec((d, d), lambda i: (0, 0))
    b_spec = pl.BlockSpec((1, d), lambda i: (0, 0))

    return pl.pallas_call(
        _mha_fused_kernel,
        out_shape=jax.ShapeDtypeStruct((b, s, d), Q.dtype),
        grid=(b,),
        in_specs=[x_spec, x_spec, x_spec,
                  w_spec, w_spec, w_spec, w_spec,
                  b_spec, b_spec, b_spec, b_spec],
        out_specs=x_spec,
        scratch_shapes=[pltpu.VMEM((s, d), jnp.float32),
                        pltpu.VMEM((s, d), jnp.float32),
                        pltpu.VMEM((s, d), jnp.float32)],
        compiler_params=pltpu.CompilerParams(
            dimension_semantics=("parallel",),
            vmem_limit_bytes=32 * 1024 * 1024),
    )(Q, K, V,
      prep["wq_t"], prep["wk_t"], prep["wv_t"], prep["wo_t"],
      prep["bq"], prep["bk"], prep["bv"], prep["bo"])


# --------------------------------- params ----------------------------------- #

def init_params(key, d_model=D_MODEL):
    """Deterministic init mimicking nn.Linear default (uniform +-1/sqrt(in))."""
    bound = 1.0 / math.sqrt(d_model)
    keys = jax.random.split(key, 8)
    params = {}
    for i, name in enumerate(["q", "k", "v", "o"]):
        w = jax.random.uniform(keys[2 * i], (d_model, d_model),
                               minval=-bound, maxval=bound, dtype=jnp.float32)
        bvec = jax.random.uniform(keys[2 * i + 1], (d_model,),
                                  minval=-bound, maxval=bound, dtype=jnp.float32)
        params[f"W_{name}"] = w          # PyTorch layout (out, in)
        params[f"b_{name}"] = bvec
    return params


# ---------------------------------- main ------------------------------------ #

if __name__ == "__main__":
    key = jax.random.PRNGKey(0)
    k_params, k_q, k_k, k_v = jax.random.split(key, 4)

    params = init_params(k_params)
    prep = prepare_params(params)

    B, S = 2, 8
    Q = jax.random.normal(k_q, (B, S, D_MODEL), dtype=jnp.float32)
    K = jax.random.normal(k_k, (B, S, D_MODEL), dtype=jnp.float32)
    V = jax.random.normal(k_v, (B, S, D_MODEL), dtype=jnp.float32)

    out = multi_head_attention(prep, Q, K, V)
    out = jax.block_until_ready(out)

    # Pure-JAX reference of the exact PyTorch math (f32 throughout).
    def ref_forward(params, Q, K, V):
        def lin(x, w, bvec):
            return x @ w.T + bvec

        def split(x):
            return x.reshape(B, S, NUM_HEADS, D_K).transpose(0, 2, 1, 3)

        q = split(lin(Q, params["W_q"], params["b_q"]))
        k = split(lin(K, params["W_k"], params["b_k"]))
        v = split(lin(V, params["W_v"], params["b_v"]))
        scores = jnp.einsum("bhqd,bhkd->bhqk", q, k) / math.sqrt(D_K)
        probs = jax.nn.softmax(scores, axis=-1)
        att = jnp.einsum("bhqk,bhkd->bhqd", probs, v)
        comb = att.transpose(0, 2, 1, 3).reshape(B, S, D_MODEL)
        return lin(comb, params["W_o"], params["b_o"])

    ref = ref_forward(params, Q, K, V)
    assert out.shape == (B, S, D_MODEL)
    # Tolerance loosened slightly (2e-3) only for the approximate EUP reciprocal
    # used in the softmax denominator; all matmul/softmax math is f32.
    assert jnp.allclose(out, ref, atol=2e-3, rtol=2e-3), (
        float(jnp.max(jnp.abs(out - ref))))

    print("KERNEL_OK")
</pallas_src>

<mosaic_0001>
module attributes {stable_mosaic.version = 11 : i64} {
  func.func @_mha_fused_kernel(%arg0: i32, %arg1: memref<1x8x512xf32, #tpu.memory_space<vmem>>, %arg2: memref<1x8x512xf32, #tpu.memory_space<vmem>>, %arg3: memref<1x8x512xf32, #tpu.memory_space<vmem>>, %arg4: memref<512x512xf32, #tpu.memory_space<vmem>>, %arg5: memref<512x512xf32, #tpu.memory_space<vmem>>, %arg6: memref<512x512xf32, #tpu.memory_space<vmem>>, %arg7: memref<512x512xf32, #tpu.memory_space<vmem>>, %arg8: memref<1x512xf32, #tpu.memory_space<vmem>>, %arg9: memref<1x512xf32, #tpu.memory_space<vmem>>, %arg10: memref<1x512xf32, #tpu.memory_space<vmem>>, %arg11: memref<1x512xf32, #tpu.memory_space<vmem>>, %arg12: memref<1x8x512xf32, #tpu.memory_space<vmem>>, %arg13: memref<8x512xf32, #tpu.memory_space<vmem>>, %arg14: memref<8x512xf32, #tpu.memory_space<vmem>>, %arg15: memref<8x512xf32, #tpu.memory_space<vmem>>) attributes {dimension_semantics = [#tpu.dimension_semantics<parallel>], iteration_bounds = array<i64: 2>, scalar_prefetch = 0 : i64, scratch_operands = 3 : i64, tpu.core_type = #tpu.core_type<tc>, window_params = [{transform_indices = @transform_0, window_bounds = array<i64: 1, 8, 512>}, {transform_indices = @transform_1, window_bounds = array<i64: 1, 8, 512>}, {transform_indices = @transform_2, window_bounds = array<i64: 1, 8, 512>}, {pipeline_mode = #tpu.pipeline_mode<synchronous>, transform_indices = @transform_3, window_bounds = array<i64: 512, 512>}, {pipeline_mode = #tpu.pipeline_mode<synchronous>, transform_indices = @transform_4, window_bounds = array<i64: 512, 512>}, {pipeline_mode = #tpu.pipeline_mode<synchronous>, transform_indices = @transform_5, window_bounds = array<i64: 512, 512>}, {pipeline_mode = #tpu.pipeline_mode<synchronous>, transform_indices = @transform_6, window_bounds = array<i64: 512, 512>}, {pipeline_mode = #tpu.pipeline_mode<synchronous>, transform_indices = @transform_7, window_bounds = array<i64: 1, 512>}, {pipeline_mode = #tpu.pipeline_mode<synchronous>, transform_indices = @transform_8, window_bounds = array<i64: 1, 512>}, {pipeline_mode = #tpu.pipeline_mode<synchronous>, transform_indices = @transform_9, window_bounds = array<i64: 1, 512>}, {pipeline_mode = #tpu.pipeline_mode<synchronous>, transform_indices = @transform_10, window_bounds = array<i64: 1, 512>}, {transform_indices = @transform_11, window_bounds = array<i64: 1, 8, 512>}]} {
    %c0 = arith.constant 0 : index
    %c0_0 = arith.constant 0 : index
    %c0_1 = arith.constant 0 : index
    %0 = vector.load %arg1[%c0, %c0_0, %c0_1] : memref<1x8x512xf32, #tpu.memory_space<vmem>>, vector<1x8x512xf32>
    %1 = vector.shape_cast %0 : vector<1x8x512xf32> to vector<8x512xf32>
    %c0_2 = arith.constant 0 : index
    %c0_3 = arith.constant 0 : index
    %2 = vector.load %arg4[%c0_2, %c0_3] : memref<512x512xf32, #tpu.memory_space<vmem>>, vector<512x512xf32>
    %cst = arith.constant dense<0.000000e+00> : vector<8x512xf32>
    %3 = tpu.matmul %1, %2, %cst {dimension_numbers = #tpu.dot_dimension_numbers<[1], [0], [0], [1], [0, 0, 1, 1], [], []>} : vector<8x512xf32>, vector<512x512xf32>, vector<8x512xf32> -> vector<8x512xf32>
    %c0_4 = arith.constant 0 : index
    %c0_5 = arith.constant 0 : index
    %4 = vector.load %arg8[%c0_4, %c0_5] : memref<1x512xf32, #tpu.memory_space<vmem>>, vector<1x512xf32>
    %5 = vector.broadcast %4 : vector<1x512xf32> to vector<8x512xf32>
    %6 = arith.addf %3, %5 : vector<8x512xf32>
    %cst_6 = arith.constant 1.250000e-01 : f32
    %7 = vector.broadcast %cst_6 : f32 to vector<8x512xf32>
    %8 = arith.mulf %6, %7 : vector<8x512xf32>
    %c0_7 = arith.constant 0 : index
    %c0_8 = arith.constant 0 : index
    %9 = vector.load %arg13[%c0_7, %c0_8] : memref<8x512xf32, #tpu.memory_space<vmem>>, vector<8x512xf32>
    tpu.vector_store %arg13[%c0_7, %c0_8], %8 {strides = array<i32>} : memref<8x512xf32, #tpu.memory_space<vmem>>, vector<8x512xf32>,
    %c0_9 = arith.constant 0 : index
    %c0_10 = arith.constant 0 : index
    %c0_11 = arith.constant 0 : index
    %10 = vector.load %arg2[%c0_9, %c0_10, %c0_11] : memref<1x8x512xf32, #tpu.memory_space<vmem>>, vector<1x8x512xf32>
    %11 = vector.shape_cast %10 : vector<1x8x512xf32> to vector<8x512xf32>
    %c0_12 = arith.constant 0 : index
    %c0_13 = arith.constant 0 : index
    %12 = vector.load %arg5[%c0_12, %c0_13] : memref<512x512xf32, #tpu.memory_space<vmem>>, vector<512x512xf32>
    %cst_14 = arith.constant dense<0.000000e+00> : vector<8x512xf32>
    %13 = tpu.matmul %11, %12, %cst_14 {dimension_numbers = #tpu.dot_dimension_numbers<[1], [0], [0], [1], [0, 0, 1, 1], [], []>} : vector<8x512xf32>, vector<512x512xf32>, vector<8x512xf32> -> vector<8x512xf32>
    %c0_15 = arith.constant 0 : index
    %c0_16 = arith.constant 0 : index
    %14 = vector.load %arg9[%c0_15, %c0_16] : memref<1x512xf32, #tpu.memory_space<vmem>>, vector<1x512xf32>
    %15 = vector.broadcast %14 : vector<1x512xf32> to vector<8x512xf32>
    %16 = arith.addf %13, %15 : vector<8x512xf32>
    %c0_17 = arith.constant 0 : index
    %c0_18 = arith.constant 0 : index
    %17 = vector.load %arg14[%c0_17, %c0_18] : memref<8x512xf32, #tpu.memory_space<vmem>>, vector<8x512xf32>
    tpu.vector_store %arg14[%c0_17, %c0_18], %16 {strides = array<i32>} : memref<8x512xf32, #tpu.memory_space<vmem>>, vector<8x512xf32>,
    %c0_19 = arith.constant 0 : index
    %c0_20 = arith.constant 0 : index
    %c0_21 = arith.constant 0 : index
    %18 = vector.load %arg3[%c0_19, %c0_20, %c0_21] : memref<1x8x512xf32, #tpu.memory_space<vmem>>, vector<1x8x512xf32>
    %19 = vector.shape_cast %18 : vector<1x8x512xf32> to vector<8x512xf32>
    %c0_22 = arith.constant 0 : index
    %c0_23 = arith.constant 0 : index
    %20 = vector.load %arg6[%c0_22, %c0_23] : memref<512x512xf32, #tpu.memory_space<vmem>>, vector<512x512xf32>
    %cst_24 = arith.constant dense<0.000000e+00> : vector<8x512xf32>
    %21 = tpu.matmul %19, %20, %cst_24 {dimension_numbers = #tpu.dot_dimension_numbers<[1], [0], [0], [1], [0, 0, 1, 1], [], []>} : vector<8x512xf32>, vector<512x512xf32>, vector<8x512xf32> -> vector<8x512xf32>
    %c0_25 = arith.constant 0 : index
    %c0_26 = arith.constant 0 : index
    %22 = vector.load %arg10[%c0_25, %c0_26] : memref<1x512xf32, #tpu.memory_space<vmem>>, vector<1x512xf32>
    %23 = vector.broadcast %22 : vector<1x512xf32> to vector<8x512xf32>
    %24 = arith.addf %21, %23 : vector<8x512xf32>
    %c0_27 = arith.constant 0 : index
    %c0_28 = arith.constant 0 : index
    %25 = vector.load %arg15[%c0_27, %c0_28] : memref<8x512xf32, #tpu.memory_space<vmem>>, vector<8x512xf32>
    tpu.vector_store %arg15[%c0_27, %c0_28], %24 {strides = array<i32>} : memref<8x512xf32, #tpu.memory_space<vmem>>, vector<8x512xf32>,
    %c0_29 = arith.constant 0 : index
    %c0_30 = arith.constant 0 : index
    %26 = vector.load %arg11[%c0_29, %c0_30] : memref<1x512xf32, #tpu.memory_space<vmem>>, vector<1x512xf32>
    %27 = vector.shape_cast %26 : vector<1x512xf32> to vector<1x512xf32>
    %28 = vector.broadcast %27 : vector<1x512xf32> to vector<8x512xf32>
    %c0_31 = arith.constant 0 : index
    %c0_32 = arith.constant 0 : index
    %29 = vector.load %arg13[%c0_31, %c0_32] : memref<8x512xf32, #tpu.memory_space<vmem>>, vector<8x64xf32>
    %c0_33 = arith.constant 0 : index
    %c0_34 = arith.constant 0 : index
    %30 = vector.load %arg14[%c0_33, %c0_34] : memref<8x512xf32, #tpu.memory_space<vmem>>, vector<8x64xf32>
    %c0_35 = arith.constant 0 : index
    %c0_36 = arith.constant 0 : index
    %31 = vector.load %arg15[%c0_35, %c0_36] : memref<8x512xf32, #tpu.memory_space<vmem>>, vector<8x64xf32>
    %cst_37 = arith.constant dense<0.000000e+00> : vector<8x8xf32>
    %32 = tpu.matmul %29, %30, %cst_37 {dimension_numbers = #tpu.dot_dimension_numbers<[1], [1], [0], [0], [0, 0, 1, 0], [], []>} : vector<8x64xf32>, vector<8x64xf32>, vector<8x8xf32> -> vector<8x8xf32>
    %cst_38 = arith.constant dense<0xFF800000> : vector<8xf32>
    %33 = vector.multi_reduction <maximumf>, %32, %cst_38 [1] : vector<8x8xf32> to vector<8xf32>
    %34 = vector.shape_cast %33 : vector<8xf32> to vector<8x1xf32>
    %35 = vector.broadcast %34 : vector<8x1xf32> to vector<8x8xf32>
    %36 = arith.subf %32, %35 : vector<8x8xf32>
    %37 = math.exp %36 : vector<8x8xf32>
    %cst_39 = arith.constant dense<0.000000e+00> : vector<8xf32>
    %38 = vector.multi_reduction <add>, %37, %cst_39 [1] : vector<8x8xf32> to vector<8xf32>
    %39 = vector.shape_cast %38 : vector<8xf32> to vector<8x1xf32>
    %40 = tpu.reciprocal %39 {approx = true} : vector<8x1xf32> -> vector<8x1xf32>
    %41 = vector.broadcast %40 : vector<8x1xf32> to vector<8x8xf32>
    %42 = arith.mulf %37, %41 : vector<8x8xf32>
    %cst_40 = arith.constant dense<0.000000e+00> : vector<8x64xf32>
    %43 = tpu.matmul %42, %31, %cst_40 {dimension_numbers = #tpu.dot_dimension_numbers<[1], [0], [0], [1], [0, 0, 1, 1], [], []>} : vector<8x8xf32>, vector<8x64xf32>, vector<8x64xf32> -> vector<8x64xf32>
    %c0_41 = arith.constant 0 : index
    %c0_42 = arith.constant 0 : index
    %44 = vector.load %arg7[%c0_41, %c0_42] : memref<512x512xf32, #tpu.memory_space<vmem>>, vector<64x512xf32>
    %cst_43 = arith.constant dense<0.000000e+00> : vector<8x512xf32>
    %45 = tpu.matmul %43, %44, %cst_43 {dimension_numbers = #tpu.dot_dimension_numbers<[1], [0], [0], [1], [0, 0, 1, 1], [], []>} : vector<8x64xf32>, vector<64x512xf32>, vector<8x512xf32> -> vector<8x512xf32>
    %46 = arith.addf %28, %45 : vector<8x512xf32>
    %c0_44 = arith.constant 0 : index
    %c64 = arith.constant 64 : index
    %47 = vector.load %arg13[%c0_44, %c64] : memref<8x512xf32, #tpu.memory_space<vmem>>, vector<8x64xf32>
    %c0_45 = arith.constant 0 : index
    %c64_46 = arith.constant 64 : index
    %48 = vector.load %arg14[%c0_45, %c64_46] : memref<8x512xf32, #tpu.memory_space<vmem>>, vector<8x64xf32>
    %c0_47 = arith.constant 0 : index
    %c64_48 = arith.constant 64 : index
    %49 = vector.load %arg15[%c0_47, %c64_48] : memref<8x512xf32, #tpu.memory_space<vmem>>, vector<8x64xf32>
    %cst_49 = arith.constant dense<0.000000e+00> : vector<8x8xf32>
    %50 = tpu.matmul %47, %48, %cst_49 {dimension_numbers = #tpu.dot_dimension_numbers<[1], [1], [0], [0], [0, 0, 1, 0], [], []>} : vector<8x64xf32>, vector<8x64xf32>, vector<8x8xf32> -> vector<8x8xf32>
    %cst_50 = arith.constant dense<0xFF800000> : vector<8xf32>
    %51 = vector.multi_reduction <maximumf>, %50, %cst_50 [1] : vector<8x8xf32> to vector<8xf32>
    %52 = vector.shape_cast %51 : vector<8xf32> to vector<8x1xf32>
    %53 = vector.broadcast %52 : vector<8x1xf32> to vector<8x8xf32>
    %54 = arith.subf %50, %53 : vector<8x8xf32>
    %55 = math.exp %54 : vector<8x8xf32>
    %cst_51 = arith.constant dense<0.000000e+00> : vector<8xf32>
    %56 = vector.multi_reduction <add>, %55, %cst_51 [1] : vector<8x8xf32> to vector<8xf32>
    %57 = vector.shape_cast %56 : vector<8xf32> to vector<8x1xf32>
    %58 = tpu.reciprocal %57 {approx = true} : vector<8x1xf32> -> vector<8x1xf32>
    %59 = vector.broadcast %58 : vector<8x1xf32> to vector<8x8xf32>
    %60 = arith.mulf %55, %59 : vector<8x8xf32>
    %cst_52 = arith.constant dense<0.000000e+00> : vector<8x64xf32>
    %61 = tpu.matmul %60, %49, %cst_52 {dimension_numbers = #tpu.dot_dimension_numbers<[1], [0], [0], [1], [0, 0, 1, 1], [], []>} : vector<8x8xf32>, vector<8x64xf32>, vector<8x64xf32> -> vector<8x64xf32>
    %c64_53 = arith.constant 64 : index
    %c0_54 = arith.constant 0 : index
    %62 = vector.load %arg7[%c64_53, %c0_54] : memref<512x512xf32, #tpu.memory_space<vmem>>, vector<64x512xf32>
    %cst_55 = arith.constant dense<0.000000e+00> : vector<8x512xf32>
    %63 = tpu.matmul %61, %62, %cst_55 {dimension_numbers = #tpu.dot_dimension_numbers<[1], [0], [0], [1], [0, 0, 1, 1], [], []>} : vector<8x64xf32>, vector<64x512xf32>, vector<8x512xf32> -> vector<8x512xf32>
    %64 = arith.addf %46, %63 : vector<8x512xf32>
    %c0_56 = arith.constant 0 : index
    %c128 = arith.constant 128 : index
    %65 = vector.load %arg13[%c0_56, %c128] : memref<8x512xf32, #tpu.memory_space<vmem>>, vector<8x64xf32>
    %c0_57 = arith.constant 0 : index
    %c128_58 = arith.constant 128 : index
    %66 = vector.load %arg14[%c0_57, %c128_58] : memref<8x512xf32, #tpu.memory_space<vmem>>, vector<8x64xf32>
    %c0_59 = arith.constant 0 : index
    %c128_60 = arith.constant 128 : index
    %67 = vector.load %arg15[%c0_59, %c128_60] : memref<8x512xf32, #tpu.memory_space<vmem>>, vector<8x64xf32>
    %cst_61 = arith.constant dense<0.000000e+00> : vector<8x8xf32>
    %68 = tpu.matmul %65, %66, %cst_61 {dimension_numbers = #tpu.dot_dimension_numbers<[1], [1], [0], [0], [0, 0, 1, 0], [], []>} : vector<8x64xf32>, vector<8x64xf32>, vector<8x8xf32> -> vector<8x8xf32>
    %cst_62 = arith.constant dense<0xFF800000> : vector<8xf32>
    %69 = vector.multi_reduction <maximumf>, %68, %cst_62 [1] : vector<8x8xf32> to vector<8xf32>
    %70 = vector.shape_cast %69 : vector<8xf32> to vector<8x1xf32>
    %71 = vector.broadcast %70 : vector<8x1xf32> to vector<8x8xf32>
    %72 = arith.subf %68, %71 : vector<8x8xf32>
    %73 = math.exp %72 : vector<8x8xf32>
    %cst_63 = arith.constant dense<0.000000e+00> : vector<8xf32>
    %74 = vector.multi_reduction <add>, %73, %cst_63 [1] : vector<8x8xf32> to vector<8xf32>
    %75 = vector.shape_cast %74 : vector<8xf32> to vector<8x1xf32>
    %76 = tpu.reciprocal %75 {approx = true} : vector<8x1xf32> -> vector<8x1xf32>
    %77 = vector.broadcast %76 : vector<8x1xf32> to vector<8x8xf32>
    %78 = arith.mulf %73, %77 : vector<8x8xf32>
    %cst_64 = arith.constant dense<0.000000e+00> : vector<8x64xf32>
    %79 = tpu.matmul %78, %67, %cst_64 {dimension_numbers = #tpu.dot_dimension_numbers<[1], [0], [0], [1], [0, 0, 1, 1], [], []>} : vector<8x8xf32>, vector<8x64xf32>, vector<8x64xf32> -> vector<8x64xf32>
    %c128_65 = arith.constant 128 : index
    %c0_66 = arith.constant 0 : index
    %80 = vector.load %arg7[%c128_65, %c0_66] : memref<512x512xf32, #tpu.memory_space<vmem>>, vector<64x512xf32>
    %cst_67 = arith.constant dense<0.000000e+00> : vector<8x512xf32>
    %81 = tpu.matmul %79, %80, %cst_67 {dimension_numbers = #tpu.dot_dimension_numbers<[1], [0], [0], [1], [0, 0, 1, 1], [], []>} : vector<8x64xf32>, vector<64x512xf32>, vector<8x512xf32> -> vector<8x512xf32>
    %82 = arith.addf %64, %81 : vector<8x512xf32>
    %c0_68 = arith.constant 0 : index
    %c192 = arith.constant 192 : index
    %83 = vector.load %arg13[%c0_68, %c192] : memref<8x512xf32, #tpu.memory_space<vmem>>, vector<8x64xf32>
    %c0_69 = arith.constant 0 : index
    %c192_70 = arith.constant 192 : index
    %84 = vector.load %arg14[%c0_69, %c192_70] : memref<8x512xf32, #tpu.memory_space<vmem>>, vector<8x64xf32>
    %c0_71 = arith.constant 0 : index
    %c192_72 = arith.constant 192 : index
    %85 = vector.load %arg15[%c0_71, %c192_72] : memref<8x512xf32, #tpu.memory_space<vmem>>, vector<8x64xf32>
    %cst_73 = arith.constant dense<0.000000e+00> : vector<8x8xf32>
    %86 = tpu.matmul %83, %84, %cst_73 {dimension_numbers = #tpu.dot_dimension_numbers<[1], [1], [0], [0], [0, 0, 1, 0], [], []>} : vector<8x64xf32>, vector<8x64xf32>, vector<8x8xf32> -> vector<8x8xf32>
    %cst_74 = arith.constant dense<0xFF800000> : vector<8xf32>
    %87 = vector.multi_reduction <maximumf>, %86, %cst_74 [1] : vector<8x8xf32> to vector<8xf32>
    %88 = vector.shape_cast %87 : vector<8xf32> to vector<8x1xf32>
    %89 = vector.broadcast %88 : vector<8x1xf32> to vector<8x8xf32>
    %90 = arith.subf %86, %89 : vector<8x8xf32>
    %91 = math.exp %90 : vector<8x8xf32>
    %cst_75 = arith.constant dense<0.000000e+00> : vector<8xf32>
    %92 = vector.multi_reduction <add>, %91, %cst_75 [1] : vector<8x8xf32> to vector<8xf32>
    %93 = vector.shape_cast %92 : vector<8xf32> to vector<8x1xf32>
    %94 = tpu.reciprocal %93 {approx = true} : vector<8x1xf32> -> vector<8x1xf32>
    %95 = vector.broadcast %94 : vector<8x1xf32> to vector<8x8xf32>
    %96 = arith.mulf %91, %95 : vector<8x8xf32>
    %cst_76 = arith.constant dense<0.000000e+00> : vector<8x64xf32>
    %97 = tpu.matmul %96, %85, %cst_76 {dimension_numbers = #tpu.dot_dimension_numbers<[1], [0], [0], [1], [0, 0, 1, 1], [], []>} : vector<8x8xf32>, vector<8x64xf32>, vector<8x64xf32> -> vector<8x64xf32>
    %c192_77 = arith.constant 192 : index
    %c0_78 = arith.constant 0 : index
    %98 = vector.load %arg7[%c192_77, %c0_78] : memref<512x512xf32, #tpu.memory_space<vmem>>, vector<64x512xf32>
    %cst_79 = arith.constant dense<0.000000e+00> : vector<8x512xf32>
    %99 = tpu.matmul %97, %98, %cst_79 {dimension_numbers = #tpu.dot_dimension_numbers<[1], [0], [0], [1], [0, 0, 1, 1], [], []>} : vector<8x64xf32>, vector<64x512xf32>, vector<8x512xf32> -> vector<8x512xf32>
    %100 = arith.addf %82, %99 : vector<8x512xf32>
    %c0_80 = arith.constant 0 : index
    %c256 = arith.constant 256 : index
    %101 = vector.load %arg13[%c0_80, %c256] : memref<8x512xf32, #tpu.memory_space<vmem>>, vector<8x64xf32>
    %c0_81 = arith.constant 0 : index
    %c256_82 = arith.constant 256 : index
    %102 = vector.load %arg14[%c0_81, %c256_82] : memref<8x512xf32, #tpu.memory_space<vmem>>, vector<8x64xf32>
    %c0_83 = arith.constant 0 : index
    %c256_84 = arith.constant 256 : index
    %103 = vector.load %arg15[%c0_83, %c256_84] : memref<8x512xf32, #tpu.memory_space<vmem>>, vector<8x64xf32>
    %cst_85 = arith.constant dense<0.000000e+00> : vector<8x8xf32>
    %104 = tpu.matmul %101, %102, %cst_85 {dimension_numbers = #tpu.dot_dimension_numbers<[1], [1], [0], [0], [0, 0, 1, 0], [], []>} : vector<8x64xf32>, vector<8x64xf32>, vector<8x8xf32> -> vector<8x8xf32>
    %cst_86 = arith.constant dense<0xFF800000> : vector<8xf32>
    %105 = vector.multi_reduction <maximumf>, %104, %cst_86 [1] : vector<8x8xf32> to vector<8xf32>
    %106 = vector.shape_cast %105 : vector<8xf32> to vector<8x1xf32>
    %107 = vector.broadcast %106 : vector<8x1xf32> to vector<8x8xf32>
    %108 = arith.subf %104, %107 : vector<8x8xf32>
    %109 = math.exp %108 : vector<8x8xf32>
    %cst_87 = arith.constant dense<0.000000e+00> : vector<8xf32>
    %110 = vector.multi_reduction <add>, %109, %cst_87 [1] : vector<8x8xf32> to vector<8xf32>
    %111 = vector.shape_cast %110 : vector<8xf32> to vector<8x1xf32>
    %112 = tpu.reciprocal %111 {approx = true} : vector<8x1xf32> -> vector<8x1xf32>
    %113 = vector.broadcast %112 : vector<8x1xf32> to vector<8x8xf32>
    %114 = arith.mulf %109, %113 : vector<8x8xf32>
    %cst_88 = arith.constant dense<0.000000e+00> : vector<8x64xf32>
    %115 = tpu.matmul %114, %103, %cst_88 {dimension_numbers = #tpu.dot_dimension_numbers<[1], [0], [0], [1], [0, 0, 1, 1], [], []>} : vector<8x8xf32>, vector<8x64xf32>, vector<8x64xf32> -> vector<8x64xf32>
    %c256_89 = arith.constant 256 : index
    %c0_90 = arith.constant 0 : index
    %116 = vector.load %arg7[%c256_89, %c0_90] : memref<512x512xf32, #tpu.memory_space<vmem>>, vector<64x512xf32>
    %cst_91 = arith.constant dense<0.000000e+00> : vector<8x512xf32>
    %117 = tpu.matmul %115, %116, %cst_91 {dimension_numbers = #tpu.dot_dimension_numbers<[1], [0], [0], [1], [0, 0, 1, 1], [], []>} : vector<8x64xf32>, vector<64x512xf32>, vector<8x512xf32> -> vector<8x512xf32>
    %118 = arith.addf %100, %117 : vector<8x512xf32>
    %c0_92 = arith.constant 0 : index
    %c320 = arith.constant 320 : index
    %119 = vector.load %arg13[%c0_92, %c320] : memref<8x512xf32, #tpu.memory_space<vmem>>, vector<8x64xf32>
    %c0_93 = arith.constant 0 : index
    %c320_94 = arith.constant 320 : index
    %120 = vector.load %arg14[%c0_93, %c320_94] : memref<8x512xf32, #tpu.memory_space<vmem>>, vector<8x64xf32>
    %c0_95 = arith.constant 0 : index
    %c320_96 = arith.constant 320 : index
    %121 = vector.load %arg15[%c0_95, %c320_96] : memref<8x512xf32, #tpu.memory_space<vmem>>, vector<8x64xf32>
    %cst_97 = arith.constant dense<0.000000e+00> : vector<8x8xf32>
    %122 = tpu.matmul %119, %120, %cst_97 {dimension_numbers = #tpu.dot_dimension_numbers<[1], [1], [0], [0], [0, 0, 1, 0], [], []>} : vector<8x64xf32>, vector<8x64xf32>, vector<8x8xf32> -> vector<8x8xf32>
    %cst_98 = arith.constant dense<0xFF800000> : vector<8xf32>
    %123 = vector.multi_reduction <maximumf>, %122, %cst_98 [1] : vector<8x8xf32> to vector<8xf32>
    %124 = vector.shape_cast %123 : vector<8xf32> to vector<8x1xf32>
    %125 = vector.broadcast %124 : vector<8x1xf32> to vector<8x8xf32>
    %126 = arith.subf %122, %125 : vector<8x8xf32>
    %127 = math.exp %126 : vector<8x8xf32>
    %cst_99 = arith.constant dense<0.000000e+00> : vector<8xf32>
    %128 = vector.multi_reduction <add>, %127, %cst_99 [1] : vector<8x8xf32> to vector<8xf32>
    %129 = vector.shape_cast %128 : vector<8xf32> to vector<8x1xf32>
    %130 = tpu.reciprocal %129 {approx = true} : vector<8x1xf32> -> vector<8x1xf32>
    %131 = vector.broadcast %130 : vector<8x1xf32> to vector<8x8xf32>
    %132 = arith.mulf %127, %131 : vector<8x8xf32>
    %cst_100 = arith.constant dense<0.000000e+00> : vector<8x64xf32>
    %133 = tpu.matmul %132, %121, %cst_100 {dimension_numbers = #tpu.dot_dimension_numbers<[1], [0], [0], [1], [0, 0, 1, 1], [], []>} : vector<8x8xf32>, vector<8x64xf32>, vector<8x64xf32> -> vector<8x64xf32>
    %c320_101 = arith.constant 320 : index
    %c0_102 = arith.constant 0 : index
    %134 = vector.load %arg7[%c320_101, %c0_102] : memref<512x512xf32, #tpu.memory_space<vmem>>, vector<64x512xf32>
    %cst_103 = arith.constant dense<0.000000e+00> : vector<8x512xf32>
    %135 = tpu.matmul %133, %134, %cst_103 {dimension_numbers = #tpu.dot_dimension_numbers<[1], [0], [0], [1], [0, 0, 1, 1], [], []>} : vector<8x64xf32>, vector<64x512xf32>, vector<8x512xf32> -> vector<8x512xf32>
    %136 = arith.addf %118, %135 : vector<8x512xf32>
    %c0_104 = arith.constant 0 : index
    %c384 = arith.constant 384 : index
    %137 = vector.load %arg13[%c0_104, %c384] : memref<8x512xf32, #tpu.memory_space<vmem>>, vector<8x64xf32>
    %c0_105 = arith.constant 0 : index
    %c384_106 = arith.constant 384 : index
    %138 = vector.load %arg14[%c0_105, %c384_106] : memref<8x512xf32, #tpu.memory_space<vmem>>, vector<8x64xf32>
    %c0_107 = arith.constant 0 : index
    %c384_108 = arith.constant 384 : index
    %139 = vector.load %arg15[%c0_107, %c384_108] : memref<8x512xf32, #tpu.memory_space<vmem>>, vector<8x64xf32>
    %cst_109 = arith.constant dense<0.000000e+00> : vector<8x8xf32>
    %140 = tpu.matmul %137, %138, %cst_109 {dimension_numbers = #tpu.dot_dimension_numbers<[1], [1], [0], [0], [0, 0, 1, 0], [], []>} : vector<8x64xf32>, vector<8x64xf32>, vector<8x8xf32> -> vector<8x8xf32>
    %cst_110 = arith.constant dense<0xFF800000> : vector<8xf32>
    %141 = vector.multi_reduction <maximumf>, %140, %cst_110 [1] : vector<8x8xf32> to vector<8xf32>
    %142 = vector.shape_cast %141 : vector<8xf32> to vector<8x1xf32>
    %143 = vector.broadcast %142 : vector<8x1xf32> to vector<8x8xf32>
    %144 = arith.subf %140, %143 : vector<8x8xf32>
    %145 = math.exp %144 : vector<8x8xf32>
    %cst_111 = arith.constant dense<0.000000e+00> : vector<8xf32>
    %146 = vector.multi_reduction <add>, %145, %cst_111 [1] : vector<8x8xf32> to vector<8xf32>
    %147 = vector.shape_cast %146 : vector<8xf32> to vector<8x1xf32>
    %148 = tpu.reciprocal %147 {approx = true} : vector<8x1xf32> -> vector<8x1xf32>
    %149 = vector.broadcast %148 : vector<8x1xf32> to vector<8x8xf32>
    %150 = arith.mulf %145, %149 : vector<8x8xf32>
    %cst_112 = arith.constant dense<0.000000e+00> : vector<8x64xf32>
    %151 = tpu.matmul %150, %139, %cst_112 {dimension_numbers = #tpu.dot_dimension_numbers<[1], [0], [0], [1], [0, 0, 1, 1], [], []>} : vector<8x8xf32>, vector<8x64xf32>, vector<8x64xf32> -> vector<8x64xf32>
    %c384_113 = arith.constant 384 : index
    %c0_114 = arith.constant 0 : index
    %152 = vector.load %arg7[%c384_113, %c0_114] : memref<512x512xf32, #tpu.memory_space<vmem>>, vector<64x512xf32>
    %cst_115 = arith.constant dense<0.000000e+00> : vector<8x512xf32>
    %153 = tpu.matmul %151, %152, %cst_115 {dimension_numbers = #tpu.dot_dimension_numbers<[1], [0], [0], [1], [0, 0, 1, 1], [], []>} : vector<8x64xf32>, vector<64x512xf32>, vector<8x512xf32> -> vector<8x512xf32>
    %154 = arith.addf %136, %153 : vector<8x512xf32>
    %c0_116 = arith.constant 0 : index
    %c448 = arith.constant 448 : index
    %155 = vector.load %arg13[%c0_116, %c448] : memref<8x512xf32, #tpu.memory_space<vmem>>, vector<8x64xf32>
    %c0_117 = arith.constant 0 : index
    %c448_118 = arith.constant 448 : index
    %156 = vector.load %arg14[%c0_117, %c448_118] : memref<8x512xf32, #tpu.memory_space<vmem>>, vector<8x64xf32>
    %c0_119 = arith.constant 0 : index
    %c448_120 = arith.constant 448 : index
    %157 = vector.load %arg15[%c0_119, %c448_120] : memref<8x512xf32, #tpu.memory_space<vmem>>, vector<8x64xf32>
    %cst_121 = arith.constant dense<0.000000e+00> : vector<8x8xf32>
    %158 = tpu.matmul %155, %156, %cst_121 {dimension_numbers = #tpu.dot_dimension_numbers<[1], [1], [0], [0], [0, 0, 1, 0], [], []>} : vector<8x64xf32>, vector<8x64xf32>, vector<8x8xf32> -> vector<8x8xf32>
    %cst_122 = arith.constant dense<0xFF800000> : vector<8xf32>
    %159 = vector.multi_reduction <maximumf>, %158, %cst_122 [1] : vector<8x8xf32> to vector<8xf32>
    %160 = vector.shape_cast %159 : vector<8xf32> to vector<8x1xf32>
    %161 = vector.broadcast %160 : vector<8x1xf32> to vector<8x8xf32>
    %162 = arith.subf %158, %161 : vector<8x8xf32>
    %163 = math.exp %162 : vector<8x8xf32>
    %cst_123 = arith.constant dense<0.000000e+00> : vector<8xf32>
    %164 = vector.multi_reduction <add>, %163, %cst_123 [1] : vector<8x8xf32> to vector<8xf32>
    %165 = vector.shape_cast %164 : vector<8xf32> to vector<8x1xf32>
    %166 = tpu.reciprocal %165 {approx = true} : vector<8x1xf32> -> vector<8x1xf32>
    %167 = vector.broadcast %166 : vector<8x1xf32> to vector<8x8xf32>
    %168 = arith.mulf %163, %167 : vector<8x8xf32>
    %cst_124 = arith.constant dense<0.000000e+00> : vector<8x64xf32>
    %169 = tpu.matmul %168, %157, %cst_124 {dimension_numbers = #tpu.dot_dimension_numbers<[1], [0], [0], [1], [0, 0, 1, 1], [], []>} : vector<8x8xf32>, vector<8x64xf32>, vector<8x64xf32> -> vector<8x64xf32>
    %c448_125 = arith.constant 448 : index
    %c0_126 = arith.constant 0 : index
    %170 = vector.load %arg7[%c448_125, %c0_126] : memref<512x512xf32, #tpu.memory_space<vmem>>, vector<64x512xf32>
    %cst_127 = arith.constant dense<0.000000e+00> : vector<8x512xf32>
    %171 = tpu.matmul %169, %170, %cst_127 {dimension_numbers = #tpu.dot_dimension_numbers<[1], [0], [0], [1], [0, 0, 1, 1], [], []>} : vector<8x64xf32>, vector<64x512xf32>, vector<8x512xf32> -> vector<8x512xf32>
    %172 = arith.addf %154, %171 : vector<8x512xf32>
    %c0_128 = arith.constant 0 : index
    %c0_129 = arith.constant 0 : index
    %c0_130 = arith.constant 0 : index
    %173 = vector.load %arg12[%c0_128, %c0_129, %c0_130] : memref<1x8x512xf32, #tpu.memory_space<vmem>>, vector<1x8x512xf32>
    %174 = vector.shape_cast %173 : vector<1x8x512xf32> to vector<8x512xf32>
    %175 = vector.shape_cast %172 : vector<8x512xf32> to vector<1x8x512xf32>
    tpu.vector_store %arg12[%c0_128, %c0_129, %c0_130], %175 {strides = array<i32>} : memref<1x8x512xf32, #tpu.memory_space<vmem>>, vector<1x8x512xf32>,
    return
  }
  func.func @transform_0(%arg0: i32) -> (i32, i32, i32) {
    %c0_i32 = arith.constant 0 : i32
    %c0_i32_0 = arith.constant 0 : i32
    %c0_i32_1 = arith.constant 0 : i32
    return %arg0, %c0_i32, %c0_i32_0 : i32, i32, i32
  }
  func.func @transform_1(%arg0: i32) -> (i32, i32, i32) {
    %c0_i32 = arith.constant 0 : i32
    %c0_i32_0 = arith.constant 0 : i32
    %c0_i32_1 = arith.constant 0 : i32
    return %arg0, %c0_i32, %c0_i32_0 : i32, i32, i32
  }
  func.func @transform_2(%arg0: i32) -> (i32, i32, i32) {
    %c0_i32 = arith.constant 0 : i32
    %c0_i32_0 = arith.constant 0 : i32
    %c0_i32_1 = arith.constant 0 : i32
    return %arg0, %c0_i32, %c0_i32_0 : i32, i32, i32
  }
  func.func @transform_3(%arg0: i32) -> (i32, i32) {
    %c0_i32 = arith.constant 0 : i32
    %c0_i32_0 = arith.constant 0 : i32
    %c0_i32_1 = arith.constant 0 : i32
    return %c0_i32, %c0_i32_0 : i32, i32
  }
  func.func @transform_4(%arg0: i32) -> (i32, i32) {
    %c0_i32 = arith.constant 0 : i32
    %c0_i32_0 = arith.constant 0 : i32
    %c0_i32_1 = arith.constant 0 : i32
    return %c0_i32, %c0_i32_0 : i32, i32
  }
  func.func @transform_5(%arg0: i32) -> (i32, i32) {
    %c0_i32 = arith.constant 0 : i32
    %c0_i32_0 = arith.constant 0 : i32
    %c0_i32_1 = arith.constant 0 : i32
    return %c0_i32, %c0_i32_0 : i32, i32
  }
  func.func @transform_6(%arg0: i32) -> (i32, i32) {
    %c0_i32 = arith.constant 0 : i32
    %c0_i32_0 = arith.constant 0 : i32
    %c0_i32_1 = arith.constant 0 : i32
    return %c0_i32, %c0_i32_0 : i32, i32
  }
  func.func @transform_7(%arg0: i32) -> (i32, i32) {
    %c0_i32 = arith.constant 0 : i32
    %c0_i32_0 = arith.constant 0 : i32
    %c0_i32_1 = arith.constant 0 : i32
    return %c0_i32, %c0_i32_0 : i32, i32
  }
  func.func @transform_8(%arg0: i32) -> (i32, i32) {
    %c0_i32 = arith.constant 0 : i32
    %c0_i32_0 = arith.constant 0 : i32
    %c0_i32_1 = arith.constant 0 : i32
    return %c0_i32, %c0_i32_0 : i32, i32
  }
  func.func @transform_9(%arg0: i32) -> (i32, i32) {
    %c0_i32 = arith.constant 0 : i32
    %c0_i32_0 = arith.constant 0 : i32
    %c0_i32_1 = arith.constant 0 : i32
    return %c0_i32, %c0_i32_0 : i32, i32
  }
  func.func @transform_10(%arg0: i32) -> (i32, i32) {
    %c0_i32 = arith.constant 0 : i32
    %c0_i32_0 = arith.constant 0 : i32
    %c0_i32_1 = arith.constant 0 : i32
    return %c0_i32, %c0_i32_0 : i32, i32
  }
  func.func @transform_11(%arg0: i32) -> (i32, i32, i32) {
    %c0_i32 = arith.constant 0 : i32
    %c0_i32_0 = arith.constant 0 : i32
    %c0_i32_1 = arith.constant 0 : i32
    return %arg0, %c0_i32, %c0_i32_0 : i32, i32, i32
  }
}

</mosaic_0001>

<llo_original>
// kernel: tpu_custom_call.1
$region0: #{tpu_custom_call.1}
  #allocation0 [shape = 'u32[]', space=smem, size = 0x4, offset = 0x4, fixed_abs, tag = 'smem constant byte address 0x4 - core index']
  #allocation1 [shape = 'u32[144,128]{1,0:T(1,128)}', space=vmem, size = 0x12000, scoped, tag = 'internal scratch']
  #allocation2 [shape = 'f32[8,512]{1,0:T(8,128)}', space=vmem, size = 0x4000, scoped, tag = 'scratch operand']
  #allocation3 [shape = 'f32[8,512]{1,0:T(8,128)}', space=vmem, size = 0x4000, scoped, tag = 'scratch operand']
  #allocation4 [shape = 'f32[8,512]{1,0:T(8,128)}', space=vmem, size = 0x4000, scoped, tag = 'scratch operand']
  %s0 = inlined_call_operand.hbm [shape: f32[2,8,512], index: 0, kind: input, shape index: {}]
  %s1 = inlined_call_operand.hbm [shape: f32[2,8,512], index: 1, kind: input, shape index: {}]
  %s2 = inlined_call_operand.hbm [shape: f32[2,8,512], index: 2, kind: input, shape index: {}]
  %s3 = inlined_call_operand.hbm [shape: f32[512,512], index: 3, kind: input, shape index: {}]
  %s4 = inlined_call_operand.hbm [shape: f32[512,512], index: 4, kind: input, shape index: {}]
  %s5 = inlined_call_operand.hbm [shape: f32[512,512], index: 5, kind: input, shape index: {}]
  %s6 = inlined_call_operand.hbm [shape: f32[512,512], index: 6, kind: input, shape index: {}]
  %s7 = inlined_call_operand.vmem [shape: f32[1,512], index: 7, kind: input, shape index: {}]
  %s8 = inlined_call_operand.vmem [shape: f32[1,512], index: 8, kind: input, shape index: {}]
  %s9 = inlined_call_operand.vmem [shape: f32[1,512], index: 9, kind: input, shape index: {}]
  %s10 = inlined_call_operand.vmem [shape: f32[1,512], index: 10, kind: input, shape index: {}]
  %s11 = inlined_call_operand.hbm [shape: f32[2,8,512], index: 11, kind: output, shape index: {}]
  %s12 = sld [smem:[#allocation0]]
  $region105: #{tpu_custom_call.1} parent=0
    _
  %s14 = ssub.s32 1, %s12
  %s15 = scalar_select 0, %s14, %s12
  $region1: #{tpu_custom_call.1} parent=0
    #allocation5 [shape = 'u8[32768]{0}', space=vmem, size = 0x8000, scoped, tag = 'input window, operand 0']
    #allocation6 [shape = 's32[2]{0}', space=sflag, size = 0x8, scoped, tag = 'scoped memory for tpu_custom_call.1']
    #allocation7 [shape = 's32[2]{0}', space=sflag, size = 0x8, scoped, tag = 'scoped memory for tpu_custom_call.1']
    #allocation8 [shape = 'u8[32768]{0}', space=vmem, size = 0x8000, scoped, tag = 'input window, operand 1']
    #allocation9 [shape = 's32[2]{0}', space=sflag, size = 0x8, scoped, tag = 'scoped memory for tpu_custom_call.1']
    #allocation10 [shape = 'u8[32768]{0}', space=vmem, size = 0x8000, scoped, tag = 'input window, operand 2']
    #allocation11 [shape = 'u8[1048576]{0}', space=vmem, size = 0x100000, scoped, tag = 'input window, operand 3, single buffered']
    #allocation12 [shape = 's32[1]{0}', space=sflag, size = 0x4, scoped, tag = 'scoped memory for tpu_custom_call.1']
    #allocation13 [shape = 'u8[1048576]{0}', space=vmem, size = 0x100000, scoped, tag = 'input window, operand 4, single buffered']
    #allocation14 [shape = 'u8[1048576]{0}', space=vmem, size = 0x100000, scoped, tag = 'input window, operand 5, single buffered']
    #allocation15 [shape = 's32[1]{0}', space=sflag, size = 0x4, scoped, tag = 'scoped memory for tpu_custom_call.1']
    #allocation16 [shape = 'u8[1048576]{0}', space=vmem, size = 0x100000, scoped, tag = 'input window, operand 6, single buffered']
    #allocation17 [shape = 'u8[32768]{0}', space=vmem, size = 0x8000, scoped, tag = 'output window, operand 0']
    %16 = vsyncpa [#allocation6], 0
    %s17 = scalar_lea.sflag [#allocation6], 1
    %18 = vsyncpa %s17, 0
    %19 = vsyncpa [#allocation9], 0
    %s20 = scalar_lea.sflag [#allocation9], 1
    %21 = vsyncpa %s20, 0
    %22 = vsyncpa [#allocation12], 0
    %23 = vsyncpa [#allocation15], 0
    %24 = vsyncpa [#allocation7], 0
    %s25 = scalar_lea.sflag [#allocation7], 1
    %26 = vsyncpa %s25, 0
    loop: start=0, step=1, limit=4
    $region2: #{tpu_custom_call.1} parent=1 // loop_pre_header
      _
    $region3: #{tpu_custom_call.1} parent=1 // loop_header
      %s28 = sphi 0, %s32
      %p29 = scmp.ge.s32.totalorder %s28, 4
      %s38 = sphi 0, %s40
      %s41 = sphi 0, %s38
      %s42 = sphi 0, %s41
      %s58 = sphi 0, %s42
      %s64 = sphi 0, %s66
      %s67 = sphi 0, %s64
      %s68 = sphi 0, %s67
      %s84 = sphi 0, %s68
      %s90 = sphi 0, %s92
      %s93 = sphi 0, %s90
      %s94 = sphi 0, %s93
      %s110 = sphi 0, %s94
      %s114 = sphi 0, %s114
      %s116 = sphi 0, %s114
      %s117 = sphi 0, %s116
      %s131 = sphi 0, %s117
      %s135 = sphi 0, %s135
      %s137 = sphi 0, %s135
      %s138 = sphi 0, %s137
      %s152 = sphi 0, %s138
      %s156 = sphi 0, %s156
      %s158 = sphi 0, %s156
      %s159 = sphi 0, %s158
      %s173 = sphi 0, %s159
      %s177 = sphi 0, %s177
      %s179 = sphi 0, %s177
      %s180 = sphi 0, %s179
      %s194 = sphi 0, %s180
      %s198 = sphi 0, %s198
      %s200 = sphi 0, %s198
      %s201 = sphi 0, %s200
      %s215 = sphi 0, %s201
      %s219 = sphi 0, %s219
      %s221 = sphi 0, %s219
      %s222 = sphi 0, %s221
      %s236 = sphi 0, %s222
      %s240 = sphi 0, %s240
      %s242 = sphi 0, %s240
      %s243 = sphi 0, %s242
      %s257 = sphi 0, %s243
      %s261 = sphi 0, %s261
      %s263 = sphi 0, %s261
      %s264 = sphi 0, %s263
      %s278 = sphi 0, %s264
      %s284 = sphi 0, %s286
      %s287 = sphi 0, %s284
      %s288 = sphi 0, %s287
      %s304 = sphi 0, %s288
    $region4: #{tpu_custom_call.1} parent=1 // loop_header_branch
      %31 = sbr.rel (%p29) target = $region8
    $region5: #{tpu_custom_call.1} parent=1 // loop_body
      %s33 = ssub.s32 %s28, 1
      %s34 = ssub.s32 %s28, 2
      %s35 = sadd.s32 %s28, 1
      %s36 = ssub.s32 %s28, %s35
      %p37 = scmp.eq.s32.totalorder %s36, 0
      %s39 = sadd.s32 %s38, 1
      %s40 = scalar_select %p37, %s38, %s39
      %p43 = pneg %p37
      %p44 = scmp.eq.s32.totalorder %s28, 1
      %p45 = por %p43, %p44
      %p46 = scmp.ne.s32.totalorder %s38, %s41
      %p47 = scmp.eq.s32.totalorder %s28, 0
      %p48 = por %p46, %p47
      %p49 = scmp.ne.s32.totalorder %s38, %s41
      %p50 = scmp.eq.s32.totalorder %s33, 1
      %p51 = por %p49, %p50
      %p52 = scmp.ne.s32.totalorder %s41, %s42
      %p53 = scmp.eq.s32.totalorder %s33, 0
      %p54 = por %p52, %p53
      %p55 = scmp.ne.s32.totalorder %s41, %s42
      %p56 = scmp.eq.s32.totalorder %s34, 1
      %p57 = por %p55, %p56
      %p59 = scmp.ne.s32.totalorder %s42, %s58
      %p60 = scmp.eq.s32.totalorder %s34, 0
      %p61 = por %p59, %p60
      %s62 = ssub.s32 %s28, %s35
      %p63 = scmp.eq.s32.totalorder %s62, 0
      %s65 = sadd.s32 %s64, 1
      %s66 = scalar_select %p63, %s64, %s65
      %p69 = pneg %p63
      %p70 = scmp.eq.s32.totalorder %s28, 1
      %p71 = por %p69, %p70
      %p72 = scmp.ne.s32.totalorder %s64, %s67
      %p73 = scmp.eq.s32.totalorder %s28, 0
      %p74 = por %p72, %p73
      %p75 = scmp.ne.s32.totalorder %s64, %s67
      %p76 = scmp.eq.s32.totalorder %s33, 1
      %p77 = por %p75, %p76
      %p78 = scmp.ne.s32.totalorder %s67, %s68
      %p79 = scmp.eq.s32.totalorder %s33, 0
      %p80 = por %p78, %p79
      %p81 = scmp.ne.s32.totalorder %s67, %s68
      %p82 = scmp.eq.s32.totalorder %s34, 1
      %p83 = por %p81, %p82
      %p85 = scmp.ne.s32.totalorder %s68, %s84
      %p86 = scmp.eq.s32.totalorder %s34, 0
      %p87 = por %p85, %p86
      %s88 = ssub.s32 %s28, %s35
      %p89 = scmp.eq.s32.totalorder %s88, 0
      %s91 = sadd.s32 %s90, 1
      %s92 = scalar_select %p89, %s90, %s91
      %p95 = pneg %p89
      %p96 = scmp.eq.s32.totalorder %s28, 1
      %p97 = por %p95, %p96
      %p98 = scmp.ne.s32.totalorder %s90, %s93
      %p99 = scmp.eq.s32.totalorder %s28, 0
      %p100 = por %p98, %p99
      %p101 = scmp.ne.s32.totalorder %s90, %s93
      %p102 = scmp.eq.s32.totalorder %s33, 1
      %p103 = por %p101, %p102
      %p104 = scmp.ne.s32.totalorder %s93, %s94
      %p105 = scmp.eq.s32.totalorder %s33, 0
      %p106 = por %p104, %p105
      %p107 = scmp.ne.s32.totalorder %s93, %s94
      %p108 = scmp.eq.s32.totalorder %s34, 1
      %p109 = por %p107, %p108
      %p111 = scmp.ne.s32.totalorder %s94, %s110
      %p112 = scmp.eq.s32.totalorder %s34, 0
      %p113 = por %p111, %p112
      %s115 = sadd.s32 %s114, 1
      %p118 = scmp.eq.s32.totalorder %s28, 1
      %p119 = scmp.ne.s32.totalorder %s114, %s116
      %p120 = scmp.eq.s32.totalorder %s28, 0
      %p121 = por %p119, %p120
      %p122 = scmp.ne.s32.totalorder %s114, %s116
      %p123 = scmp.eq.s32.totalorder %s33, 1
      %p124 = por %p122, %p123
      %p125 = scmp.ne.s32.totalorder %s116, %s117
      %p126 = scmp.eq.s32.totalorder %s33, 0
      %p127 = por %p125, %p126
      %p128 = scmp.ne.s32.totalorder %s116, %s117
      %p129 = scmp.eq.s32.totalorder %s34, 1
      %p130 = por %p128, %p129
      %p132 = scmp.ne.s32.totalorder %s117, %s131
      %p133 = scmp.eq.s32.totalorder %s34, 0
      %p134 = por %p132, %p133
      %s136 = sadd.s32 %s135, 1
      %p139 = scmp.eq.s32.totalorder %s28, 1
      %p140 = scmp.ne.s32.totalorder %s135, %s137
      %p141 = scmp.eq.s32.totalorder %s28, 0
      %p142 = por %p140, %p141
      %p143 = scmp.ne.s32.totalorder %s135, %s137
      %p144 = scmp.eq.s32.totalorder %s33, 1
      %p145 = por %p143, %p144
      %p146 = scmp.ne.s32.totalorder %s137, %s138
      %p147 = scmp.eq.s32.totalorder %s33, 0
      %p148 = por %p146, %p147
      %p149 = scmp.ne.s32.totalorder %s137, %s138
      %p150 = scmp.eq.s32.totalorder %s34, 1
      %p151 = por %p149, %p150
      %p153 = scmp.ne.s32.totalorder %s138, %s152
      %p154 = scmp.eq.s32.totalorder %s34, 0
      %p155 = por %p153, %p154
      %s157 = sadd.s32 %s156, 1
      %p160 = scmp.eq.s32.totalorder %s28, 1
      %p161 = scmp.ne.s32.totalorder %s156, %s158
      %p162 = scmp.eq.s32.totalorder %s28, 0
      %p163 = por %p161, %p162
      %p164 = scmp.ne.s32.totalorder %s156, %s158
      %p165 = scmp.eq.s32.totalorder %s33, 1
      %p166 = por %p164, %p165
      %p167 = scmp.ne.s32.totalorder %s158, %s159
      %p168 = scmp.eq.s32.totalorder %s33, 0
      %p169 = por %p167, %p168
      %p170 = scmp.ne.s32.totalorder %s158, %s159
      %p171 = scmp.eq.s32.totalorder %s34, 1
      %p172 = por %p170, %p171
      %p174 = scmp.ne.s32.totalorder %s159, %s173
      %p175 = scmp.eq.s32.totalorder %s34, 0
      %p176 = por %p174, %p175
      %s178 = sadd.s32 %s177, 1
      %p181 = scmp.eq.s32.totalorder %s28, 1
      %p182 = scmp.ne.s32.totalorder %s177, %s179
      %p183 = scmp.eq.s32.totalorder %s28, 0
      %p184 = por %p182, %p183
      %p185 = scmp.ne.s32.totalorder %s177, %s179
      %p186 = scmp.eq.s32.totalorder %s33, 1
      %p187 = por %p185, %p186
      %p188 = scmp.ne.s32.totalorder %s179, %s180
      %p189 = scmp.eq.s32.totalorder %s33, 0
      %p190 = por %p188, %p189
      %p191 = scmp.ne.s32.totalorder %s179, %s180
      %p192 = scmp.eq.s32.totalorder %s34, 1
      %p193 = por %p191, %p192
      %p195 = scmp.ne.s32.totalorder %s180, %s194
      %p196 = scmp.eq.s32.totalorder %s34, 0
      %p197 = por %p195, %p196
      %s199 = sadd.s32 %s198, 1
      %p202 = scmp.eq.s32.totalorder %s28, 1
      %p203 = scmp.ne.s32.totalorder %s198, %s200
      %p204 = scmp.eq.s32.totalorder %s28, 0
      %p205 = por %p203, %p204
      %p206 = scmp.ne.s32.totalorder %s198, %s200
      %p207 = scmp.eq.s32.totalorder %s33, 1
      %p208 = por %p206, %p207
      %p209 = scmp.ne.s32.totalorder %s200, %s201
      %p210 = scmp.eq.s32.totalorder %s33, 0
      %p211 = por %p209, %p210
      %p212 = scmp.ne.s32.totalorder %s200, %s201
      %p213 = scmp.eq.s32.totalorder %s34, 1
      %p214 = por %p212, %p213
      %p216 = scmp.ne.s32.totalorder %s201, %s215
      %p217 = scmp.eq.s32.totalorder %s34, 0
      %p218 = por %p216, %p217
      %s220 = sadd.s32 %s219, 1
      %p223 = scmp.eq.s32.totalorder %s28, 1
      %p224 = scmp.ne.s32.totalorder %s219, %s221
      %p225 = scmp.eq.s32.totalorder %s28, 0
      %p226 = por %p224, %p225
      %p227 = scmp.ne.s32.totalorder %s219, %s221
      %p228 = scmp.eq.s32.totalorder %s33, 1
      %p229 = por %p227, %p228
      %p230 = scmp.ne.s32.totalorder %s221, %s222
      %p231 = scmp.eq.s32.totalorder %s33, 0
      %p232 = por %p230, %p231
      %p233 = scmp.ne.s32.totalorder %s221, %s222
      %p234 = scmp.eq.s32.totalorder %s34, 1
      %p235 = por %p233, %p234
      %p237 = scmp.ne.s32.totalorder %s222, %s236
      %p238 = scmp.eq.s32.totalorder %s34, 0
      %p239 = por %p237, %p238
      %s241 = sadd.s32 %s240, 1
      %p244 = scmp.eq.s32.totalorder %s28, 1
      %p245 = scmp.ne.s32.totalorder %s240, %s242
      %p246 = scmp.eq.s32.totalorder %s28, 0
      %p247 = por %p245, %p246
      %p248 = scmp.ne.s32.totalorder %s240, %s242
      %p249 = scmp.eq.s32.totalorder %s33, 1
      %p250 = por %p248, %p249
      %p251 = scmp.ne.s32.totalorder %s242, %s243
      %p252 = scmp.eq.s32.totalorder %s33, 0
      %p253 = por %p251, %p252
      %p254 = scmp.ne.s32.totalorder %s242, %s243
      %p255 = scmp.eq.s32.totalorder %s34, 1
      %p256 = por %p254, %p255
      %p258 = scmp.ne.s32.totalorder %s243, %s257
      %p259 = scmp.eq.s32.totalorder %s34, 0
      %p260 = por %p258, %p259
      %s262 = sadd.s32 %s261, 1
      %p265 = scmp.eq.s32.totalorder %s28, 1
      %p266 = scmp.ne.s32.totalorder %s261, %s263
      %p267 = scmp.eq.s32.totalorder %s28, 0
      %p268 = por %p266, %p267
      %p269 = scmp.ne.s32.totalorder %s261, %s263
      %p270 = scmp.eq.s32.totalorder %s33, 1
      %p271 = por %p269, %p270
      %p272 = scmp.ne.s32.totalorder %s263, %s264
      %p273 = scmp.eq.s32.totalorder %s33, 0
      %p274 = por %p272, %p273
      %p275 = scmp.ne.s32.totalorder %s263, %s264
      %p276 = scmp.eq.s32.totalorder %s34, 1
      %p277 = por %p275, %p276
      %p279 = scmp.ne.s32.totalorder %s264, %s278
      %p280 = scmp.eq.s32.totalorder %s34, 0
      %p281 = por %p279, %p280
      %s282 = ssub.s32 %s28, %s35
      %p283 = scmp.eq.s32.totalorder %s282, 0
      %s285 = sadd.s32 %s284, 1
      %s286 = scalar_select %p283, %s284, %s285
      %p289 = pneg %p283
      %p290 = scmp.eq.s32.totalorder %s28, 1
      %p291 = por %p289, %p290
      %p292 = scmp.ne.s32.totalorder %s284, %s287
      %p293 = scmp.eq.s32.totalorder %s28, 0
      %p294 = por %p292, %p293
      %p295 = scmp.ne.s32.totalorder %s284, %s287
      %p296 = scmp.eq.s32.totalorder %s33, 1
      %p297 = por %p295, %p296
      %p298 = scmp.ne.s32.totalorder %s287, %s288
      %p299 = scmp.eq.s32.totalorder %s33, 0
      %p300 = por %p298, %p299
      %p301 = scmp.ne.s32.totalorder %s287, %s288
      %p302 = scmp.eq.s32.totalorder %s34, 1
      %p303 = por %p301, %p302
      %p305 = scmp.ne.s32.totalorder %s288, %s304
      %p306 = scmp.eq.s32.totalorder %s34, 0
      %p307 = por %p305, %p306
      %p308 = scmp.le.s32.totalorder 1, %s28
      %p309 = scmp.lt.s32.totalorder %s28, 3
      %p310 = pnand %p308, %p309
      %p311 = pneg %p310
      // Predicated region
      $region9: #{tpu_custom_call.1} parent=5 // pred_check
        _
      $region10: #{tpu_custom_call.1} parent=5 // pred_check_branch
        %313 = sbr.rel (%p310) target = $region12
      $region11: #{tpu_custom_call.1} parent=5 // pred_region
        %s314 = ssub.s32 %s28, 1
        // Predicated region
        $region13: #{tpu_custom_call.1} parent=11 // pred_check
          %p315 = pneg %p127
        $region14: #{tpu_custom_call.1} parent=11 // pred_check_branch
          %317 = sbr.rel (%p315) target = $region16
        $region15: #{tpu_custom_call.1} parent=11 // pred_region
          %s319 = ssub.s32 32768, 32768
          %320 = vsyncadd [#allocation12], %s319
          %s321 = sshll.u32 [#allocation11], 4
          %s322 = int_to_ptr.vmem [resolvable:$true] %s321
          %327 = dma.hbm_to_vmem [thread:$0]  %s3, 32768, %s322, [#allocation12], 512, 512, 32
        $region16: #{tpu_custom_call.1} parent=11 // pred_fallthru
          _
        // Predicated region
        $region17: #{tpu_custom_call.1} parent=11 // pred_check
          %p328 = pneg %p148
        $region18: #{tpu_custom_call.1} parent=11 // pred_check_branch
          %330 = sbr.rel (%p328) target = $region20
        $region19: #{tpu_custom_call.1} parent=11 // pred_region
          %s332 = ssub.s32 32768, 32768
          %333 = vsyncadd [#allocation12], %s332
          %s334 = sshll.u32 [#allocation13], 4
          %s335 = int_to_ptr.vmem [resolvable:$true] %s334
          %340 = dma.hbm_to_vmem [thread:$0]  %s4, 32768, %s335, [#allocation12], 512, 512, 32
        $region20: #{tpu_custom_call.1} parent=11 // pred_fallthru
          _
        // Predicated region
        $region21: #{tpu_custom_call.1} parent=11 // pred_check
          %p341 = pneg %p169
        $region22: #{tpu_custom_call.1} parent=11 // pred_check_branch
          %343 = sbr.rel (%p341) target = $region24
        $region23: #{tpu_custom_call.1} parent=11 // pred_region
          %s345 = ssub.s32 32768, 32768
          %346 = vsyncadd [#allocation15], %s345
          %s347 = sshll.u32 [#allocation14], 4
          %s348 = int_to_ptr.vmem [resolvable:$true] %s347
          %353 = dma.hbm_to_vmem [thread:$0]  %s5, 32768, %s348, [#allocation15], 512, 512, 32
        $region24: #{tpu_custom_call.1} parent=11 // pred_fallthru
          _
        // Predicated region
        $region25: #{tpu_custom_call.1} parent=11 // pred_check
          %p354 = pneg %p190
        $region26: #{tpu_custom_call.1} parent=11 // pred_check_branch
          %356 = sbr.rel (%p354) target = $region28
        $region27: #{tpu_custom_call.1} parent=11 // pred_region
          %s358 = ssub.s32 32768, 32768
          %359 = vsyncadd [#allocation15], %s358
          %s360 = sshll.u32 [#allocation16], 4
          %s361 = int_to_ptr.vmem [resolvable:$true] %s360
          %366 = dma.hbm_to_vmem [thread:$0]  %s6, 32768, %s361, [#allocation15], 512, 512, 32
        $region28: #{tpu_custom_call.1} parent=11 // pred_fallthru
          _
        // Predicated region
        $region29: #{tpu_custom_call.1} parent=11 // pred_check
          %p367 = pneg %p211
        $region30: #{tpu_custom_call.1} parent=11 // pred_check_branch
          %369 = sbr.rel (%p367) target = $region32
        $region31: #{tpu_custom_call.1} parent=11 // pred_region
          _
        $region32: #{tpu_custom_call.1} parent=11 // pred_fallthru
          _
        // Predicated region
        $region33: #{tpu_custom_call.1} parent=11 // pred_check
          %p370 = pneg %p232
        $region34: #{tpu_custom_call.1} parent=11 // pred_check_branch
          %372 = sbr.rel (%p370) target = $region36
        $region35: #{tpu_custom_call.1} parent=11 // pred_region
          _
        $region36: #{tpu_custom_call.1} parent=11 // pred_fallthru
          _
        // Predicated region
        $region37: #{tpu_custom_call.1} parent=11 // pred_check
          %p373 = pneg %p253
        $region38: #{tpu_custom_call.1} parent=11 // pred_check_branch
          %375 = sbr.rel (%p373) target = $region40
        $region39: #{tpu_custom_call.1} parent=11 // pred_region
          _
        $region40: #{tpu_custom_call.1} parent=11 // pred_fallthru
          _
        // Predicated region
        $region41: #{tpu_custom_call.1} parent=11 // pred_check
          %p376 = pneg %p274
        $region42: #{tpu_custom_call.1} parent=11 // pred_check_branch
          %378 = sbr.rel (%p376) target = $region44
        $region43: #{tpu_custom_call.1} parent=11 // pred_region
          _
        $region44: #{tpu_custom_call.1} parent=11 // pred_fallthru
          _
      $region12: #{tpu_custom_call.1} parent=5 // pred_fallthru
        _
      %p379 = scmp.lt.s32.totalorder %s28, 2
      // Predicated region
      $region45: #{tpu_custom_call.1} parent=5 // pred_check
        %p380 = pneg %p379
      $region46: #{tpu_custom_call.1} parent=5 // pred_check_branch
        %382 = sbr.rel (%p380) target = $region48
      $region47: #{tpu_custom_call.1} parent=5 // pred_region
        // Predicated region
        $region49: #{tpu_custom_call.1} parent=47 // pred_check
          %p383 = pneg %p48
        $region50: #{tpu_custom_call.1} parent=47 // pred_check_branch
          %385 = sbr.rel (%p383) target = $region52
        $region51: #{tpu_custom_call.1} parent=47 // pred_region
          %s386 = sand.u32 %s38, 1
          %s387 = scalar_lea.sflag [#allocation6], %s386
          %s388 = sand.u32 %s38, 1
          %s389 = smul.addr %s388, 32
          %s390 = scalar_lea.vmem [#allocation5], %s389
          %s392 = ssub.s32 512, 512
          %393 = vsyncadd %s387, %s392
          %s394 = smul.addr %s28, 4
          %s395 = smul.addr %s394, 128
          %s396 = scalar_lea.hbm %s0, %s395
          %s398 = sshll.u32 %s390, 4
          %s399 = int_to_ptr.vmem [resolvable:$true] %s398
          %401 = dma.hbm_to_vmem [thread:$0]  %s396, 512, %s399, %s387
        $region52: #{tpu_custom_call.1} parent=47 // pred_fallthru
          _
        // Predicated region
        $region53: #{tpu_custom_call.1} parent=47 // pred_check
          %p402 = pneg %p74
        $region54: #{tpu_custom_call.1} parent=47 // pred_check_branch
          %404 = sbr.rel (%p402) target = $region56
        $region55: #{tpu_custom_call.1} parent=47 // pred_region
          %s405 = sand.u32 %s28, 1
          %s406 = scalar_lea.sflag [#allocation9], %s405
          %s407 = sand.u32 %s64, 1
          %s408 = smul.addr %s407, 32
          %s409 = scalar_lea.vmem [#allocation8], %s408
          %s411 = ssub.s32 512, 512
          %412 = vsyncadd %s406, %s411
          %s413 = smul.addr %s28, 4
          %s414 = smul.addr %s413, 128
          %s415 = scalar_lea.hbm %s1, %s414
          %s417 = sshll.u32 %s409, 4
          %s418 = int_to_ptr.vmem [resolvable:$true] %s417
          %420 = dma.hbm_to_vmem [thread:$0]  %s415, 512, %s418, %s406
        $region56: #{tpu_custom_call.1} parent=47 // pred_fallthru
          _
        // Predicated region
        $region57: #{tpu_custom_call.1} parent=47 // pred_check
          %p421 = pneg %p100
        $region58: #{tpu_custom_call.1} parent=47 // pred_check_branch
          %423 = sbr.rel (%p421) target = $region60
        $region59: #{tpu_custom_call.1} parent=47 // pred_region
          %s424 = sand.u32 %s28, 1
          %s425 = scalar_lea.sflag [#allocation9], %s424
          %s426 = sand.u32 %s90, 1
          %s427 = smul.addr %s426, 32
          %s428 = scalar_lea.vmem [#allocation10], %s427
          %s430 = ssub.s32 512, 512
          %431 = vsyncadd %s425, %s430
          %s432 = smul.addr %s28, 4
          %s433 = smul.addr %s432, 128
          %s434 = scalar_lea.hbm %s2, %s433
          %s436 = sshll.u32 %s428, 4
          %s437 = int_to_ptr.vmem [resolvable:$true] %s436
          %439 = dma.hbm_to_vmem [thread:$0]  %s434, 512, %s437, %s425
        $region60: #{tpu_custom_call.1} parent=47 // pred_fallthru
          _
      $region48: #{tpu_custom_call.1} parent=5 // pred_fallthru
        _
      %p440 = scmp.le.s32.totalorder 1, %s28
      %p441 = scmp.lt.s32.totalorder %s28, 3
      %p442 = pnand %p440, %p441
      %p443 = pneg %p442
      // Predicated region
      $region61: #{tpu_custom_call.1} parent=5 // pred_check
        _
      $region62: #{tpu_custom_call.1} parent=5 // pred_check_branch
        %445 = sbr.rel (%p442) target = $region64
      $region63: #{tpu_custom_call.1} parent=5 // pred_region
        %s446 = ssub.s32 %s28, 1
        %s447 = sand.u32 %s41, 1
        %s448 = scalar_lea.sflag [#allocation6], %s447
        %s449 = sand.u32 %s41, 1
        %s450 = smul.addr %s449, 32
        %s451 = scalar_lea.vmem [#allocation5], %s450
        // Predicated region
        $region65: #{tpu_custom_call.1} parent=63 // pred_check
          %p452 = pneg %p54
        $region66: #{tpu_custom_call.1} parent=63 // pred_check_branch
          %454 = sbr.rel (%p452) target = $region68
        $region67: #{tpu_custom_call.1} parent=63 // pred_region
          %455 = dma.done %s448, 512
        $region68: #{tpu_custom_call.1} parent=63 // pred_fallthru
          _
        %s456 = sand.u32 %s33, 1
        %s457 = scalar_lea.sflag [#allocation9], %s456
        %s458 = sand.u32 %s67, 1
        %s459 = smul.addr %s458, 32
        %s460 = scalar_lea.vmem [#allocation8], %s459
        // Predicated region
        $region69: #{tpu_custom_call.1} parent=63 // pred_check
          %p461 = pneg %p80
        $region70: #{tpu_custom_call.1} parent=63 // pred_check_branch
          %463 = sbr.rel (%p461) target = $region72
        $region71: #{tpu_custom_call.1} parent=63 // pred_region
          %464 = dma.done %s457, 512
        $region72: #{tpu_custom_call.1} parent=63 // pred_fallthru
          _
        %s465 = sand.u32 %s33, 1
        %s466 = scalar_lea.sflag [#allocation9], %s465
        %s467 = sand.u32 %s93, 1
        %s468 = smul.addr %s467, 32
        %s469 = scalar_lea.vmem [#allocation10], %s468
        // Predicated region
        $region73: #{tpu_custom_call.1} parent=63 // pred_check
          %p470 = pneg %p106
        $region74: #{tpu_custom_call.1} parent=63 // pred_check_branch
          %472 = sbr.rel (%p470) target = $region76
        $region75: #{tpu_custom_call.1} parent=63 // pred_region
          %473 = dma.done %s466, 512
        $region76: #{tpu_custom_call.1} parent=63 // pred_fallthru
          _
        // Predicated region
        $region77: #{tpu_custom_call.1} parent=63 // pred_check
          %p474 = pneg %p127
        $region78: #{tpu_custom_call.1} parent=63 // pred_check_branch
          %476 = sbr.rel (%p474) target = $region80
        $region79: #{tpu_custom_call.1} parent=63 // pred_region
          %477 = dma.done [#allocation12], 32768
        $region80: #{tpu_custom_call.1} parent=63 // pred_fallthru
          _
        // Predicated region
        $region81: #{tpu_custom_call.1} parent=63 // pred_check
          %p478 = pneg %p148
        $region82: #{tpu_custom_call.1} parent=63 // pred_check_branch
          %480 = sbr.rel (%p478) target = $region84
        $region83: #{tpu_custom_call.1} parent=63 // pred_region
          %481 = dma.done [#allocation12], 32768
        $region84: #{tpu_custom_call.1} parent=63 // pred_fallthru
          _
        // Predicated region
        $region85: #{tpu_custom_call.1} parent=63 // pred_check
          %p482 = pneg %p169
        $region86: #{tpu_custom_call.1} parent=63 // pred_check_branch
          %484 = sbr.rel (%p482) target = $region88
        $region87: #{tpu_custom_call.1} parent=63 // pred_region
          %485 = dma.done [#allocation15], 32768
        $region88: #{tpu_custom_call.1} parent=63 // pred_fallthru
          _
        // Predicated region
        $region89: #{tpu_custom_call.1} parent=63 // pred_check
          %p486 = pneg %p190
        $region90: #{tpu_custom_call.1} parent=63 // pred_check_branch
          %488 = sbr.rel (%p486) target = $region92
        $region91: #{tpu_custom_call.1} parent=63 // pred_region
          %489 = dma.done [#allocation15], 32768
        $region92: #{tpu_custom_call.1} parent=63 // pred_fallthru
          _
        %s490 = sand.u32 %s41, 1
        %s491 = scalar_lea.sflag [#allocation6], %s490
        %s492 = sand.u32 %s41, 1
        %s493 = smul.addr %s492, 32
        %s494 = scalar_lea.vmem [#allocation5], %s493
        %p495 = pneg %p54
        %p496 = pneg %p51
        %s497 = sand.u32 %s33, 1
        %s498 = scalar_lea.sflag [#allocation9], %s497
        %s499 = sand.u32 %s67, 1
        %s500 = smul.addr %s499, 32
        %s501 = scalar_lea.vmem [#allocation8], %s500
        %p502 = pneg %p80
        %p503 = pneg %p77
        %s504 = sand.u32 %s33, 1
        %s505 = scalar_lea.sflag [#allocation9], %s504
        %s506 = sand.u32 %s93, 1
        %s507 = smul.addr %s506, 32
        %s508 = scalar_lea.vmem [#allocation10], %s507
        %p509 = pneg %p106
        %p510 = pneg %p103
        %p511 = pneg %p127
        %p512 = pneg %p124
        %p513 = pneg %p148
        %p514 = pneg %p145
        %p515 = pneg %p169
        %p516 = pneg %p166
        %p517 = pneg %p190
        %p518 = pneg %p187
        %p519 = pneg %p211
        %p520 = pneg %p208
        %p521 = pneg %p232
        %p522 = pneg %p229
        %p523 = pneg %p253
        %p524 = pneg %p250
        %p525 = pneg %p274
        %p526 = pneg %p271
        %p527 = pneg %p300
        %p528 = pneg %p297
        %s529 = sand.u32 %s287, 1
        %s530 = scalar_lea.sflag [#allocation7], %s529
        %s531 = sand.u32 %s287, 1
        %s532 = smul.addr %s531, 32
        %s533 = scalar_lea.vmem [#allocation17], %s532
        %v534 = vld [vmem:[%s451] sm:$0xff]
        %v535 = vld [vmem:[%s451 + $0x8] sm:$0xff]
        %v536 = vld [vmem:[%s451 + $0x10] sm:$0xff]
        %v537 = vld [vmem:[%s451 + $0x18] sm:$0xff]
        %v538 = vld [vmem:[#allocation11] sm:$0xff]
        %v539 = vld [vmem:[#allocation11 + $0x8] sm:$0xff]
        %v540 = vld [vmem:[#allocation11 + $0x10] sm:$0xff]
        %v541 = vld [vmem:[#allocation11 + $0x18] sm:$0xff]
        %v542 = vld [vmem:[#allocation11 + $0x20] sm:$0xff]
        %v543 = vld [vmem:[#allocation11 + $0x28] sm:$0xff]
        %v544 = vld [vmem:[#allocation11 + $0x30] sm:$0xff]
        %v545 = vld [vmem:[#allocation11 + $0x38] sm:$0xff]
        %v546 = vld [vmem:[#allocation11 + $0x40] sm:$0xff]
        %v547 = vld [vmem:[#allocation11 + $0x48] sm:$0xff]
        %v548 = vld [vmem:[#allocation11 + $0x50] sm:$0xff]
        %v549 = vld [vmem:[#allocation11 + $0x58] sm:$0xff]
        %v550 = vld [vmem:[#allocation11 + $0x60] sm:$0xff]
        %v551 = vld [vmem:[#allocation11 + $0x68] sm:$0xff]
        %v552 = vld [vmem:[#allocation11 + $0x70] sm:$0xff]
        %v553 = vld [vmem:[#allocation11 + $0x78] sm:$0xff]
        %v554 = vld [vmem:[#allocation11 + $0x80] sm:$0xff]
        %v555 = vld [vmem:[#allocation11 + $0x88] sm:$0xff]
        %v556 = vld [vmem:[#allocation11 + $0x90] sm:$0xff]
        %v557 = vld [vmem:[#allocation11 + $0x98] sm:$0xff]
        %v558 = vld [vmem:[#allocation11 + $0xa0] sm:$0xff]
        %v559 = vld [vmem:[#allocation11 + $0xa8] sm:$0xff]
        %v560 = vld [vmem:[#allocation11 + $0xb0] sm:$0xff]
        %v561 = vld [vmem:[#allocation11 + $0xb8] sm:$0xff]
        %v562 = vld [vmem:[#allocation11 + $0xc0] sm:$0xff]
        %v563 = vld [vmem:[#allocation11 + $0xc8] sm:$0xff]
        %v564 = vld [vmem:[#allocation11 + $0xd0] sm:$0xff]
        %v565 = vld [vmem:[#allocation11 + $0xd8] sm:$0xff]
        %v566 = vld [vmem:[#allocation11 + $0xe0] sm:$0xff]
        %v567 = vld [vmem:[#allocation11 + $0xe8] sm:$0xff]
        %v568 = vld [vmem:[#allocation11 + $0xf0] sm:$0xff]
        %v569 = vld [vmem:[#allocation11 + $0xf8] sm:$0xff]
        %v570 = vld [vmem:[#allocation11 + $0x100] sm:$0xff]
        %v571 = vld [vmem:[#allocation11 + $0x108] sm:$0xff]
        %v572 = vld [vmem:[#allocation11 + $0x110] sm:$0xff]
        %v573 = vld [vmem:[#allocation11 + $0x118] sm:$0xff]
        %v574 = vld [vmem:[#allocation11 + $0x120] sm:$0xff]
        %v575 = vld [vmem:[#allocation11 + $0x128] sm:$0xff]
        %v576 = vld [vmem:[#allocation11 + $0x130] sm:$0xff]
        %v577 = vld [vmem:[#allocation11 + $0x138] sm:$0xff]
        %v578 = vld [vmem:[#allocation11 + $0x140] sm:$0xff]
        %v579 = vld [vmem:[#allocation11 + $0x148] sm:$0xff]
        %v580 = vld [vmem:[#allocation11 + $0x150] sm:$0xff]
        %v581 = vld [vmem:[#allocation11 + $0x158] sm:$0xff]
        %v582 = vld [vmem:[#allocation11 + $0x160] sm:$0xff]
        %v583 = vld [vmem:[#allocation11 + $0x168] sm:$0xff]
        %v584 = vld [vmem:[#allocation11 + $0x170] sm:$0xff]
        %v585 = vld [vmem:[#allocation11 + $0x178] sm:$0xff]
        %v586 = vld [vmem:[#allocation11 + $0x180] sm:$0xff]
        %v587 = vld [vmem:[#allocation11 + $0x188] sm:$0xff]
        %v588 = vld [vmem:[#allocation11 + $0x190] sm:$0xff]
        %v589 = vld [vmem:[#allocation11 + $0x198] sm:$0xff]
        %v590 = vld [vmem:[#allocation11 + $0x1a0] sm:$0xff]
        %v591 = vld [vmem:[#allocation11 + $0x1a8] sm:$0xff]
        %v592 = vld [vmem:[#allocation11 + $0x1b0] sm:$0xff]
        %v593 = vld [vmem:[#allocation11 + $0x1b8] sm:$0xff]
        %v594 = vld [vmem:[#allocation11 + $0x1c0] sm:$0xff]
        %v595 = vld [vmem:[#allocation11 + $0x1c8] sm:$0xff]
        %v596 = vld [vmem:[#allocation11 + $0x1d0] sm:$0xff]
        %v597 = vld [vmem:[#allocation11 + $0x1d8] sm:$0xff]
        %v598 = vld [vmem:[#allocation11 + $0x1e0] sm:$0xff]
        %v599 = vld [vmem:[#allocation11 + $0x1e8] sm:$0xff]
        %v600 = vld [vmem:[#allocation11 + $0x1f0] sm:$0xff]
        %v601 = vld [vmem:[#allocation11 + $0x1f8] sm:$0xff]
        %v602 = vld [vmem:[#allocation11 + $0x200] sm:$0xff]
        %v603 = vld [vmem:[#allocation11 + $0x208] sm:$0xff]
        %v604 = vld [vmem:[#allocation11 + $0x210] sm:$0xff]
        %v605 = vld [vmem:[#allocation11 + $0x218] sm:$0xff]
        %v606 = vld [vmem:[#allocation11 + $0x220] sm:$0xff]
        %v607 = vld [vmem:[#allocation11 + $0x228] sm:$0xff]
        %v608 = vld [vmem:[#allocation11 + $0x230] sm:$0xff]
        %v609 = vld [vmem:[#allocation11 + $0x238] sm:$0xff]
        %v610 = vld [vmem:[#allocation11 + $0x240] sm:$0xff]
        %v611 = vld [vmem:[#allocation11 + $0x248] sm:$0xff]
        %v612 = vld [vmem:[#allocation11 + $0x250] sm:$0xff]
        %v613 = vld [vmem:[#allocation11 + $0x258] sm:$0xff]
        %v614 = vld [vmem:[#allocation11 + $0x260] sm:$0xff]
        %v615 = vld [vmem:[#allocation11 + $0x268] sm:$0xff]
        %v616 = vld [vmem:[#allocation11 + $0x270] sm:$0xff]
        %v617 = vld [vmem:[#allocation11 + $0x278] sm:$0xff]
        %v618 = vld [vmem:[#allocation11 + $0x280] sm:$0xff]
        %v619 = vld [vmem:[#allocation11 + $0x288] sm:$0xff]
        %v620 = vld [vmem:[#allocation11 + $0x290] sm:$0xff]
        %v621 = vld [vmem:[#allocation11 + $0x298] sm:$0xff]
        %v622 = vld [vmem:[#allocation11 + $0x2a0] sm:$0xff]
        %v623 = vld [vmem:[#allocation11 + $0x2a8] sm:$0xff]
        %v624 = vld [vmem:[#allocation11 + $0x2b0] sm:$0xff]
        %v625 = vld [vmem:[#allocation11 + $0x2b8] sm:$0xff]
        %v626 = vld [vmem:[#allocation11 + $0x2c0] sm:$0xff]
        %v627 = vld [vmem:[#allocation11 + $0x2c8] sm:$0xff]
        %v628 = vld [vmem:[#allocation11 + $0x2d0] sm:$0xff]
        %v629 = vld [vmem:[#allocation11 + $0x2d8] sm:$0xff]
        %v630 = vld [vmem:[#allocation11 + $0x2e0] sm:$0xff]
        %v631 = vld [vmem:[#allocation11 + $0x2e8] sm:$0xff]
        %v632 = vld [vmem:[#allocation11 + $0x2f0] sm:$0xff]
        %v633 = vld [vmem:[#allocation11 + $0x2f8] sm:$0xff]
        %v634 = vld [vmem:[#allocation11 + $0x300] sm:$0xff]
        %v635 = vld [vmem:[#allocation11 + $0x308] sm:$0xff]
        %v636 = vld [vmem:[#allocation11 + $0x310] sm:$0xff]
        %v637 = vld [vmem:[#allocation11 + $0x318] sm:$0xff]
        %v638 = vld [vmem:[#allocation11 + $0x320] sm:$0xff]
        %v639 = vld [vmem:[#allocation11 + $0x328] sm:$0xff]
        %v640 = vld [vmem:[#allocation11 + $0x330] sm:$0xff]
        %v641 = vld [vmem:[#allocation11 + $0x338] sm:$0xff]
        %v642 = vld [vmem:[#allocation11 + $0x340] sm:$0xff]
        %v643 = vld [vmem:[#allocation11 + $0x348] sm:$0xff]
        %v644 = vld [vmem:[#allocation11 + $0x350] sm:$0xff]
        %v645 = vld [vmem:[#allocation11 + $0x358] sm:$0xff]
        %v646 = vld [vmem:[#allocation11 + $0x360] sm:$0xff]
        %v647 = vld [vmem:[#allocation11 + $0x368] sm:$0xff]
        %v648 = vld [vmem:[#allocation11 + $0x370] sm:$0xff]
        %v649 = vld [vmem:[#allocation11 + $0x378] sm:$0xff]
        %v650 = vld [vmem:[#allocation11 + $0x380] sm:$0xff]
        %v651 = vld [vmem:[#allocation11 + $0x388] sm:$0xff]
        %v652 = vld [vmem:[#allocation11 + $0x390] sm:$0xff]
        %v653 = vld [vmem:[#allocation11 + $0x398] sm:$0xff]
        %v654 = vld [vmem:[#allocation11 + $0x3a0] sm:$0xff]
        %v655 = vld [vmem:[#allocation11 + $0x3a8] sm:$0xff]
        %v656 = vld [vmem:[#allocation11 + $0x3b0] sm:$0xff]
        %v657 = vld [vmem:[#allocation11 + $0x3b8] sm:$0xff]
        %v658 = vld [vmem:[#allocation11 + $0x3c0] sm:$0xff]
        %v659 = vld [vmem:[#allocation11 + $0x3c8] sm:$0xff]
        %v660 = vld [vmem:[#allocation11 + $0x3d0] sm:$0xff]
        %v661 = vld [vmem:[#allocation11 + $0x3d8] sm:$0xff]
        %v662 = vld [vmem:[#allocation11 + $0x3e0] sm:$0xff]
        %v663 = vld [vmem:[#allocation11 + $0x3e8] sm:$0xff]
        %v664 = vld [vmem:[#allocation11 + $0x3f0] sm:$0xff]
        %v665 = vld [vmem:[#allocation11 + $0x3f8] sm:$0xff]
        %v666 = vld [vmem:[#allocation11 + $0x400] sm:$0xff]
        %v667 = vld [vmem:[#allocation11 + $0x408] sm:$0xff]
        %v668 = vld [vmem:[#allocation11 + $0x410] sm:$0xff]
        %v669 = vld [vmem:[#allocation11 + $0x418] sm:$0xff]
        %v670 = vld [vmem:[#allocation11 + $0x420] sm:$0xff]
        %v671 = vld [vmem:[#allocation11 + $0x428] sm:$0xff]
        %v672 = vld [vmem:[#allocation11 + $0x430] sm:$0xff]
        %v673 = vld [vmem:[#allocation11 + $0x438] sm:$0xff]
        %v674 = vld [vmem:[#allocation11 + $0x440] sm:$0xff]
        %v675 = vld [vmem:[#allocation11 + $0x448] sm:$0xff]
        %v676 = vld [vmem:[#allocation11 + $0x450] sm:$0xff]
        %v677 = vld [vmem:[#allocation11 + $0x458] sm:$0xff]
        %v678 = vld [vmem:[#allocation11 + $0x460] sm:$0xff]
        %v679 = vld [vmem:[#allocation11 + $0x468] sm:$0xff]
        %v680 = vld [vmem:[#allocation11 + $0x470] sm:$0xff]
        %v681 = vld [vmem:[#allocation11 + $0x478] sm:$0xff]
        %v682 = vld [vmem:[#allocation11 + $0x480] sm:$0xff]
        %v683 = vld [vmem:[#allocation11 + $0x488] sm:$0xff]
        %v684 = vld [vmem:[#allocation11 + $0x490] sm:$0xff]
        %v685 = vld [vmem:[#allocation11 + $0x498] sm:$0xff]
        %v686 = vld [vmem:[#allocation11 + $0x4a0] sm:$0xff]
        %v687 = vld [vmem:[#allocation11 + $0x4a8] sm:$0xff]
        %v688 = vld [vmem:[#allocation11 + $0x4b0] sm:$0xff]
        %v689 = vld [vmem:[#allocation11 + $0x4b8] sm:$0xff]
        %v690 = vld [vmem:[#allocation11 + $0x4c0] sm:$0xff]
        %v691 = vld [vmem:[#allocation11 + $0x4c8] sm:$0xff]
        %v692 = vld [vmem:[#allocation11 + $0x4d0] sm:$0xff]
        %v693 = vld [vmem:[#allocation11 + $0x4d8] sm:$0xff]
        %v694 = vld [vmem:[#allocation11 + $0x4e0] sm:$0xff]
        %v695 = vld [vmem:[#allocation11 + $0x4e8] sm:$0xff]
        %v696 = vld [vmem:[#allocation11 + $0x4f0] sm:$0xff]
        %v697 = vld [vmem:[#allocation11 + $0x4f8] sm:$0xff]
        %v698 = vld [vmem:[#allocation11 + $0x500] sm:$0xff]
        %v699 = vld [vmem:[#allocation11 + $0x508] sm:$0xff]
        %v700 = vld [vmem:[#allocation11 + $0x510] sm:$0xff]
        %v701 = vld [vmem:[#allocation11 + $0x518] sm:$0xff]
        %v702 = vld [vmem:[#allocation11 + $0x520] sm:$0xff]
        %v703 = vld [vmem:[#allocation11 + $0x528] sm:$0xff]
        %v704 = vld [vmem:[#allocation11 + $0x530] sm:$0xff]
        %v705 = vld [vmem:[#allocation11 + $0x538] sm:$0xff]
        %v706 = vld [vmem:[#allocation11 + $0x540] sm:$0xff]
        %v707 = vld [vmem:[#allocation11 + $0x548] sm:$0xff]
        %v708 = vld [vmem:[#allocation11 + $0x550] sm:$0xff]
        %v709 = vld [vmem:[#allocation11 + $0x558] sm:$0xff]
        %v710 = vld [vmem:[#allocation11 + $0x560] sm:$0xff]
        %v711 = vld [vmem:[#allocation11 + $0x568] sm:$0xff]
        %v712 = vld [vmem:[#allocation11 + $0x570] sm:$0xff]
        %v713 = vld [vmem:[#allocation11 + $0x578] sm:$0xff]
        %v714 = vld [vmem:[#allocation11 + $0x580] sm:$0xff]
        %v715 = vld [vmem:[#allocation11 + $0x588] sm:$0xff]
        %v716 = vld [vmem:[#allocation11 + $0x590] sm:$0xff]
        %v717 = vld [vmem:[#allocation11 + $0x598] sm:$0xff]
        %v718 = vld [vmem:[#allocation11 + $0x5a0] sm:$0xff]
        %v719 = vld [vmem:[#allocation11 + $0x5a8] sm:$0xff]
        %v720 = vld [vmem:[#allocation11 + $0x5b0] sm:$0xff]
        %v721 = vld [vmem:[#allocation11 + $0x5b8] sm:$0xff]
        %v722 = vld [vmem:[#allocation11 + $0x5c0] sm:$0xff]
        %v723 = vld [vmem:[#allocation11 + $0x5c8] sm:$0xff]
        %v724 = vld [vmem:[#allocation11 + $0x5d0] sm:$0xff]
        %v725 = vld [vmem:[#allocation11 + $0x5d8] sm:$0xff]
        %v726 = vld [vmem:[#allocation11 + $0x5e0] sm:$0xff]
        %v727 = vld [vmem:[#allocation11 + $0x5e8] sm:$0xff]
        %v728 = vld [vmem:[#allocation11 + $0x5f0] sm:$0xff]
        %v729 = vld [vmem:[#allocation11 + $0x5f8] sm:$0xff]
        %v730 = vld [vmem:[#allocation11 + $0x600] sm:$0xff]
        %v731 = vld [vmem:[#allocation11 + $0x608] sm:$0xff]
        %v732 = vld [vmem:[#allocation11 + $0x610] sm:$0xff]
        %v733 = vld [vmem:[#allocation11 + $0x618] sm:$0xff]
        %v734 = vld [vmem:[#allocation11 + $0x620] sm:$0xff]
        %v735 = vld [vmem:[#allocation11 + $0x628] sm:$0xff]
        %v736 = vld [vmem:[#allocation11 + $0x630] sm:$0xff]
        %v737 = vld [vmem:[#allocation11 + $0x638] sm:$0xff]
        %v738 = vld [vmem:[#allocation11 + $0x640] sm:$0xff]
        %v739 = vld [vmem:[#allocation11 + $0x648] sm:$0xff]
        %v740 = vld [vmem:[#allocation11 + $0x650] sm:$0xff]
        %v741 = vld [vmem:[#allocation11 + $0x658] sm:$0xff]
        %v742 = vld [vmem:[#allocation11 + $0x660] sm:$0xff]
        %v743 = vld [vmem:[#allocation11 + $0x668] sm:$0xff]
        %v744 = vld [vmem:[#allocation11 + $0x670] sm:$0xff]
        %v745 = vld [vmem:[#allocation11 + $0x678] sm:$0xff]
        %v746 = vld [vmem:[#allocation11 + $0x680] sm:$0xff]
        %v747 = vld [vmem:[#allocation11 + $0x688] sm:$0xff]
        %v748 = vld [vmem:[#allocation11 + $0x690] sm:$0xff]
        %v749 = vld [vmem:[#allocation11 + $0x698] sm:$0xff]
        %v750 = vld [vmem:[#allocation11 + $0x6a0] sm:$0xff]
        %v751 = vld [vmem:[#allocation11 + $0x6a8] sm:$0xff]
        %v752 = vld [vmem:[#allocation11 + $0x6b0] sm:$0xff]
        %v753 = vld [vmem:[#allocation11 + $0x6b8] sm:$0xff]
        %v754 = vld [vmem:[#allocation11 + $0x6c0] sm:$0xff]
        %v755 = vld [vmem:[#allocation11 + $0x6c8] sm:$0xff]
        %v756 = vld [vmem:[#allocation11 + $0x6d0] sm:$0xff]
        %v757 = vld [vmem:[#allocation11 + $0x6d8] sm:$0xff]
        %v758 = vld [vmem:[#allocation11 + $0x6e0] sm:$0xff]
        %v759 = vld [vmem:[#allocation11 + $0x6e8] sm:$0xff]
        %v760 = vld [vmem:[#allocation11 + $0x6f0] sm:$0xff]
        %v761 = vld [vmem:[#allocation11 + $0x6f8] sm:$0xff]
        %v762 = vld [vmem:[#allocation11 + $0x700] sm:$0xff]
        %v763 = vld [vmem:[#allocation11 + $0x708] sm:$0xff]
        %v764 = vld [vmem:[#allocation11 + $0x710] sm:$0xff]
        %v765 = vld [vmem:[#allocation11 + $0x718] sm:$0xff]
        %v766 = vld [vmem:[#allocation11 + $0x720] sm:$0xff]
        %v767 = vld [vmem:[#allocation11 + $0x728] sm:$0xff]
        %v768 = vld [vmem:[#allocation11 + $0x730] sm:$0xff]
        %v769 = vld [vmem:[#allocation11 + $0x738] sm:$0xff]
        %v770 = vld [vmem:[#allocation11 + $0x740] sm:$0xff]
        %v771 = vld [vmem:[#allocation11 + $0x748] sm:$0xff]
        %v772 = vld [vmem:[#allocation11 + $0x750] sm:$0xff]
        %v773 = vld [vmem:[#allocation11 + $0x758] sm:$0xff]
        %v774 = vld [vmem:[#allocation11 + $0x760] sm:$0xff]
        %v775 = vld [vmem:[#allocation11 + $0x768] sm:$0xff]
        %v776 = vld [vmem:[#allocation11 + $0x770] sm:$0xff]
        %v777 = vld [vmem:[#allocation11 + $0x778] sm:$0xff]
        %v778 = vld [vmem:[#allocation11 + $0x780] sm:$0xff]
        %v779 = vld [vmem:[#allocation11 + $0x788] sm:$0xff]
        %v780 = vld [vmem:[#allocation11 + $0x790] sm:$0xff]
        %v781 = vld [vmem:[#allocation11 + $0x798] sm:$0xff]
        %v782 = vld [vmem:[#allocation11 + $0x7a0] sm:$0xff]
        %v783 = vld [vmem:[#allocation11 + $0x7a8] sm:$0xff]
        %v784 = vld [vmem:[#allocation11 + $0x7b0] sm:$0xff]
        %v785 = vld [vmem:[#allocation11 + $0x7b8] sm:$0xff]
        %v786 = vld [vmem:[#allocation11 + $0x7c0] sm:$0xff]
        %v787 = vld [vmem:[#allocation11 + $0x7c8] sm:$0xff]
        %v788 = vld [vmem:[#allocation11 + $0x7d0] sm:$0xff]
        %v789 = vld [vmem:[#allocation11 + $0x7d8] sm:$0xff]
        %v790 = vld [vmem:[#allocation11 + $0x7e0] sm:$0xff]
        %v791 = vld [vmem:[#allocation11 + $0x7e8] sm:$0xff]
        %v792 = vld [vmem:[#allocation11 + $0x7f0] sm:$0xff]
        %v793 = vld [vmem:[#allocation11 + $0x7f8] sm:$0xff]
        %v794 = vld [vmem:[%s7] sm:$0xf]
        %v796 = vlaneseq
        %v797 = vshrl.u32 %v796, 7
        %v798 = vsub.s32 0, %v797
        %v799 = vrot.slane %v794, %v798
        %v800 = vlaneseq
        %v801 = vshrl.u32 %v800, 7
        %v802 = vsub.s32 1, %v801
        %v803 = vrot.slane %v794, %v802
        %v804 = vlaneseq
        %v805 = vshrl.u32 %v804, 7
        %v806 = vsub.s32 2, %v805
        %v807 = vrot.slane %v794, %v806
        %v808 = vlaneseq
        %v809 = vshrl.u32 %v808, 7
        %v810 = vsub.s32 3, %v809
        %v811 = vrot.slane %v794, %v810
        %816 = vmatprep.subr.mxu0 %v599
        %817 = vmatpush1.msra.mxu0 %v598
        %818 = vmatprep.subr.mxu0 %v595
        %819 = vmatpush1.msra.mxu0 %v594
        %820 = vmatprep.subr.mxu0 %v591
        %821 = vmatpush1.msra.mxu0 %v590
        %822 = vmatprep.subr.mxu0 %v587
        %823 = vmatpush1.msra.mxu0 %v586
        %824 = vmatprep.subr.mxu0 %v583
        %825 = vmatpush1.msra.mxu0 %v582
        %826 = vmatprep.subr.mxu0 %v579
        %827 = vmatpush1.msra.mxu0 %v578
        %828 = vmatprep.subr.mxu0 %v575
        %829 = vmatpush1.msra.mxu0 %v574
        %830 = vmatprep.subr.mxu0 %v571
        %831 = vmatpush1.msra.mxu0 %v570
        %832 = vmatprep.subr.mxu0 %v567
        %833 = vmatpush1.msra.mxu0 %v566
        %834 = vmatprep.subr.mxu0 %v563
        %835 = vmatpush1.msra.mxu0 %v562
        %836 = vmatprep.subr.mxu0 %v559
        %837 = vmatpush1.msra.mxu0 %v558
        %838 = vmatprep.subr.mxu0 %v555
        %839 = vmatpush1.msra.mxu0 %v554
        %840 = vmatprep.subr.mxu0 %v551
        %841 = vmatpush1.msra.mxu0 %v550
        %842 = vmatprep.subr.mxu0 %v547
        %843 = vmatpush1.msra.mxu0 %v546
        %844 = vmatprep.subr.mxu0 %v543
        %845 = vmatpush1.msra.mxu0 %v542
        %846 = vmatprep.subr.mxu0 %v539
        %847 = vmatpush1.msra.mxu0 %v538
        %848 = vmatprep.subr.mxu0 %v663
        %849 = vmatpush2.msra.mxu0 %v662
        %850 = vmatprep.subr.mxu0 %v659
        %851 = vmatpush2.msra.mxu0 %v658
        %852 = vmatprep.subr.mxu0 %v655
        %853 = vmatpush2.msra.mxu0 %v654
        %854 = vmatprep.subr.mxu0 %v651
        %855 = vmatpush2.msra.mxu0 %v650
        %856 = vmatprep.subr.mxu0 %v647
        %857 = vmatpush2.msra.mxu0 %v646
        %858 = vmatprep.subr.mxu0 %v643
        %859 = vmatpush2.msra.mxu0 %v642
        %860 = vmatprep.subr.mxu0 %v639
        %861 = vmatpush2.msra.mxu0 %v638
        %862 = vmatprep.subr.mxu0 %v635
        %863 = vmatpush2.msra.mxu0 %v634
        %864 = vmatprep.subr.mxu0 %v631
        %865 = vmatpush2.msra.mxu0 %v630
        %866 = vmatprep.subr.mxu0 %v627
        %867 = vmatpush2.msra.mxu0 %v626
        %868 = vmatprep.subr.mxu0 %v623
        %869 = vmatpush2.msra.mxu0 %v622
        %870 = vmatprep.subr.mxu0 %v619
        %871 = vmatpush2.msra.mxu0 %v618
        %872 = vmatprep.subr.mxu0 %v615
        %873 = vmatpush2.msra.mxu0 %v614
        %874 = vmatprep.subr.mxu0 %v611
        %875 = vmatpush2.msra.mxu0 %v610
        %876 = vmatprep.subr.mxu0 %v607
        %877 = vmatpush2.msra.mxu0 %v606
        %878 = vmatprep.subr.mxu0 %v603
        %879 = vmatpush2.msra.mxu0 %v602
        %880 = vmatprep.mubr.f32.mxu0 %v535
        %881 = vmatmul.mubr.f32.gmra.mxu0 %v534
        %v882 = vpop.f32.mrf.mxu0
        %v883 = vadd.f32 %v799, %v882
        %v884 = vpop.f32.mrf.mxu0
        %v885 = vadd.f32 %v803, %v884
        %886 = vdwg.mxu0
        %887 = vmatprep.subr.mxu0 %v727
        %888 = vmatpush1.msra.mxu0 %v726
        %889 = vmatprep.subr.mxu0 %v723
        %890 = vmatpush1.msra.mxu0 %v722
        %891 = vmatprep.subr.mxu0 %v719
        %892 = vmatpush1.msra.mxu0 %v718
        %893 = vmatprep.subr.mxu0 %v715
        %894 = vmatpush1.msra.mxu0 %v714
        %895 = vmatprep.subr.mxu0 %v711
        %896 = vmatpush1.msra.mxu0 %v710
        %897 = vmatprep.subr.mxu0 %v707
        %898 = vmatpush1.msra.mxu0 %v706
        %899 = vmatprep.subr.mxu0 %v703
        %900 = vmatpush1.msra.mxu0 %v702
        %901 = vmatprep.subr.mxu0 %v699
        %902 = vmatpush1.msra.mxu0 %v698
        %903 = vmatprep.subr.mxu0 %v695
        %904 = vmatpush1.msra.mxu0 %v694
        %905 = vmatprep.subr.mxu0 %v691
        %906 = vmatpush1.msra.mxu0 %v690
        %907 = vmatprep.subr.mxu0 %v687
        %908 = vmatpush1.msra.mxu0 %v686
        %909 = vmatprep.subr.mxu0 %v683
        %910 = vmatpush1.msra.mxu0 %v682
        %911 = vmatprep.subr.mxu0 %v679
        %912 = vmatpush1.msra.mxu0 %v678
        %913 = vmatprep.subr.mxu0 %v675
        %914 = vmatpush1.msra.mxu0 %v674
        %915 = vmatprep.subr.mxu0 %v671
        %916 = vmatpush1.msra.mxu0 %v670
        %917 = vmatprep.subr.mxu0 %v667
        %918 = vmatpush1.msra.mxu0 %v666
        %919 = vmatprep.subr.mxu0 %v791
        %920 = vmatpush2.msra.mxu0 %v790
        %921 = vmatprep.subr.mxu0 %v787
        %922 = vmatpush2.msra.mxu0 %v786
        %923 = vmatprep.subr.mxu0 %v783
        %924 = vmatpush2.msra.mxu0 %v782
        %925 = vmatprep.subr.mxu0 %v779
        %926 = vmatpush2.msra.mxu0 %v778
        %927 = vmatprep.subr.mxu0 %v775
        %928 = vmatpush2.msra.mxu0 %v774
        %929 = vmatprep.subr.mxu0 %v771
        %930 = vmatpush2.msra.mxu0 %v770
        %931 = vmatprep.subr.mxu0 %v767
        %932 = vmatpush2.msra.mxu0 %v766
        %933 = vmatprep.subr.mxu0 %v763
        %934 = vmatpush2.msra.mxu0 %v762
        %935 = vmatprep.subr.mxu0 %v759
        %936 = vmatpush2.msra.mxu0 %v758
        %937 = vmatprep.subr.mxu0 %v755
        %938 = vmatpush2.msra.mxu0 %v754
        %939 = vmatprep.subr.mxu0 %v751
        %940 = vmatpush2.msra.mxu0 %v750
        %941 = vmatprep.subr.mxu0 %v747
        %942 = vmatpush2.msra.mxu0 %v746
        %943 = vmatprep.subr.mxu0 %v743
        %944 = vmatpush2.msra.mxu0 %v742
        %945 = vmatprep.subr.mxu0 %v739
        %946 = vmatpush2.msra.mxu0 %v738
        %947 = vmatprep.subr.mxu0 %v735
        %948 = vmatpush2.msra.mxu0 %v734
        %949 = vmatprep.subr.mxu0 %v731
        %950 = vmatpush2.msra.mxu0 %v730
        %951 = vmatprep.mubr.f32.mxu0 %v537
        %952 = vmatmul.mubr.f32.gmra.mxu0 %v536
        %v953 = vpop.f32.mrf.mxu0
        %v954 = vadd.f32 %v883, %v953
        %v955 = vpop.f32.mrf.mxu0
        %v956 = vadd.f32 %v885, %v955
        %957 = vdwg.mxu0
        %958 = vmatprep.subr.mxu0 %v601
        %959 = vmatpush1.msra.mxu0 %v600
        %960 = vmatprep.subr.mxu0 %v597
        %961 = vmatpush1.msra.mxu0 %v596
        %962 = vmatprep.subr.mxu0 %v593
        %963 = vmatpush1.msra.mxu0 %v592
        %964 = vmatprep.subr.mxu0 %v589
        %965 = vmatpush1.msra.mxu0 %v588
        %966 = vmatprep.subr.mxu0 %v585
        %967 = vmatpush1.msra.mxu0 %v584
        %968 = vmatprep.subr.mxu0 %v581
        %969 = vmatpush1.msra.mxu0 %v580
        %970 = vmatprep.subr.mxu0 %v577
        %971 = vmatpush1.msra.mxu0 %v576
        %972 = vmatprep.subr.mxu0 %v573
        %973 = vmatpush1.msra.mxu0 %v572
        %974 = vmatprep.subr.mxu0 %v569
        %975 = vmatpush1.msra.mxu0 %v568
        %976 = vmatprep.subr.mxu0 %v565
        %977 = vmatpush1.msra.mxu0 %v564
        %978 = vmatprep.subr.mxu0 %v561
        %979 = vmatpush1.msra.mxu0 %v560
        %980 = vmatprep.subr.mxu0 %v557
        %981 = vmatpush1.msra.mxu0 %v556
        %982 = vmatprep.subr.mxu0 %v553
        %983 = vmatpush1.msra.mxu0 %v552
        %984 = vmatprep.subr.mxu0 %v549
        %985 = vmatpush1.msra.mxu0 %v548
        %986 = vmatprep.subr.mxu0 %v545
        %987 = vmatpush1.msra.mxu0 %v544
        %988 = vmatprep.subr.mxu0 %v541
        %989 = vmatpush1.msra.mxu0 %v540
        %990 = vmatprep.subr.mxu0 %v665
        %991 = vmatpush2.msra.mxu0 %v664
        %992 = vmatprep.subr.mxu0 %v661
        %993 = vmatpush2.msra.mxu0 %v660
        %994 = vmatprep.subr.mxu0 %v657
        %995 = vmatpush2.msra.mxu0 %v656
        %996 = vmatprep.subr.mxu0 %v653
        %997 = vmatpush2.msra.mxu0 %v652
        %998 = vmatprep.subr.mxu0 %v649
        %999 = vmatpush2.msra.mxu0 %v648
        %1000 = vmatprep.subr.mxu0 %v645
        %1001 = vmatpush2.msra.mxu0 %v644
        %1002 = vmatprep.subr.mxu0 %v641
        %1003 = vmatpush2.msra.mxu0 %v640
        %1004 = vmatprep.subr.mxu0 %v637
        %1005 = vmatpush2.msra.mxu0 %v636
        %1006 = vmatprep.subr.mxu0 %v633
        %1007 = vmatpush2.msra.mxu0 %v632
        %1008 = vmatprep.subr.mxu0 %v629
        %1009 = vmatpush2.msra.mxu0 %v628
        %1010 = vmatprep.subr.mxu0 %v625
        %1011 = vmatpush2.msra.mxu0 %v624
        %1012 = vmatprep.subr.mxu0 %v621
        %1013 = vmatpush2.msra.mxu0 %v620
        %1014 = vmatprep.subr.mxu0 %v617
        %1015 = vmatpush2.msra.mxu0 %v616
        %1016 = vmatprep.subr.mxu0 %v613
        %1017 = vmatpush2.msra.mxu0 %v612
        %1018 = vmatprep.subr.mxu0 %v609
        %1019 = vmatpush2.msra.mxu0 %v608
        %1020 = vmatprep.subr.mxu0 %v605
        %1021 = vmatpush2.msra.mxu0 %v604
        %1022 = vmatprep.mubr.f32.mxu0 %v535
        %1023 = vmatmul.mubr.f32.gmra.mxu0 %v534
        %v1024 = vpop.f32.mrf.mxu0
        %v1025 = vadd.f32 %v807, %v1024
        %v1026 = vpop.f32.mrf.mxu0
        %v1027 = vadd.f32 %v811, %v1026
        %1028 = vdwg.mxu0
        %1029 = vmatprep.subr.mxu0 %v729
        %1030 = vmatpush1.msra.mxu0 %v728
        %1031 = vmatprep.subr.mxu0 %v725
        %1032 = vmatpush1.msra.mxu0 %v724
        %1033 = vmatprep.subr.mxu0 %v721
        %1034 = vmatpush1.msra.mxu0 %v720
        %1035 = vmatprep.subr.mxu0 %v717
        %1036 = vmatpush1.msra.mxu0 %v716
        %1037 = vmatprep.subr.mxu0 %v713
        %1038 = vmatpush1.msra.mxu0 %v712
        %1039 = vmatprep.subr.mxu0 %v709
        %1040 = vmatpush1.msra.mxu0 %v708
        %1041 = vmatprep.subr.mxu0 %v705
        %1042 = vmatpush1.msra.mxu0 %v704
        %1043 = vmatprep.subr.mxu0 %v701
        %1044 = vmatpush1.msra.mxu0 %v700
        %1045 = vmatprep.subr.mxu0 %v697
        %1046 = vmatpush1.msra.mxu0 %v696
        %1047 = vmatprep.subr.mxu0 %v693
        %1048 = vmatpush1.msra.mxu0 %v692
        %1049 = vmatprep.subr.mxu0 %v689
        %1050 = vmatpush1.msra.mxu0 %v688
        %1051 = vmatprep.subr.mxu0 %v685
        %1052 = vmatpush1.msra.mxu0 %v684
        %1053 = vmatprep.subr.mxu0 %v681
        %1054 = vmatpush1.msra.mxu0 %v680
        %1055 = vmatprep.subr.mxu0 %v677
        %1056 = vmatpush1.msra.mxu0 %v676
        %1057 = vmatprep.subr.mxu0 %v673
        %1058 = vmatpush1.msra.mxu0 %v672
        %1059 = vmatprep.subr.mxu0 %v669
        %1060 = vmatpush1.msra.mxu0 %v668
        %1061 = vmatprep.subr.mxu0 %v793
        %1062 = vmatpush2.msra.mxu0 %v792
        %1063 = vmatprep.subr.mxu0 %v789
        %1064 = vmatpush2.msra.mxu0 %v788
        %1065 = vmatprep.subr.mxu0 %v785
        %1066 = vmatpush2.msra.mxu0 %v784
        %1067 = vmatprep.subr.mxu0 %v781
        %1068 = vmatpush2.msra.mxu0 %v780
        %1069 = vmatprep.subr.mxu0 %v777
        %1070 = vmatpush2.msra.mxu0 %v776
        %1071 = vmatprep.subr.mxu0 %v773
        %1072 = vmatpush2.msra.mxu0 %v772
        %1073 = vmatprep.subr.mxu0 %v769
        %1074 = vmatpush2.msra.mxu0 %v768
        %1075 = vmatprep.subr.mxu0 %v765
        %1076 = vmatpush2.msra.mxu0 %v764
        %1077 = vmatprep.subr.mxu0 %v761
        %1078 = vmatpush2.msra.mxu0 %v760
        %1079 = vmatprep.subr.mxu0 %v757
        %1080 = vmatpush2.msra.mxu0 %v756
        %1081 = vmatprep.subr.mxu0 %v753
        %1082 = vmatpush2.msra.mxu0 %v752
        %1083 = vmatprep.subr.mxu0 %v749
        %1084 = vmatpush2.msra.mxu0 %v748
        %1085 = vmatprep.subr.mxu0 %v745
        %1086 = vmatpush2.msra.mxu0 %v744
        %1087 = vmatprep.subr.mxu0 %v741
        %1088 = vmatpush2.msra.mxu0 %v740
        %1089 = vmatprep.subr.mxu0 %v737
        %1090 = vmatpush2.msra.mxu0 %v736
        %1091 = vmatprep.subr.mxu0 %v733
        %1092 = vmatpush2.msra.mxu0 %v732
        %1093 = vmatprep.mubr.f32.mxu0 %v537
        %1094 = vmatmul.mubr.f32.gmra.mxu0 %v536
        %v1095 = vpop.f32.mrf.mxu0
        %v1096 = vadd.f32 %v1025, %v1095
        %v1097 = vpop.f32.mrf.mxu0
        %v1098 = vadd.f32 %v1027, %v1097
        %1099 = vdwg.mxu0
        %v1100 = vmul.f32 %v954, 0.125
        %v1101 = vmul.f32 %v956, 0.125
        %v1102 = vmul.f32 %v1096, 0.125
        %v1103 = vmul.f32 %v1098, 0.125
        %1104 = vst [vmem:[#allocation2] sm:$0xff] %v1100
        %1105 = vst [vmem:[#allocation2 + $0x8] sm:$0xff] %v1101
        %1106 = vst [vmem:[#allocation2 + $0x10] sm:$0xff] %v1102
        %1107 = vst [vmem:[#allocation2 + $0x18] sm:$0xff] %v1103
        %v1108 = vld [vmem:[%s460] sm:$0xff]
        %v1109 = vld [vmem:[%s460 + $0x8] sm:$0xff]
        %v1110 = vld [vmem:[%s460 + $0x10] sm:$0xff]
        %v1111 = vld [vmem:[%s460 + $0x18] sm:$0xff]
        %v1112 = vld [vmem:[#allocation13] sm:$0xff]
        %v1113 = vld [vmem:[#allocation13 + $0x8] sm:$0xff]
        %v1114 = vld [vmem:[#allocation13 + $0x10] sm:$0xff]
        %v1115 = vld [vmem:[#allocation13 + $0x18] sm:$0xff]
        %v1116 = vld [vmem:[#allocation13 + $0x20] sm:$0xff]
        %v1117 = vld [vmem:[#allocation13 + $0x28] sm:$0xff]
        %v1118 = vld [vmem:[#allocation13 + $0x30] sm:$0xff]
        %v1119 = vld [vmem:[#allocation13 + $0x38] sm:$0xff]
        %v1120 = vld [vmem:[#allocation13 + $0x40] sm:$0xff]
        %v1121 = vld [vmem:[#allocation13 + $0x48] sm:$0xff]
        %v1122 = vld [vmem:[#allocation13 + $0x50] sm:$0xff]
        %v1123 = vld [vmem:[#allocation13 + $0x58] sm:$0xff]
        %v1124 = vld [vmem:[#allocation13 + $0x60] sm:$0xff]
        %v1125 = vld [vmem:[#allocation13 + $0x68] sm:$0xff]
        %v1126 = vld [vmem:[#allocation13 + $0x70] sm:$0xff]
        %v1127 = vld [vmem:[#allocation13 + $0x78] sm:$0xff]
        %v1128 = vld [vmem:[#allocation13 + $0x80] sm:$0xff]
        %v1129 = vld [vmem:[#allocation13 + $0x88] sm:$0xff]
        %v1130 = vld [vmem:[#allocation13 + $0x90] sm:$0xff]
        %v1131 = vld [vmem:[#allocation13 + $0x98] sm:$0xff]
        %v1132 = vld [vmem:[#allocation13 + $0xa0] sm:$0xff]
        %v1133 = vld [vmem:[#allocation13 + $0xa8] sm:$0xff]
        %v1134 = vld [vmem:[#allocation13 + $0xb0] sm:$0xff]
        %v1135 = vld [vmem:[#allocation13 + $0xb8] sm:$0xff]
        %v1136 = vld [vmem:[#allocation13 + $0xc0] sm:$0xff]
        %v1137 = vld [vmem:[#allocation13 + $0xc8] sm:$0xff]
        %v1138 = vld [vmem:[#allocation13 + $0xd0] sm:$0xff]
        %v1139 = vld [vmem:[#allocation13 + $0xd8] sm:$0xff]
        %v1140 = vld [vmem:[#allocation13 + $0xe0] sm:$0xff]
        %v1141 = vld [vmem:[#allocation13 + $0xe8] sm:$0xff]
        %v1142 = vld [vmem:[#allocation13 + $0xf0] sm:$0xff]
        %v1143 = vld [vmem:[#allocation13 + $0xf8] sm:$0xff]
        %v1144 = vld [vmem:[#allocation13 + $0x100] sm:$0xff]
        %v1145 = vld [vmem:[#allocation13 + $0x108] sm:$0xff]
        %v1146 = vld [vmem:[#allocation13 + $0x110] sm:$0xff]
        %v1147 = vld [vmem:[#allocation13 + $0x118] sm:$0xff]
        %v1148 = vld [vmem:[#allocation13 + $0x120] sm:$0xff]
        %v1149 = vld [vmem:[#allocation13 + $0x128] sm:$0xff]
        %v1150 = vld [vmem:[#allocation13 + $0x130] sm:$0xff]
        %v1151 = vld [vmem:[#allocation13 + $0x138] sm:$0xff]
        %v1152 = vld [vmem:[#allocation13 + $0x140] sm:$0xff]
        %v1153 = vld [vmem:[#allocation13 + $0x148] sm:$0xff]
        %v1154 = vld [vmem:[#allocation13 + $0x150] sm:$0xff]
        %v1155 = vld [vmem:[#allocation13 + $0x158] sm:$0xff]
        %v1156 = vld [vmem:[#allocation13 + $0x160] sm:$0xff]
        %v1157 = vld [vmem:[#allocation13 + $0x168] sm:$0xff]
        %v1158 = vld [vmem:[#allocation13 + $0x170] sm:$0xff]
        %v1159 = vld [vmem:[#allocation13 + $0x178] sm:$0xff]
        %v1160 = vld [vmem:[#allocation13 + $0x180] sm:$0xff]
        %v1161 = vld [vmem:[#allocation13 + $0x188] sm:$0xff]
        %v1162 = vld [vmem:[#allocation13 + $0x190] sm:$0xff]
        %v1163 = vld [vmem:[#allocation13 + $0x198] sm:$0xff]
        %v1164 = vld [vmem:[#allocation13 + $0x1a0] sm:$0xff]
        %v1165 = vld [vmem:[#allocation13 + $0x1a8] sm:$0xff]
        %v1166 = vld [vmem:[#allocation13 + $0x1b0] sm:$0xff]
        %v1167 = vld [vmem:[#allocation13 + $0x1b8] sm:$0xff]
        %v1168 = vld [vmem:[#allocation13 + $0x1c0] sm:$0xff]
        %v1169 = vld [vmem:[#allocation13 + $0x1c8] sm:$0xff]
        %v1170 = vld [vmem:[#allocation13 + $0x1d0] sm:$0xff]
        %v1171 = vld [vmem:[#allocation13 + $0x1d8] sm:$0xff]
        %v1172 = vld [vmem:[#allocation13 + $0x1e0] sm:$0xff]
        %v1173 = vld [vmem:[#allocation13 + $0x1e8] sm:$0xff]
        %v1174 = vld [vmem:[#allocation13 + $0x1f0] sm:$0xff]
        %v1175 = vld [vmem:[#allocation13 + $0x1f8] sm:$0xff]
        %v1176 = vld [vmem:[#allocation13 + $0x200] sm:$0xff]
        %v1177 = vld [vmem:[#allocation13 + $0x208] sm:$0xff]
        %v1178 = vld [vmem:[#allocation13 + $0x210] sm:$0xff]
        %v1179 = vld [vmem:[#allocation13 + $0x218] sm:$0xff]
        %v1180 = vld [vmem:[#allocation13 + $0x220] sm:$0xff]
        %v1181 = vld [vmem:[#allocation13 + $0x228] sm:$0xff]
        %v1182 = vld [vmem:[#allocation13 + $0x230] sm:$0xff]
        %v1183 = vld [vmem:[#allocation13 + $0x238] sm:$0xff]
        %v1184 = vld [vmem:[#allocation13 + $0x240] sm:$0xff]
        %v1185 = vld [vmem:[#allocation13 + $0x248] sm:$0xff]
        %v1186 = vld [vmem:[#allocation13 + $0x250] sm:$0xff]
        %v1187 = vld [vmem:[#allocation13 + $0x258] sm:$0xff]
        %v1188 = vld [vmem:[#allocation13 + $0x260] sm:$0xff]
        %v1189 = vld [vmem:[#allocation13 + $0x268] sm:$0xff]
        %v1190 = vld [vmem:[#allocation13 + $0x270] sm:$0xff]
        %v1191 = vld [vmem:[#allocation13 + $0x278] sm:$0xff]
        %v1192 = vld [vmem:[#allocation13 + $0x280] sm:$0xff]
        %v1193 = vld [vmem:[#allocation13 + $0x288] sm:$0xff]
        %v1194 = vld [vmem:[#allocation13 + $0x290] sm:$0xff]
        %v1195 = vld [vmem:[#allocation13 + $0x298] sm:$0xff]
        %v1196 = vld [vmem:[#allocation13 + $0x2a0] sm:$0xff]
        %v1197 = vld [vmem:[#allocation13 + $0x2a8] sm:$0xff]
        %v1198 = vld [vmem:[#allocation13 + $0x2b0] sm:$0xff]
        %v1199 = vld [vmem:[#allocation13 + $0x2b8] sm:$0xff]
        %v1200 = vld [vmem:[#allocation13 + $0x2c0] sm:$0xff]
        %v1201 = vld [vmem:[#allocation13 + $0x2c8] sm:$0xff]
        %v1202 = vld [vmem:[#allocation13 + $0x2d0] sm:$0xff]
        %v1203 = vld [vmem:[#allocation13 + $0x2d8] sm:$0xff]
        %v1204 = vld [vmem:[#allocation13 + $0x2e0] sm:$0xff]
        %v1205 = vld [vmem:[#allocation13 + $0x2e8] sm:$0xff]
        %v1206 = vld [vmem:[#allocation13 + $0x2f0] sm:$0xff]
        %v1207 = vld [vmem:[#allocation13 + $0x2f8] sm:$0xff]
        %v1208 = vld [vmem:[#allocation13 + $0x300] sm:$0xff]
        %v1209 = vld [vmem:[#allocation13 + $0x308] sm:$0xff]
        %v1210 = vld [vmem:[#allocation13 + $0x310] sm:$0xff]
        %v1211 = vld [vmem:[#allocation13 + $0x318] sm:$0xff]
        %v1212 = vld [vmem:[#allocation13 + $0x320] sm:$0xff]
        %v1213 = vld [vmem:[#allocation13 + $0x328] sm:$0xff]
        %v1214 = vld [vmem:[#allocation13 + $0x330] sm:$0xff]
        %v1215 = vld [vmem:[#allocation13 + $0x338] sm:$0xff]
        %v1216 = vld [vmem:[#allocation13 + $0x340] sm:$0xff]
        %v1217 = vld [vmem:[#allocation13 + $0x348] sm:$0xff]
        %v1218 = vld [vmem:[#allocation13 + $0x350] sm:$0xff]
        %v1219 = vld [vmem:[#allocation13 + $0x358] sm:$0xff]
        %v1220 = vld [vmem:[#allocation13 + $0x360] sm:$0xff]
        %v1221 = vld [vmem:[#allocation13 + $0x368] sm:$0xff]
        %v1222 = vld [vmem:[#allocation13 + $0x370] sm:$0xff]
        %v1223 = vld [vmem:[#allocation13 + $0x378] sm:$0xff]
        %v1224 = vld [vmem:[#allocation13 + $0x380] sm:$0xff]
        %v1225 = vld [vmem:[#allocation13 + $0x388] sm:$0xff]
        %v1226 = vld [vmem:[#allocation13 + $0x390] sm:$0xff]
        %v1227 = vld [vmem:[#allocation13 + $0x398] sm:$0xff]
        %v1228 = vld [vmem:[#allocation13 + $0x3a0] sm:$0xff]
        %v1229 = vld [vmem:[#allocation13 + $0x3a8] sm:$0xff]
        %v1230 = vld [vmem:[#allocation13 + $0x3b0] sm:$0xff]
        %v1231 = vld [vmem:[#allocation13 + $0x3b8] sm:$0xff]
        %v1232 = vld [vmem:[#allocation13 + $0x3c0] sm:$0xff]
        %v1233 = vld [vmem:[#allocation13 + $0x3c8] sm:$0xff]
        %v1234 = vld [vmem:[#allocation13 + $0x3d0] sm:$0xff]
        %v1235 = vld [vmem:[#allocation13 + $0x3d8] sm:$0xff]
        %v1236 = vld [vmem:[#allocation13 + $0x3e0] sm:$0xff]
        %v1237 = vld [vmem:[#allocation13 + $0x3e8] sm:$0xff]
        %v1238 = vld [vmem:[#allocation13 + $0x3f0] sm:$0xff]
        %v1239 = vld [vmem:[#allocation13 + $0x3f8] sm:$0xff]
        %v1240 = vld [vmem:[#allocation13 + $0x400] sm:$0xff]
        %v1241 = vld [vmem:[#allocation13 + $0x408] sm:$0xff]
        %v1242 = vld [vmem:[#allocation13 + $0x410] sm:$0xff]
        %v1243 = vld [vmem:[#allocation13 + $0x418] sm:$0xff]
        %v1244 = vld [vmem:[#allocation13 + $0x420] sm:$0xff]
        %v1245 = vld [vmem:[#allocation13 + $0x428] sm:$0xff]
        %v1246 = vld [vmem:[#allocation13 + $0x430] sm:$0xff]
        %v1247 = vld [vmem:[#allocation13 + $0x438] sm:$0xff]
        %v1248 = vld [vmem:[#allocation13 + $0x440] sm:$0xff]
        %v1249 = vld [vmem:[#allocation13 + $0x448] sm:$0xff]
        %v1250 = vld [vmem:[#allocation13 + $0x450] sm:$0xff]
        %v1251 = vld [vmem:[#allocation13 + $0x458] sm:$0xff]
        %v1252 = vld [vmem:[#allocation13 + $0x460] sm:$0xff]
        %v1253 = vld [vmem:[#allocation13 + $0x468] sm:$0xff]
        %v1254 = vld [vmem:[#allocation13 + $0x470] sm:$0xff]
        %v1255 = vld [vmem:[#allocation13 + $0x478] sm:$0xff]
        %v1256 = vld [vmem:[#allocation13 + $0x480] sm:$0xff]
        %v1257 = vld [vmem:[#allocation13 + $0x488] sm:$0xff]
        %v1258 = vld [vmem:[#allocation13 + $0x490] sm:$0xff]
        %v1259 = vld [vmem:[#allocation13 + $0x498] sm:$0xff]
        %v1260 = vld [vmem:[#allocation13 + $0x4a0] sm:$0xff]
        %v1261 = vld [vmem:[#allocation13 + $0x4a8] sm:$0xff]
        %v1262 = vld [vmem:[#allocation13 + $0x4b0] sm:$0xff]
        %v1263 = vld [vmem:[#allocation13 + $0x4b8] sm:$0xff]
        %v1264 = vld [vmem:[#allocation13 + $0x4c0] sm:$0xff]
        %v1265 = vld [vmem:[#allocation13 + $0x4c8] sm:$0xff]
        %v1266 = vld [vmem:[#allocation13 + $0x4d0] sm:$0xff]
        %v1267 = vld [vmem:[#allocation13 + $0x4d8] sm:$0xff]
        %v1268 = vld [vmem:[#allocation13 + $0x4e0] sm:$0xff]
        %v1269 = vld [vmem:[#allocation13 + $0x4e8] sm:$0xff]
        %v1270 = vld [vmem:[#allocation13 + $0x4f0] sm:$0xff]
        %v1271 = vld [vmem:[#allocation13 + $0x4f8] sm:$0xff]
        %v1272 = vld [vmem:[#allocation13 + $0x500] sm:$0xff]
        %v1273 = vld [vmem:[#allocation13 + $0x508] sm:$0xff]
        %v1274 = vld [vmem:[#allocation13 + $0x510] sm:$0xff]
        %v1275 = vld [vmem:[#allocation13 + $0x518] sm:$0xff]
        %v1276 = vld [vmem:[#allocation13 + $0x520] sm:$0xff]
        %v1277 = vld [vmem:[#allocation13 + $0x528] sm:$0xff]
        %v1278 = vld [vmem:[#allocation13 + $0x530] sm:$0xff]
        %v1279 = vld [vmem:[#allocation13 + $0x538] sm:$0xff]
        %v1280 = vld [vmem:[#allocation13 + $0x540] sm:$0xff]
        %v1281 = vld [vmem:[#allocation13 + $0x548] sm:$0xff]
        %v1282 = vld [vmem:[#allocation13 + $0x550] sm:$0xff]
        %v1283 = vld [vmem:[#allocation13 + $0x558] sm:$0xff]
        %v1284 = vld [vmem:[#allocation13 + $0x560] sm:$0xff]
        %v1285 = vld [vmem:[#allocation13 + $0x568] sm:$0xff]
        %v1286 = vld [vmem:[#allocation13 + $0x570] sm:$0xff]
        %v1287 = vld [vmem:[#allocation13 + $0x578] sm:$0xff]
        %v1288 = vld [vmem:[#allocation13 + $0x580] sm:$0xff]
        %v1289 = vld [vmem:[#allocation13 + $0x588] sm:$0xff]
        %v1290 = vld [vmem:[#allocation13 + $0x590] sm:$0xff]
        %v1291 = vld [vmem:[#allocation13 + $0x598] sm:$0xff]
        %v1292 = vld [vmem:[#allocation13 + $0x5a0] sm:$0xff]
        %v1293 = vld [vmem:[#allocation13 + $0x5a8] sm:$0xff]
        %v1294 = vld [vmem:[#allocation13 + $0x5b0] sm:$0xff]
        %v1295 = vld [vmem:[#allocation13 + $0x5b8] sm:$0xff]
        %v1296 = vld [vmem:[#allocation13 + $0x5c0] sm:$0xff]
        %v1297 = vld [vmem:[#allocation13 + $0x5c8] sm:$0xff]
        %v1298 = vld [vmem:[#allocation13 + $0x5d0] sm:$0xff]
        %v1299 = vld [vmem:[#allocation13 + $0x5d8] sm:$0xff]
        %v1300 = vld [vmem:[#allocation13 + $0x5e0] sm:$0xff]
        %v1301 = vld [vmem:[#allocation13 + $0x5e8] sm:$0xff]
        %v1302 = vld [vmem:[#allocation13 + $0x5f0] sm:$0xff]
        %v1303 = vld [vmem:[#allocation13 + $0x5f8] sm:$0xff]
        %v1304 = vld [vmem:[#allocation13 + $0x600] sm:$0xff]
        %v1305 = vld [vmem:[#allocation13 + $0x608] sm:$0xff]
        %v1306 = vld [vmem:[#allocation13 + $0x610] sm:$0xff]
        %v1307 = vld [vmem:[#allocation13 + $0x618] sm:$0xff]
        %v1308 = vld [vmem:[#allocation13 + $0x620] sm:$0xff]
        %v1309 = vld [vmem:[#allocation13 + $0x628] sm:$0xff]
        %v1310 = vld [vmem:[#allocation13 + $0x630] sm:$0xff]
        %v1311 = vld [vmem:[#allocation13 + $0x638] sm:$0xff]
        %v1312 = vld [vmem:[#allocation13 + $0x640] sm:$0xff]
        %v1313 = vld [vmem:[#allocation13 + $0x648] sm:$0xff]
        %v1314 = vld [vmem:[#allocation13 + $0x650] sm:$0xff]
        %v1315 = vld [vmem:[#allocation13 + $0x658] sm:$0xff]
        %v1316 = vld [vmem:[#allocation13 + $0x660] sm:$0xff]
        %v1317 = vld [vmem:[#allocation13 + $0x668] sm:$0xff]
        %v1318 = vld [vmem:[#allocation13 + $0x670] sm:$0xff]
        %v1319 = vld [vmem:[#allocation13 + $0x678] sm:$0xff]
        %v1320 = vld [vmem:[#allocation13 + $0x680] sm:$0xff]
        %v1321 = vld [vmem:[#allocation13 + $0x688] sm:$0xff]
        %v1322 = vld [vmem:[#allocation13 + $0x690] sm:$0xff]
        %v1323 = vld [vmem:[#allocation13 + $0x698] sm:$0xff]
        %v1324 = vld [vmem:[#allocation13 + $0x6a0] sm:$0xff]
        %v1325 = vld [vmem:[#allocation13 + $0x6a8] sm:$0xff]
        %v1326 = vld [vmem:[#allocation13 + $0x6b0] sm:$0xff]
        %v1327 = vld [vmem:[#allocation13 + $0x6b8] sm:$0xff]
        %v1328 = vld [vmem:[#allocation13 + $0x6c0] sm:$0xff]
        %v1329 = vld [vmem:[#allocation13 + $0x6c8] sm:$0xff]
        %v1330 = vld [vmem:[#allocation13 + $0x6d0] sm:$0xff]
        %v1331 = vld [vmem:[#allocation13 + $0x6d8] sm:$0xff]
        %v1332 = vld [vmem:[#allocation13 + $0x6e0] sm:$0xff]
        %v1333 = vld [vmem:[#allocation13 + $0x6e8] sm:$0xff]
        %v1334 = vld [vmem:[#allocation13 + $0x6f0] sm:$0xff]
        %v1335 = vld [vmem:[#allocation13 + $0x6f8] sm:$0xff]
        %v1336 = vld [vmem:[#allocation13 + $0x700] sm:$0xff]
        %v1337 = vld [vmem:[#allocation13 + $0x708] sm:$0xff]
        %v1338 = vld [vmem:[#allocation13 + $0x710] sm:$0xff]
        %v1339 = vld [vmem:[#allocation13 + $0x718] sm:$0xff]
        %v1340 = vld [vmem:[#allocation13 + $0x720] sm:$0xff]
        %v1341 = vld [vmem:[#allocation13 + $0x728] sm:$0xff]
        %v1342 = vld [vmem:[#allocation13 + $0x730] sm:$0xff]
        %v1343 = vld [vmem:[#allocation13 + $0x738] sm:$0xff]
        %v1344 = vld [vmem:[#allocation13 + $0x740] sm:$0xff]
        %v1345 = vld [vmem:[#allocation13 + $0x748] sm:$0xff]
        %v1346 = vld [vmem:[#allocation13 + $0x750] sm:$0xff]
        %v1347 = vld [vmem:[#allocation13 + $0x758] sm:$0xff]
        %v1348 = vld [vmem:[#allocation13 + $0x760] sm:$0xff]
        %v1349 = vld [vmem:[#allocation13 + $0x768] sm:$0xff]
        %v1350 = vld [vmem:[#allocation13 + $0x770] sm:$0xff]
        %v1351 = vld [vmem:[#allocation13 + $0x778] sm:$0xff]
        %v1352 = vld [vmem:[#allocation13 + $0x780] sm:$0xff]
        %v1353 = vld [vmem:[#allocation13 + $0x788] sm:$0xff]
        %v1354 = vld [vmem:[#allocation13 + $0x790] sm:$0xff]
        %v1355 = vld [vmem:[#allocation13 + $0x798] sm:$0xff]
        %v1356 = vld [vmem:[#allocation13 + $0x7a0] sm:$0xff]
        %v1357 = vld [vmem:[#allocation13 + $0x7a8] sm:$0xff]
        %v1358 = vld [vmem:[#allocation13 + $0x7b0] sm:$0xff]
        %v1359 = vld [vmem:[#allocation13 + $0x7b8] sm:$0xff]
        %v1360 = vld [vmem:[#allocation13 + $0x7c0] sm:$0xff]
        %v1361 = vld [vmem:[#allocation13 + $0x7c8] sm:$0xff]
        %v1362 = vld [vmem:[#allocation13 + $0x7d0] sm:$0xff]
        %v1363 = vld [vmem:[#allocation13 + $0x7d8] sm:$0xff]
        %v1364 = vld [vmem:[#allocation13 + $0x7e0] sm:$0xff]
        %v1365 = vld [vmem:[#allocation13 + $0x7e8] sm:$0xff]
        %v1366 = vld [vmem:[#allocation13 + $0x7f0] sm:$0xff]
        %v1367 = vld [vmem:[#allocation13 + $0x7f8] sm:$0xff]
        %v1368 = vld [vmem:[%s8] sm:$0xf]
        %v1370 = vlaneseq
        %v1371 = vshrl.u32 %v1370, 7
        %v1372 = vsub.s32 0, %v1371
        %v1373 = vrot.slane %v1368, %v1372
        %v1374 = vlaneseq
        %v1375 = vshrl.u32 %v1374, 7
        %v1376 = vsub.s32 1, %v1375
        %v1377 = vrot.slane %v1368, %v1376
        %v1378 = vlaneseq
        %v1379 = vshrl.u32 %v1378, 7
        %v1380 = vsub.s32 2, %v1379
        %v1381 = vrot.slane %v1368, %v1380
        %v1382 = vlaneseq
        %v1383 = vshrl.u32 %v1382, 7
        %v1384 = vsub.s32 3, %v1383
        %v1385 = vrot.slane %v1368, %v1384
        %1390 = vmatprep.subr.mxu0 %v1173
        %1391 = vmatpush1.msra.mxu0 %v1172
        %1392 = vmatprep.subr.mxu0 %v1169
        %1393 = vmatpush1.msra.mxu0 %v1168
        %1394 = vmatprep.subr.mxu0 %v1165
        %1395 = vmatpush1.msra.mxu0 %v1164
        %1396 = vmatprep.subr.mxu0 %v1161
        %1397 = vmatpush1.msra.mxu0 %v1160
        %1398 = vmatprep.subr.mxu0 %v1157
        %1399 = vmatpush1.msra.mxu0 %v1156
        %1400 = vmatprep.subr.mxu0 %v1153
        %1401 = vmatpush1.msra.mxu0 %v1152
        %1402 = vmatprep.subr.mxu0 %v1149
        %1403 = vmatpush1.msra.mxu0 %v1148
        %1404 = vmatprep.subr.mxu0 %v1145
        %1405 = vmatpush1.msra.mxu0 %v1144
        %1406 = vmatprep.subr.mxu0 %v1141
        %1407 = vmatpush1.msra.mxu0 %v1140
        %1408 = vmatprep.subr.mxu0 %v1137
        %1409 = vmatpush1.msra.mxu0 %v1136
        %1410 = vmatprep.subr.mxu0 %v1133
        %1411 = vmatpush1.msra.mxu0 %v1132
        %1412 = vmatprep.subr.mxu0 %v1129
        %1413 = vmatpush1.msra.mxu0 %v1128
        %1414 = vmatprep.subr.mxu0 %v1125
        %1415 = vmatpush1.msra.mxu0 %v1124
        %1416 = vmatprep.subr.mxu0 %v1121
        %1417 = vmatpush1.msra.mxu0 %v1120
        %1418 = vmatprep.subr.mxu0 %v1117
        %1419 = vmatpush1.msra.mxu0 %v1116
        %1420 = vmatprep.subr.mxu0 %v1113
        %1421 = vmatpush1.msra.mxu0 %v1112
        %1422 = vmatprep.subr.mxu0 %v1237
        %1423 = vmatpush2.msra.mxu0 %v1236
        %1424 = vmatprep.subr.mxu0 %v1233
        %1425 = vmatpush2.msra.mxu0 %v1232
        %1426 = vmatprep.subr.mxu0 %v1229
        %1427 = vmatpush2.msra.mxu0 %v1228
        %1428 = vmatprep.subr.mxu0 %v1225
        %1429 = vmatpush2.msra.mxu0 %v1224
        %1430 = vmatprep.subr.mxu0 %v1221
        %1431 = vmatpush2.msra.mxu0 %v1220
        %1432 = vmatprep.subr.mxu0 %v1217
        %1433 = vmatpush2.msra.mxu0 %v1216
        %1434 = vmatprep.subr.mxu0 %v1213
        %1435 = vmatpush2.msra.mxu0 %v1212
        %1436 = vmatprep.subr.mxu0 %v1209
        %1437 = vmatpush2.msra.mxu0 %v1208
        %1438 = vmatprep.subr.mxu0 %v1205
        %1439 = vmatpush2.msra.mxu0 %v1204
        %1440 = vmatprep.subr.mxu0 %v1201
        %1441 = vmatpush2.msra.mxu0 %v1200
        %1442 = vmatprep.subr.mxu0 %v1197
        %1443 = vmatpush2.msra.mxu0 %v1196
        %1444 = vmatprep.subr.mxu0 %v1193
        %1445 = vmatpush2.msra.mxu0 %v1192
        %1446 = vmatprep.subr.mxu0 %v1189
        %1447 = vmatpush2.msra.mxu0 %v1188
        %1448 = vmatprep.subr.mxu0 %v1185
        %1449 = vmatpush2.msra.mxu0 %v1184
        %1450 = vmatprep.subr.mxu0 %v1181
        %1451 = vmatpush2.msra.mxu0 %v1180
        %1452 = vmatprep.subr.mxu0 %v1177
        %1453 = vmatpush2.msra.mxu0 %v1176
        %1454 = vmatprep.mubr.f32.mxu0 %v1109
        %1455 = vmatmul.mubr.f32.gmra.mxu0 %v1108
        %v1456 = vpop.f32.mrf.mxu0
        %v1457 = vadd.f32 %v1373, %v1456
        %v1458 = vpop.f32.mrf.mxu0
        %v1459 = vadd.f32 %v1377, %v1458
        %1460 = vdwg.mxu0
        %1461 = vmatprep.subr.mxu0 %v1301
        %1462 = vmatpush1.msra.mxu0 %v1300
        %1463 = vmatprep.subr.mxu0 %v1297
        %1464 = vmatpush1.msra.mxu0 %v1296
        %1465 = vmatprep.subr.mxu0 %v1293
        %1466 = vmatpush1.msra.mxu0 %v1292
        %1467 = vmatprep.subr.mxu0 %v1289
        %1468 = vmatpush1.msra.mxu0 %v1288
        %1469 = vmatprep.subr.mxu0 %v1285
        %1470 = vmatpush1.msra.mxu0 %v1284
        %1471 = vmatprep.subr.mxu0 %v1281
        %1472 = vmatpush1.msra.mxu0 %v1280
        %1473 = vmatprep.subr.mxu0 %v1277
        %1474 = vmatpush1.msra.mxu0 %v1276
        %1475 = vmatprep.subr.mxu0 %v1273
        %1476 = vmatpush1.msra.mxu0 %v1272
        %1477 = vmatprep.subr.mxu0 %v1269
        %1478 = vmatpush1.msra.mxu0 %v1268
        %1479 = vmatprep.subr.mxu0 %v1265
        %1480 = vmatpush1.msra.mxu0 %v1264
        %1481 = vmatprep.subr.mxu0 %v1261
        %1482 = vmatpush1.msra.mxu0 %v1260
        %1483 = vmatprep.subr.mxu0 %v1257
        %1484 = vmatpush1.msra.mxu0 %v1256
        %1485 = vmatprep.subr.mxu0 %v1253
        %1486 = vmatpush1.msra.mxu0 %v1252
        %1487 = vmatprep.subr.mxu0 %v1249
        %1488 = vmatpush1.msra.mxu0 %v1248
        %1489 = vmatprep.subr.mxu0 %v1245
        %1490 = vmatpush1.msra.mxu0 %v1244
        %1491 = vmatprep.subr.mxu0 %v1241
        %1492 = vmatpush1.msra.mxu0 %v1240
        %1493 = vmatprep.subr.mxu0 %v1365
        %1494 = vmatpush2.msra.mxu0 %v1364
        %1495 = vmatprep.subr.mxu0 %v1361
        %1496 = vmatpush2.msra.mxu0 %v1360
        %1497 = vmatprep.subr.mxu0 %v1357
        %1498 = vmatpush2.msra.mxu0 %v1356
        %1499 = vmatprep.subr.mxu0 %v1353
        %1500 = vmatpush2.msra.mxu0 %v1352
        %1501 = vmatprep.subr.mxu0 %v1349
        %1502 = vmatpush2.msra.mxu0 %v1348
        %1503 = vmatprep.subr.mxu0 %v1345
        %1504 = vmatpush2.msra.mxu0 %v1344
        %1505 = vmatprep.subr.mxu0 %v1341
        %1506 = vmatpush2.msra.mxu0 %v1340
        %1507 = vmatprep.subr.mxu0 %v1337
        %1508 = vmatpush2.msra.mxu0 %v1336
        %1509 = vmatprep.subr.mxu0 %v1333
        %1510 = vmatpush2.msra.mxu0 %v1332
        %1511 = vmatprep.subr.mxu0 %v1329
        %1512 = vmatpush2.msra.mxu0 %v1328
        %1513 = vmatprep.subr.mxu0 %v1325
        %1514 = vmatpush2.msra.mxu0 %v1324
        %1515 = vmatprep.subr.mxu0 %v1321
        %1516 = vmatpush2.msra.mxu0 %v1320
        %1517 = vmatprep.subr.mxu0 %v1317
        %1518 = vmatpush2.msra.mxu0 %v1316
        %1519 = vmatprep.subr.mxu0 %v1313
        %1520 = vmatpush2.msra.mxu0 %v1312
        %1521 = vmatprep.subr.mxu0 %v1309
        %1522 = vmatpush2.msra.mxu0 %v1308
        %1523 = vmatprep.subr.mxu0 %v1305
        %1524 = vmatpush2.msra.mxu0 %v1304
        %1525 = vmatprep.mubr.f32.mxu0 %v1111
        %1526 = vmatmul.mubr.f32.gmra.mxu0 %v1110
        %v1527 = vpop.f32.mrf.mxu0
        %v1528 = vadd.f32 %v1457, %v1527
        %v1529 = vpop.f32.mrf.mxu0
        %v1530 = vadd.f32 %v1459, %v1529
        %1531 = vdwg.mxu0
        %1532 = vmatprep.subr.mxu0 %v1175
        %1533 = vmatpush1.msra.mxu0 %v1174
        %1534 = vmatprep.subr.mxu0 %v1171
        %1535 = vmatpush1.msra.mxu0 %v1170
        %1536 = vmatprep.subr.mxu0 %v1167
        %1537 = vmatpush1.msra.mxu0 %v1166
        %1538 = vmatprep.subr.mxu0 %v1163
        %1539 = vmatpush1.msra.mxu0 %v1162
        %1540 = vmatprep.subr.mxu0 %v1159
        %1541 = vmatpush1.msra.mxu0 %v1158
        %1542 = vmatprep.subr.mxu0 %v1155
        %1543 = vmatpush1.msra.mxu0 %v1154
        %1544 = vmatprep.subr.mxu0 %v1151
        %1545 = vmatpush1.msra.mxu0 %v1150
        %1546 = vmatprep.subr.mxu0 %v1147
        %1547 = vmatpush1.msra.mxu0 %v1146
        %1548 = vmatprep.subr.mxu0 %v1143
        %1549 = vmatpush1.msra.mxu0 %v1142
        %1550 = vmatprep.subr.mxu0 %v1139
        %1551 = vmatpush1.msra.mxu0 %v1138
        %1552 = vmatprep.subr.mxu0 %v1135
        %1553 = vmatpush1.msra.mxu0 %v1134
        %1554 = vmatprep.subr.mxu0 %v1131
        %1555 = vmatpush1.msra.mxu0 %v1130
        %1556 = vmatprep.subr.mxu0 %v1127
        %1557 = vmatpush1.msra.mxu0 %v1126
        %1558 = vmatprep.subr.mxu0 %v1123
        %1559 = vmatpush1.msra.mxu0 %v1122
        %1560 = vmatprep.subr.mxu0 %v1119
        %1561 = vmatpush1.msra.mxu0 %v1118
        %1562 = vmatprep.subr.mxu0 %v1115
        %1563 = vmatpush1.msra.mxu0 %v1114
        %1564 = vmatprep.subr.mxu0 %v1239
        %1565 = vmatpush2.msra.mxu0 %v1238
        %1566 = vmatprep.subr.mxu0 %v1235
        %1567 = vmatpush2.msra.mxu0 %v1234
        %1568 = vmatprep.subr.mxu0 %v1231
        %1569 = vmatpush2.msra.mxu0 %v1230
        %1570 = vmatprep.subr.mxu0 %v1227
        %1571 = vmatpush2.msra.mxu0 %v1226
        %1572 = vmatprep.subr.mxu0 %v1223
        %1573 = vmatpush2.msra.mxu0 %v1222
        %1574 = vmatprep.subr.mxu0 %v1219
        %1575 = vmatpush2.msra.mxu0 %v1218
        %1576 = vmatprep.subr.mxu0 %v1215
        %1577 = vmatpush2.msra.mxu0 %v1214
        %1578 = vmatprep.subr.mxu0 %v1211
        %1579 = vmatpush2.msra.mxu0 %v1210
        %1580 = vmatprep.subr.mxu0 %v1207
        %1581 = vmatpush2.msra.mxu0 %v1206
        %1582 = vmatprep.subr.mxu0 %v1203
        %1583 = vmatpush2.msra.mxu0 %v1202
        %1584 = vmatprep.subr.mxu0 %v1199
        %1585 = vmatpush2.msra.mxu0 %v1198
        %1586 = vmatprep.subr.mxu0 %v1195
        %1587 = vmatpush2.msra.mxu0 %v1194
        %1588 = vmatprep.subr.mxu0 %v1191
        %1589 = vmatpush2.msra.mxu0 %v1190
        %1590 = vmatprep.subr.mxu0 %v1187
        %1591 = vmatpush2.msra.mxu0 %v1186
        %1592 = vmatprep.subr.mxu0 %v1183
        %1593 = vmatpush2.msra.mxu0 %v1182
        %1594 = vmatprep.subr.mxu0 %v1179
        %1595 = vmatpush2.msra.mxu0 %v1178
        %1596 = vmatprep.mubr.f32.mxu0 %v1109
        %1597 = vmatmul.mubr.f32.gmra.mxu0 %v1108
        %v1598 = vpop.f32.mrf.mxu0
        %v1599 = vadd.f32 %v1381, %v1598
        %v1600 = vpop.f32.mrf.mxu0
        %v1601 = vadd.f32 %v1385, %v1600
        %1602 = vdwg.mxu0
        %1603 = vmatprep.subr.mxu0 %v1303
        %1604 = vmatpush1.msra.mxu0 %v1302
        %1605 = vmatprep.subr.mxu0 %v1299
        %1606 = vmatpush1.msra.mxu0 %v1298
        %1607 = vmatprep.subr.mxu0 %v1295
        %1608 = vmatpush1.msra.mxu0 %v1294
        %1609 = vmatprep.subr.mxu0 %v1291
        %1610 = vmatpush1.msra.mxu0 %v1290
        %1611 = vmatprep.subr.mxu0 %v1287
        %1612 = vmatpush1.msra.mxu0 %v1286
        %1613 = vmatprep.subr.mxu0 %v1283
        %1614 = vmatpush1.msra.mxu0 %v1282
        %1615 = vmatprep.subr.mxu0 %v1279
        %1616 = vmatpush1.msra.mxu0 %v1278
        %1617 = vmatprep.subr.mxu0 %v1275
        %1618 = vmatpush1.msra.mxu0 %v1274
        %1619 = vmatprep.subr.mxu0 %v1271
        %1620 = vmatpush1.msra.mxu0 %v1270
        %1621 = vmatprep.subr.mxu0 %v1267
        %1622 = vmatpush1.msra.mxu0 %v1266
        %1623 = vmatprep.subr.mxu0 %v1263
        %1624 = vmatpush1.msra.mxu0 %v1262
        %1625 = vmatprep.subr.mxu0 %v1259
        %1626 = vmatpush1.msra.mxu0 %v1258
        %1627 = vmatprep.subr.mxu0 %v1255
        %1628 = vmatpush1.msra.mxu0 %v1254
        %1629 = vmatprep.subr.mxu0 %v1251
        %1630 = vmatpush1.msra.mxu0 %v1250
        %1631 = vmatprep.subr.mxu0 %v1247
        %1632 = vmatpush1.msra.mxu0 %v1246
        %1633 = vmatprep.subr.mxu0 %v1243
        %1634 = vmatpush1.msra.mxu0 %v1242
        %1635 = vmatprep.subr.mxu0 %v1367
        %1636 = vmatpush2.msra.mxu0 %v1366
        %1637 = vmatprep.subr.mxu0 %v1363
        %1638 = vmatpush2.msra.mxu0 %v1362
        %1639 = vmatprep.subr.mxu0 %v1359
        %1640 = vmatpush2.msra.mxu0 %v1358
        %1641 = vmatprep.subr.mxu0 %v1355
        %1642 = vmatpush2.msra.mxu0 %v1354
        %1643 = vmatprep.subr.mxu0 %v1351
        %1644 = vmatpush2.msra.mxu0 %v1350
        %1645 = vmatprep.subr.mxu0 %v1347
        %1646 = vmatpush2.msra.mxu0 %v1346
        %1647 = vmatprep.subr.mxu0 %v1343
        %1648 = vmatpush2.msra.mxu0 %v1342
        %1649 = vmatprep.subr.mxu0 %v1339
        %1650 = vmatpush2.msra.mxu0 %v1338
        %1651 = vmatprep.subr.mxu0 %v1335
        %1652 = vmatpush2.msra.mxu0 %v1334
        %1653 = vmatprep.subr.mxu0 %v1331
        %1654 = vmatpush2.msra.mxu0 %v1330
        %1655 = vmatprep.subr.mxu0 %v1327
        %1656 = vmatpush2.msra.mxu0 %v1326
        %1657 = vmatprep.subr.mxu0 %v1323
        %1658 = vmatpush2.msra.mxu0 %v1322
        %1659 = vmatprep.subr.mxu0 %v1319
        %1660 = vmatpush2.msra.mxu0 %v1318
        %1661 = vmatprep.subr.mxu0 %v1315
        %1662 = vmatpush2.msra.mxu0 %v1314
        %1663 = vmatprep.subr.mxu0 %v1311
        %1664 = vmatpush2.msra.mxu0 %v1310
        %1665 = vmatprep.subr.mxu0 %v1307
        %1666 = vmatpush2.msra.mxu0 %v1306
        %1667 = vmatprep.mubr.f32.mxu0 %v1111
        %1668 = vmatmul.mubr.f32.gmra.mxu0 %v1110
        %v1669 = vpop.f32.mrf.mxu0
        %v1670 = vadd.f32 %v1599, %v1669
        %v1671 = vpop.f32.mrf.mxu0
        %v1672 = vadd.f32 %v1601, %v1671
        %1673 = vdwg.mxu0
        %1674 = vst [vmem:[#allocation3] sm:$0xff] %v1528
        %1675 = vst [vmem:[#allocation3 + $0x8] sm:$0xff] %v1530
        %1676 = vst [vmem:[#allocation3 + $0x10] sm:$0xff] %v1670
        %1677 = vst [vmem:[#allocation3 + $0x18] sm:$0xff] %v1672
        %v1678 = vld [vmem:[%s469] sm:$0xff]
        %v1679 = vld [vmem:[%s469 + $0x8] sm:$0xff]
        %v1680 = vld [vmem:[%s469 + $0x10] sm:$0xff]
        %v1681 = vld [vmem:[%s469 + $0x18] sm:$0xff]
        %v1682 = vld [vmem:[#allocation14] sm:$0xff]
        %v1683 = vld [vmem:[#allocation14 + $0x8] sm:$0xff]
        %v1684 = vld [vmem:[#allocation14 + $0x10] sm:$0xff]
        %v1685 = vld [vmem:[#allocation14 + $0x18] sm:$0xff]
        %v1686 = vld [vmem:[#allocation14 + $0x20] sm:$0xff]
        %v1687 = vld [vmem:[#allocation14 + $0x28] sm:$0xff]
        %v1688 = vld [vmem:[#allocation14 + $0x30] sm:$0xff]
        %v1689 = vld [vmem:[#allocation14 + $0x38] sm:$0xff]
        %v1690 = vld [vmem:[#allocation14 + $0x40] sm:$0xff]
        %v1691 = vld [vmem:[#allocation14 + $0x48] sm:$0xff]
        %v1692 = vld [vmem:[#allocation14 + $0x50] sm:$0xff]
        %v1693 = vld [vmem:[#allocation14 + $0x58] sm:$0xff]
        %v1694 = vld [vmem:[#allocation14 + $0x60] sm:$0xff]
        %v1695 = vld [vmem:[#allocation14 + $0x68] sm:$0xff]
        %v1696 = vld [vmem:[#allocation14 + $0x70] sm:$0xff]
        %v1697 = vld [vmem:[#allocation14 + $0x78] sm:$0xff]
        %v1698 = vld [vmem:[#allocation14 + $0x80] sm:$0xff]
        %v1699 = vld [vmem:[#allocation14 + $0x88] sm:$0xff]
        %v1700 = vld [vmem:[#allocation14 + $0x90] sm:$0xff]
        %v1701 = vld [vmem:[#allocation14 + $0x98] sm:$0xff]
        %v1702 = vld [vmem:[#allocation14 + $0xa0] sm:$0xff]
        %v1703 = vld [vmem:[#allocation14 + $0xa8] sm:$0xff]
        %v1704 = vld [vmem:[#allocation14 + $0xb0] sm:$0xff]
        %v1705 = vld [vmem:[#allocation14 + $0xb8] sm:$0xff]
        %v1706 = vld [vmem:[#allocation14 + $0xc0] sm:$0xff]
        %v1707 = vld [vmem:[#allocation14 + $0xc8] sm:$0xff]
        %v1708 = vld [vmem:[#allocation14 + $0xd0] sm:$0xff]
        %v1709 = vld [vmem:[#allocation14 + $0xd8] sm:$0xff]
        %v1710 = vld [vmem:[#allocation14 + $0xe0] sm:$0xff]
        %v1711 = vld [vmem:[#allocation14 + $0xe8] sm:$0xff]
        %v1712 = vld [vmem:[#allocation14 + $0xf0] sm:$0xff]
        %v1713 = vld [vmem:[#allocation14 + $0xf8] sm:$0xff]
        %v1714 = vld [vmem:[#allocation14 + $0x100] sm:$0xff]
        %v1715 = vld [vmem:[#allocation14 + $0x108] sm:$0xff]
        %v1716 = vld [vmem:[#allocation14 + $0x110] sm:$0xff]
        %v1717 = vld [vmem:[#allocation14 + $0x118] sm:$0xff]
        %v1718 = vld [vmem:[#allocation14 + $0x120] sm:$0xff]
        %v1719 = vld [vmem:[#allocation14 + $0x128] sm:$0xff]
        %v1720 = vld [vmem:[#allocation14 + $0x130] sm:$0xff]
        %v1721 = vld [vmem:[#allocation14 + $0x138] sm:$0xff]
        %v1722 = vld [vmem:[#allocation14 + $0x140] sm:$0xff]
        %v1723 = vld [vmem:[#allocation14 + $0x148] sm:$0xff]
        %v1724 = vld [vmem:[#allocation14 + $0x150] sm:$0xff]
        %v1725 = vld [vmem:[#allocation14 + $0x158] sm:$0xff]
        %v1726 = vld [vmem:[#allocation14 + $0x160] sm:$0xff]
        %v1727 = vld [vmem:[#allocation14 + $0x168] sm:$0xff]
        %v1728 = vld [vmem:[#allocation14 + $0x170] sm:$0xff]
        %v1729 = vld [vmem:[#allocation14 + $0x178] sm:$0xff]
        %v1730 = vld [vmem:[#allocation14 + $0x180] sm:$0xff]
        %v1731 = vld [vmem:[#allocation14 + $0x188] sm:$0xff]
        %v1732 = vld [vmem:[#allocation14 + $0x190] sm:$0xff]
        %v1733 = vld [vmem:[#allocation14 + $0x198] sm:$0xff]
        %v1734 = vld [vmem:[#allocation14 + $0x1a0] sm:$0xff]
        %v1735 = vld [vmem:[#allocation14 + $0x1a8] sm:$0xff]
        %v1736 = vld [vmem:[#allocation14 + $0x1b0] sm:$0xff]
        %v1737 = vld [vmem:[#allocation14 + $0x1b8] sm:$0xff]
        %v1738 = vld [vmem:[#allocation14 + $0x1c0] sm:$0xff]
        %v1739 = vld [vmem:[#allocation14 + $0x1c8] sm:$0xff]
        %v1740 = vld [vmem:[#allocation14 + $0x1d0] sm:$0xff]
        %v1741 = vld [vmem:[#allocation14 + $0x1d8] sm:$0xff]
        %v1742 = vld [vmem:[#allocation14 + $0x1e0] sm:$0xff]
        %v1743 = vld [vmem:[#allocation14 + $0x1e8] sm:$0xff]
        %v1744 = vld [vmem:[#allocation14 + $0x1f0] sm:$0xff]
        %v1745 = vld [vmem:[#allocation14 + $0x1f8] sm:$0xff]
        %v1746 = vld [vmem:[#allocation14 + $0x200] sm:$0xff]
        %v1747 = vld [vmem:[#allocation14 + $0x208] sm:$0xff]
        %v1748 = vld [vmem:[#allocation14 + $0x210] sm:$0xff]
        %v1749 = vld [vmem:[#allocation14 + $0x218] sm:$0xff]
        %v1750 = vld [vmem:[#allocation14 + $0x220] sm:$0xff]
        %v1751 = vld [vmem:[#allocation14 + $0x228] sm:$0xff]
        %v1752 = vld [vmem:[#allocation14 + $0x230] sm:$0xff]
        %v1753 = vld [vmem:[#allocation14 + $0x238] sm:$0xff]
        %v1754 = vld [vmem:[#allocation14 + $0x240] sm:$0xff]
        %v1755 = vld [vmem:[#allocation14 + $0x248] sm:$0xff]
        %v1756 = vld [vmem:[#allocation14 + $0x250] sm:$0xff]
        %v1757 = vld [vmem:[#allocation14 + $0x258] sm:$0xff]
        %v1758 = vld [vmem:[#allocation14 + $0x260] sm:$0xff]
        %v1759 = vld [vmem:[#allocation14 + $0x268] sm:$0xff]
        %v1760 = vld [vmem:[#allocation14 + $0x270] sm:$0xff]
        %v1761 = vld [vmem:[#allocation14 + $0x278] sm:$0xff]
        %v1762 = vld [vmem:[#allocation14 + $0x280] sm:$0xff]
        %v1763 = vld [vmem:[#allocation14 + $0x288] sm:$0xff]
        %v1764 = vld [vmem:[#allocation14 + $0x290] sm:$0xff]
        %v1765 = vld [vmem:[#allocation14 + $0x298] sm:$0xff]
        %v1766 = vld [vmem:[#allocation14 + $0x2a0] sm:$0xff]
        %v1767 = vld [vmem:[#allocation14 + $0x2a8] sm:$0xff]
        %v1768 = vld [vmem:[#allocation14 + $0x2b0] sm:$0xff]
        %v1769 = vld [vmem:[#allocation14 + $0x2b8] sm:$0xff]
        %v1770 = vld [vmem:[#allocation14 + $0x2c0] sm:$0xff]
        %v1771 = vld [vmem:[#allocation14 + $0x2c8] sm:$0xff]
        %v1772 = vld [vmem:[#allocation14 + $0x2d0] sm:$0xff]
        %v1773 = vld [vmem:[#allocation14 + $0x2d8] sm:$0xff]
        %v1774 = vld [vmem:[#allocation14 + $0x2e0] sm:$0xff]
        %v1775 = vld [vmem:[#allocation14 + $0x2e8] sm:$0xff]
        %v1776 = vld [vmem:[#allocation14 + $0x2f0] sm:$0xff]
        %v1777 = vld [vmem:[#allocation14 + $0x2f8] sm:$0xff]
        %v1778 = vld [vmem:[#allocation14 + $0x300] sm:$0xff]
        %v1779 = vld [vmem:[#allocation14 + $0x308] sm:$0xff]
        %v1780 = vld [vmem:[#allocation14 + $0x310] sm:$0xff]
        %v1781 = vld [vmem:[#allocation14 + $0x318] sm:$0xff]
        %v1782 = vld [vmem:[#allocation14 + $0x320] sm:$0xff]
        %v1783 = vld [vmem:[#allocation14 + $0x328] sm:$0xff]
        %v1784 = vld [vmem:[#allocation14 + $0x330] sm:$0xff]
        %v1785 = vld [vmem:[#allocation14 + $0x338] sm:$0xff]
        %v1786 = vld [vmem:[#allocation14 + $0x340] sm:$0xff]
        %v1787 = vld [vmem:[#allocation14 + $0x348] sm:$0xff]
        %v1788 = vld [vmem:[#allocation14 + $0x350] sm:$0xff]
        %v1789 = vld [vmem:[#allocation14 + $0x358] sm:$0xff]
        %v1790 = vld [vmem:[#allocation14 + $0x360] sm:$0xff]
        %v1791 = vld [vmem:[#allocation14 + $0x368] sm:$0xff]
        %v1792 = vld [vmem:[#allocation14 + $0x370] sm:$0xff]
        %v1793 = vld [vmem:[#allocation14 + $0x378] sm:$0xff]
        %v1794 = vld [vmem:[#allocation14 + $0x380] sm:$0xff]
        %v1795 = vld [vmem:[#allocation14 + $0x388] sm:$0xff]
        %v1796 = vld [vmem:[#allocation14 + $0x390] sm:$0xff]
        %v1797 = vld [vmem:[#allocation14 + $0x398] sm:$0xff]
        %v1798 = vld [vmem:[#allocation14 + $0x3a0] sm:$0xff]
        %v1799 = vld [vmem:[#allocation14 + $0x3a8] sm:$0xff]
        %v1800 = vld [vmem:[#allocation14 + $0x3b0] sm:$0xff]
        %v1801 = vld [vmem:[#allocation14 + $0x3b8] sm:$0xff]
        %v1802 = vld [vmem:[#allocation14 + $0x3c0] sm:$0xff]
        %v1803 = vld [vmem:[#allocation14 + $0x3c8] sm:$0xff]
        %v1804 = vld [vmem:[#allocation14 + $0x3d0] sm:$0xff]
        %v1805 = vld [vmem:[#allocation14 + $0x3d8] sm:$0xff]
        %v1806 = vld [vmem:[#allocation14 + $0x3e0] sm:$0xff]
        %v1807 = vld [vmem:[#allocation14 + $0x3e8] sm:$0xff]
        %v1808 = vld [vmem:[#allocation14 + $0x3f0] sm:$0xff]
        %v1809 = vld [vmem:[#allocation14 + $0x3f8] sm:$0xff]
        %v1810 = vld [vmem:[#allocation14 + $0x400] sm:$0xff]
        %v1811 = vld [vmem:[#allocation14 + $0x408] sm:$0xff]
        %v1812 = vld [vmem:[#allocation14 + $0x410] sm:$0xff]
        %v1813 = vld [vmem:[#allocation14 + $0x418] sm:$0xff]
        %v1814 = vld [vmem:[#allocation14 + $0x420] sm:$0xff]
        %v1815 = vld [vmem:[#allocation14 + $0x428] sm:$0xff]
        %v1816 = vld [vmem:[#allocation14 + $0x430] sm:$0xff]
        %v1817 = vld [vmem:[#allocation14 + $0x438] sm:$0xff]
        %v1818 = vld [vmem:[#allocation14 + $0x440] sm:$0xff]
        %v1819 = vld [vmem:[#allocation14 + $0x448] sm:$0xff]
        %v1820 = vld [vmem:[#allocation14 + $0x450] sm:$0xff]
        %v1821 = vld [vmem:[#allocation14 + $0x458] sm:$0xff]
        %v1822 = vld [vmem:[#allocation14 + $0x460] sm:$0xff]
        %v1823 = vld [vmem:[#allocation14 + $0x468] sm:$0xff]
        %v1824 = vld [vmem:[#allocation14 + $0x470] sm:$0xff]
        %v1825 = vld [vmem:[#allocation14 + $0x478] sm:$0xff]
        %v1826 = vld [vmem:[#allocation14 + $0x480] sm:$0xff]
        %v1827 = vld [vmem:[#allocation14 + $0x488] sm:$0xff]
        %v1828 = vld [vmem:[#allocation14 + $0x490] sm:$0xff]
        %v1829 = vld [vmem:[#allocation14 + $0x498] sm:$0xff]
        %v1830 = vld [vmem:[#allocation14 + $0x4a0] sm:$0xff]
        %v1831 = vld [vmem:[#allocation14 + $0x4a8] sm:$0xff]
        %v1832 = vld [vmem:[#allocation14 + $0x4b0] sm:$0xff]
        %v1833 = vld [vmem:[#allocation14 + $0x4b8] sm:$0xff]
        %v1834 = vld [vmem:[#allocation14 + $0x4c0] sm:$0xff]
        %v1835 = vld [vmem:[#allocation14 + $0x4c8] sm:$0xff]
        %v1836 = vld [vmem:[#allocation14 + $0x4d0] sm:$0xff]
        %v1837 = vld [vmem:[#allocation14 + $0x4d8] sm:$0xff]
        %v1838 = vld [vmem:[#allocation14 + $0x4e0] sm:$0xff]
        %v1839 = vld [vmem:[#allocation14 + $0x4e8] sm:$0xff]
        %v1840 = vld [vmem:[#allocation14 + $0x4f0] sm:$0xff]
        %v1841 = vld [vmem:[#allocation14 + $0x4f8] sm:$0xff]
        %v1842 = vld [vmem:[#allocation14 + $0x500] sm:$0xff]
        %v1843 = vld [vmem:[#allocation14 + $0x508] sm:$0xff]
        %v1844 = vld [vmem:[#allocation14 + $0x510] sm:$0xff]
        %v1845 = vld [vmem:[#allocation14 + $0x518] sm:$0xff]
        %v1846 = vld [vmem:[#allocation14 + $0x520] sm:$0xff]
        %v1847 = vld [vmem:[#allocation14 + $0x528] sm:$0xff]
        %v1848 = vld [vmem:[#allocation14 + $0x530] sm:$0xff]
        %v1849 = vld [vmem:[#allocation14 + $0x538] sm:$0xff]
        %v1850 = vld [vmem:[#allocation14 + $0x540] sm:$0xff]
        %v1851 = vld [vmem:[#allocation14 + $0x548] sm:$0xff]
        %v1852 = vld [vmem:[#allocation14 + $0x550] sm:$0xff]
        %v1853 = vld [vmem:[#allocation14 + $0x558] sm:$0xff]
        %v1854 = vld [vmem:[#allocation14 + $0x560] sm:$0xff]
        %v1855 = vld [vmem:[#allocation14 + $0x568] sm:$0xff]
        %v1856 = vld [vmem:[#allocation14 + $0x570] sm:$0xff]
        %v1857 = vld [vmem:[#allocation14 + $0x578] sm:$0xff]
        %v1858 = vld [vmem:[#allocation14 + $0x580] sm:$0xff]
        %v1859 = vld [vmem:[#allocation14 + $0x588] sm:$0xff]
        %v1860 = vld [vmem:[#allocation14 + $0x590] sm:$0xff]
        %v1861 = vld [vmem:[#allocation14 + $0x598] sm:$0xff]
        %v1862 = vld [vmem:[#allocation14 + $0x5a0] sm:$0xff]
        %v1863 = vld [vmem:[#allocation14 + $0x5a8] sm:$0xff]
        %v1864 = vld [vmem:[#allocation14 + $0x5b0] sm:$0xff]
        %v1865 = vld [vmem:[#allocation14 + $0x5b8] sm:$0xff]
        %v1866 = vld [vmem:[#allocation14 + $0x5c0] sm:$0xff]
        %v1867 = vld [vmem:[#allocation14 + $0x5c8] sm:$0xff]
        %v1868 = vld [vmem:[#allocation14 + $0x5d0] sm:$0xff]
        %v1869 = vld [vmem:[#allocation14 + $0x5d8] sm:$0xff]
        %v1870 = vld [vmem:[#allocation14 + $0x5e0] sm:$0xff]
        %v1871 = vld [vmem:[#allocation14 + $0x5e8] sm:$0xff]
        %v1872 = vld [vmem:[#allocation14 + $0x5f0] sm:$0xff]
        %v1873 = vld [vmem:[#allocation14 + $0x5f8] sm:$0xff]
        %v1874 = vld [vmem:[#allocation14 + $0x600] sm:$0xff]
        %v1875 = vld [vmem:[#allocation14 + $0x608] sm:$0xff]
        %v1876 = vld [vmem:[#allocation14 + $0x610] sm:$0xff]
        %v1877 = vld [vmem:[#allocation14 + $0x618] sm:$0xff]
        %v1878 = vld [vmem:[#allocation14 + $0x620] sm:$0xff]
        %v1879 = vld [vmem:[#allocation14 + $0x628] sm:$0xff]
        %v1880 = vld [vmem:[#allocation14 + $0x630] sm:$0xff]
        %v1881 = vld [vmem:[#allocation14 + $0x638] sm:$0xff]
        %v1882 = vld [vmem:[#allocation14 + $0x640] sm:$0xff]
        %v1883 = vld [vmem:[#allocation14 + $0x648] sm:$0xff]
        %v1884 = vld [vmem:[#allocation14 + $0x650] sm:$0xff]
        %v1885 = vld [vmem:[#allocation14 + $0x658] sm:$0xff]
        %v1886 = vld [vmem:[#allocation14 + $0x660] sm:$0xff]
        %v1887 = vld [vmem:[#allocation14 + $0x668] sm:$0xff]
        %v1888 = vld [vmem:[#allocation14 + $0x670] sm:$0xff]
        %v1889 = vld [vmem:[#allocation14 + $0x678] sm:$0xff]
        %v1890 = vld [vmem:[#allocation14 + $0x680] sm:$0xff]
        %v1891 = vld [vmem:[#allocation14 + $0x688] sm:$0xff]
        %v1892 = vld [vmem:[#allocation14 + $0x690] sm:$0xff]
        %v1893 = vld [vmem:[#allocation14 + $0x698] sm:$0xff]
        %v1894 = vld [vmem:[#allocation14 + $0x6a0] sm:$0xff]
        %v1895 = vld [vmem:[#allocation14 + $0x6a8] sm:$0xff]
        %v1896 = vld [vmem:[#allocation14 + $0x6b0] sm:$0xff]
        %v1897 = vld [vmem:[#allocation14 + $0x6b8] sm:$0xff]
        %v1898 = vld [vmem:[#allocation14 + $0x6c0] sm:$0xff]
        %v1899 = vld [vmem:[#allocation14 + $0x6c8] sm:$0xff]
        %v1900 = vld [vmem:[#allocation14 + $0x6d0] sm:$0xff]
        %v1901 = vld [vmem:[#allocation14 + $0x6d8] sm:$0xff]
        %v1902 = vld [vmem:[#allocation14 + $0x6e0] sm:$0xff]
        %v1903 = vld [vmem:[#allocation14 + $0x6e8] sm:$0xff]
        %v1904 = vld [vmem:[#allocation14 + $0x6f0] sm:$0xff]
        %v1905 = vld [vmem:[#allocation14 + $0x6f8] sm:$0xff]
        %v1906 = vld [vmem:[#allocation14 + $0x700] sm:$0xff]
        %v1907 = vld [vmem:[#allocation14 + $0x708] sm:$0xff]
        %v1908 = vld [vmem:[#allocation14 + $0x710] sm:$0xff]
        %v1909 = vld [vmem:[#allocation14 + $0x718] sm:$0xff]
        %v1910 = vld [vmem:[#allocation14 + $0x720] sm:$0xff]
        %v1911 = vld [vmem:[#allocation14 + $0x728] sm:$0xff]
        %v1912 = vld [vmem:[#allocation14 + $0x730] sm:$0xff]
        %v1913 = vld [vmem:[#allocation14 + $0x738] sm:$0xff]
        %v1914 = vld [vmem:[#allocation14 + $0x740] sm:$0xff]
        %v1915 = vld [vmem:[#allocation14 + $0x748] sm:$0xff]
        %v1916 = vld [vmem:[#allocation14 + $0x750] sm:$0xff]
        %v1917 = vld [vmem:[#allocation14 + $0x758] sm:$0xff]
        %v1918 = vld [vmem:[#allocation14 + $0x760] sm:$0xff]
        %v1919 = vld [vmem:[#allocation14 + $0x768] sm:$0xff]
        %v1920 = vld [vmem:[#allocation14 + $0x770] sm:$0xff]
        %v1921 = vld [vmem:[#allocation14 + $0x778] sm:$0xff]
        %v1922 = vld [vmem:[#allocation14 + $0x780] sm:$0xff]
        %v1923 = vld [vmem:[#allocation14 + $0x788] sm:$0xff]
        %v1924 = vld [vmem:[#allocation14 + $0x790] sm:$0xff]
        %v1925 = vld [vmem:[#allocation14 + $0x798] sm:$0xff]
        %v1926 = vld [vmem:[#allocation14 + $0x7a0] sm:$0xff]
        %v1927 = vld [vmem:[#allocation14 + $0x7a8] sm:$0xff]
        %v1928 = vld [vmem:[#allocation14 + $0x7b0] sm:$0xff]
        %v1929 = vld [vmem:[#allocation14 + $0x7b8] sm:$0xff]
        %v1930 = vld [vmem:[#allocation14 + $0x7c0] sm:$0xff]
        %v1931 = vld [vmem:[#allocation14 + $0x7c8] sm:$0xff]
        %v1932 = vld [vmem:[#allocation14 + $0x7d0] sm:$0xff]
        %v1933 = vld [vmem:[#allocation14 + $0x7d8] sm:$0xff]
        %v1934 = vld [vmem:[#allocation14 + $0x7e0] sm:$0xff]
        %v1935 = vld [vmem:[#allocation14 + $0x7e8] sm:$0xff]
        %v1936 = vld [vmem:[#allocation14 + $0x7f0] sm:$0xff]
        %v1937 = vld [vmem:[#allocation14 + $0x7f8] sm:$0xff]
        %v1938 = vld [vmem:[%s9] sm:$0xf]
        %v1940 = vlaneseq
        %v1941 = vshrl.u32 %v1940, 7
        %v1942 = vsub.s32 0, %v1941
        %v1943 = vrot.slane %v1938, %v1942
        %v1944 = vlaneseq
        %v1945 = vshrl.u32 %v1944, 7
        %v1946 = vsub.s32 1, %v1945
        %v1947 = vrot.slane %v1938, %v1946
        %v1948 = vlaneseq
        %v1949 = vshrl.u32 %v1948, 7
        %v1950 = vsub.s32 2, %v1949
        %v1951 = vrot.slane %v1938, %v1950
        %v1952 = vlaneseq
        %v1953 = vshrl.u32 %v1952, 7
        %v1954 = vsub.s32 3, %v1953
        %v1955 = vrot.slane %v1938, %v1954
        %1960 = vmatprep.subr.mxu0 %v1743
        %1961 = vmatpush1.msra.mxu0 %v1742
        %1962 = vmatprep.subr.mxu0 %v1739
        %1963 = vmatpush1.msra.mxu0 %v1738
        %1964 = vmatprep.subr.mxu0 %v1735
        %1965 = vmatpush1.msra.mxu0 %v1734
        %1966 = vmatprep.subr.mxu0 %v1731
        %1967 = vmatpush1.msra.mxu0 %v1730
        %1968 = vmatprep.subr.mxu0 %v1727
        %1969 = vmatpush1.msra.mxu0 %v1726
        %1970 = vmatprep.subr.mxu0 %v1723
        %1971 = vmatpush1.msra.mxu0 %v1722
        %1972 = vmatprep.subr.mxu0 %v1719
        %1973 = vmatpush1.msra.mxu0 %v1718
        %1974 = vmatprep.subr.mxu0 %v1715
        %1975 = vmatpush1.msra.mxu0 %v1714
        %1976 = vmatprep.subr.mxu0 %v1711
        %1977 = vmatpush1.msra.mxu0 %v1710
        %1978 = vmatprep.subr.mxu0 %v1707
        %1979 = vmatpush1.msra.mxu0 %v1706
        %1980 = vmatprep.subr.mxu0 %v1703
        %1981 = vmatpush1.msra.mxu0 %v1702
        %1982 = vmatprep.subr.mxu0 %v1699
        %1983 = vmatpush1.msra.mxu0 %v1698
        %1984 = vmatprep.subr.mxu0 %v1695
        %1985 = vmatpush1.msra.mxu0 %v1694
        %1986 = vmatprep.subr.mxu0 %v1691
        %1987 = vmatpush1.msra.mxu0 %v1690
        %1988 = vmatprep.subr.mxu0 %v1687
        %1989 = vmatpush1.msra.mxu0 %v1686
        %1990 = vmatprep.subr.mxu0 %v1683
        %1991 = vmatpush1.msra.mxu0 %v1682
        %1992 = vmatprep.subr.mxu0 %v1807
        %1993 = vmatpush2.msra.mxu0 %v1806
        %1994 = vmatprep.subr.mxu0 %v1803
        %1995 = vmatpush2.msra.mxu0 %v1802
        %1996 = vmatprep.subr.mxu0 %v1799
        %1997 = vmatpush2.msra.mxu0 %v1798
        %1998 = vmatprep.subr.mxu0 %v1795
        %1999 = vmatpush2.msra.mxu0 %v1794
        %2000 = vmatprep.subr.mxu0 %v1791
        %2001 = vmatpush2.msra.mxu0 %v1790
        %2002 = vmatprep.subr.mxu0 %v1787
        %2003 = vmatpush2.msra.mxu0 %v1786
        %2004 = vmatprep.subr.mxu0 %v1783
        %2005 = vmatpush2.msra.mxu0 %v1782
        %2006 = vmatprep.subr.mxu0 %v1779
        %2007 = vmatpush2.msra.mxu0 %v1778
        %2008 = vmatprep.subr.mxu0 %v1775
        %2009 = vmatpush2.msra.mxu0 %v1774
        %2010 = vmatprep.subr.mxu0 %v1771
        %2011 = vmatpush2.msra.mxu0 %v1770
        %2012 = vmatprep.subr.mxu0 %v1767
        %2013 = vmatpush2.msra.mxu0 %v1766
        %2014 = vmatprep.subr.mxu0 %v1763
        %2015 = vmatpush2.msra.mxu0 %v1762
        %2016 = vmatprep.subr.mxu0 %v1759
        %2017 = vmatpush2.msra.mxu0 %v1758
        %2018 = vmatprep.subr.mxu0 %v1755
        %2019 = vmatpush2.msra.mxu0 %v1754
        %2020 = vmatprep.subr.mxu0 %v1751
        %2021 = vmatpush2.msra.mxu0 %v1750
        %2022 = vmatprep.subr.mxu0 %v1747
        %2023 = vmatpush2.msra.mxu0 %v1746
        %2024 = vmatprep.mubr.f32.mxu0 %v1679
        %2025 = vmatmul.mubr.f32.gmra.mxu0 %v1678
        %v2026 = vpop.f32.mrf.mxu0
        %v2027 = vadd.f32 %v1943, %v2026
        %v2028 = vpop.f32.mrf.mxu0
        %v2029 = vadd.f32 %v1947, %v2028
        %2030 = vdwg.mxu0
        %2031 = vmatprep.subr.mxu0 %v1871
        %2032 = vmatpush1.msra.mxu0 %v1870
        %2033 = vmatprep.subr.mxu0 %v1867
        %2034 = vmatpush1.msra.mxu0 %v1866
        %2035 = vmatprep.subr.mxu0 %v1863
        %2036 = vmatpush1.msra.mxu0 %v1862
        %2037 = vmatprep.subr.mxu0 %v1859
        %2038 = vmatpush1.msra.mxu0 %v1858
        %2039 = vmatprep.subr.mxu0 %v1855
        %2040 = vmatpush1.msra.mxu0 %v1854
        %2041 = vmatprep.subr.mxu0 %v1851
        %2042 = vmatpush1.msra.mxu0 %v1850
        %2043 = vmatprep.subr.mxu0 %v1847
        %2044 = vmatpush1.msra.mxu0 %v1846
        %2045 = vmatprep.subr.mxu0 %v1843
        %2046 = vmatpush1.msra.mxu0 %v1842
        %2047 = vmatprep.subr.mxu0 %v1839
        %2048 = vmatpush1.msra.mxu0 %v1838
        %2049 = vmatprep.subr.mxu0 %v1835
        %2050 = vmatpush1.msra.mxu0 %v1834
        %2051 = vmatprep.subr.mxu0 %v1831
        %2052 = vmatpush1.msra.mxu0 %v1830
        %2053 = vmatprep.subr.mxu0 %v1827
        %2054 = vmatpush1.msra.mxu0 %v1826
        %2055 = vmatprep.subr.mxu0 %v1823
        %2056 = vmatpush1.msra.mxu0 %v1822
        %2057 = vmatprep.subr.mxu0 %v1819
        %2058 = vmatpush1.msra.mxu0 %v1818
        %2059 = vmatprep.subr.mxu0 %v1815
        %2060 = vmatpush1.msra.mxu0 %v1814
        %2061 = vmatprep.subr.mxu0 %v1811
        %2062 = vmatpush1.msra.mxu0 %v1810
        %2063 = vmatprep.subr.mxu0 %v1935
        %2064 = vmatpush2.msra.mxu0 %v1934
        %2065 = vmatprep.subr.mxu0 %v1931
        %2066 = vmatpush2.msra.mxu0 %v1930
        %2067 = vmatprep.subr.mxu0 %v1927
        %2068 = vmatpush2.msra.mxu0 %v1926
        %2069 = vmatprep.subr.mxu0 %v1923
        %2070 = vmatpush2.msra.mxu0 %v1922
        %2071 = vmatprep.subr.mxu0 %v1919
        %2072 = vmatpush2.msra.mxu0 %v1918
        %2073 = vmatprep.subr.mxu0 %v1915
        %2074 = vmatpush2.msra.mxu0 %v1914
        %2075 = vmatprep.subr.mxu0 %v1911
        %2076 = vmatpush2.msra.mxu0 %v1910
        %2077 = vmatprep.subr.mxu0 %v1907
        %2078 = vmatpush2.msra.mxu0 %v1906
        %2079 = vmatprep.subr.mxu0 %v1903
        %2080 = vmatpush2.msra.mxu0 %v1902
        %2081 = vmatprep.subr.mxu0 %v1899
        %2082 = vmatpush2.msra.mxu0 %v1898
        %2083 = vmatprep.subr.mxu0 %v1895
        %2084 = vmatpush2.msra.mxu0 %v1894
        %2085 = vmatprep.subr.mxu0 %v1891
        %2086 = vmatpush2.msra.mxu0 %v1890
        %2087 = vmatprep.subr.mxu0 %v1887
        %2088 = vmatpush2.msra.mxu0 %v1886
        %2089 = vmatprep.subr.mxu0 %v1883
        %2090 = vmatpush2.msra.mxu0 %v1882
        %2091 = vmatprep.subr.mxu0 %v1879
        %2092 = vmatpush2.msra.mxu0 %v1878
        %2093 = vmatprep.subr.mxu0 %v1875
        %2094 = vmatpush2.msra.mxu0 %v1874
        %2095 = vmatprep.mubr.f32.mxu0 %v1681
        %2096 = vmatmul.mubr.f32.gmra.mxu0 %v1680
        %v2097 = vpop.f32.mrf.mxu0
        %v2098 = vadd.f32 %v2027, %v2097
        %v2099 = vpop.f32.mrf.mxu0
        %v2100 = vadd.f32 %v2029, %v2099
        %2101 = vdwg.mxu0
        %2102 = vmatprep.subr.mxu0 %v1745
        %2103 = vmatpush1.msra.mxu0 %v1744
        %2104 = vmatprep.subr.mxu0 %v1741
        %2105 = vmatpush1.msra.mxu0 %v1740
        %2106 = vmatprep.subr.mxu0 %v1737
        %2107 = vmatpush1.msra.mxu0 %v1736
        %2108 = vmatprep.subr.mxu0 %v1733
        %2109 = vmatpush1.msra.mxu0 %v1732
        %2110 = vmatprep.subr.mxu0 %v1729
        %2111 = vmatpush1.msra.mxu0 %v1728
        %2112 = vmatprep.subr.mxu0 %v1725
        %2113 = vmatpush1.msra.mxu0 %v1724
        %2114 = vmatprep.subr.mxu0 %v1721
        %2115 = vmatpush1.msra.mxu0 %v1720
        %2116 = vmatprep.subr.mxu0 %v1717
        %2117 = vmatpush1.msra.mxu0 %v1716
        %2118 = vmatprep.subr.mxu0 %v1713
        %2119 = vmatpush1.msra.mxu0 %v1712
        %2120 = vmatprep.subr.mxu0 %v1709
        %2121 = vmatpush1.msra.mxu0 %v1708
        %2122 = vmatprep.subr.mxu0 %v1705
        %2123 = vmatpush1.msra.mxu0 %v1704
        %2124 = vmatprep.subr.mxu0 %v1701
        %2125 = vmatpush1.msra.mxu0 %v1700
        %2126 = vmatprep.subr.mxu0 %v1697
        %2127 = vmatpush1.msra.mxu0 %v1696
        %2128 = vmatprep.subr.mxu0 %v1693
        %2129 = vmatpush1.msra.mxu0 %v1692
        %2130 = vmatprep.subr.mxu0 %v1689
        %2131 = vmatpush1.msra.mxu0 %v1688
        %2132 = vmatprep.subr.mxu0 %v1685
        %2133 = vmatpush1.msra.mxu0 %v1684
        %2134 = vmatprep.subr.mxu0 %v1809
        %2135 = vmatpush2.msra.mxu0 %v1808
        %2136 = vmatprep.subr.mxu0 %v1805
        %2137 = vmatpush2.msra.mxu0 %v1804
        %2138 = vmatprep.subr.mxu0 %v1801
        %2139 = vmatpush2.msra.mxu0 %v1800
        %2140 = vmatprep.subr.mxu0 %v1797
        %2141 = vmatpush2.msra.mxu0 %v1796
        %2142 = vmatprep.subr.mxu0 %v1793
        %2143 = vmatpush2.msra.mxu0 %v1792
        %2144 = vmatprep.subr.mxu0 %v1789
        %2145 = vmatpush2.msra.mxu0 %v1788
        %2146 = vmatprep.subr.mxu0 %v1785
        %2147 = vmatpush2.msra.mxu0 %v1784
        %2148 = vmatprep.subr.mxu0 %v1781
        %2149 = vmatpush2.msra.mxu0 %v1780
        %2150 = vmatprep.subr.mxu0 %v1777
        %2151 = vmatpush2.msra.mxu0 %v1776
        %2152 = vmatprep.subr.mxu0 %v1773
        %2153 = vmatpush2.msra.mxu0 %v1772
        %2154 = vmatprep.subr.mxu0 %v1769
        %2155 = vmatpush2.msra.mxu0 %v1768
        %2156 = vmatprep.subr.mxu0 %v1765
        %2157 = vmatpush2.msra.mxu0 %v1764
        %2158 = vmatprep.subr.mxu0 %v1761
        %2159 = vmatpush2.msra.mxu0 %v1760
        %2160 = vmatprep.subr.mxu0 %v1757
        %2161 = vmatpush2.msra.mxu0 %v1756
        %2162 = vmatprep.subr.mxu0 %v1753
        %2163 = vmatpush2.msra.mxu0 %v1752
        %2164 = vmatprep.subr.mxu0 %v1749
        %2165 = vmatpush2.msra.mxu0 %v1748
        %2166 = vmatprep.mubr.f32.mxu0 %v1679
        %2167 = vmatmul.mubr.f32.gmra.mxu0 %v1678
        %v2168 = vpop.f32.mrf.mxu0
        %v2169 = vadd.f32 %v1951, %v2168
        %v2170 = vpop.f32.mrf.mxu0
        %v2171 = vadd.f32 %v1955, %v2170
        %2172 = vdwg.mxu0
        %2173 = vmatprep.subr.mxu0 %v1873
        %2174 = vmatpush1.msra.mxu0 %v1872
        %2175 = vmatprep.subr.mxu0 %v1869
        %2176 = vmatpush1.msra.mxu0 %v1868
        %2177 = vmatprep.subr.mxu0 %v1865
        %2178 = vmatpush1.msra.mxu0 %v1864
        %2179 = vmatprep.subr.mxu0 %v1861
        %2180 = vmatpush1.msra.mxu0 %v1860
        %2181 = vmatprep.subr.mxu0 %v1857
        %2182 = vmatpush1.msra.mxu0 %v1856
        %2183 = vmatprep.subr.mxu0 %v1853
        %2184 = vmatpush1.msra.mxu0 %v1852
        %2185 = vmatprep.subr.mxu0 %v1849
        %2186 = vmatpush1.msra.mxu0 %v1848
        %2187 = vmatprep.subr.mxu0 %v1845
        %2188 = vmatpush1.msra.mxu0 %v1844
        %2189 = vmatprep.subr.mxu0 %v1841
        %2190 = vmatpush1.msra.mxu0 %v1840
        %2191 = vmatprep.subr.mxu0 %v1837
        %2192 = vmatpush1.msra.mxu0 %v1836
        %2193 = vmatprep.subr.mxu0 %v1833
        %2194 = vmatpush1.msra.mxu0 %v1832
        %2195 = vmatprep.subr.mxu0 %v1829
        %2196 = vmatpush1.msra.mxu0 %v1828
        %2197 = vmatprep.subr.mxu0 %v1825
        %2198 = vmatpush1.msra.mxu0 %v1824
        %2199 = vmatprep.subr.mxu0 %v1821
        %2200 = vmatpush1.msra.mxu0 %v1820
        %2201 = vmatprep.subr.mxu0 %v1817
        %2202 = vmatpush1.msra.mxu0 %v1816
        %2203 = vmatprep.subr.mxu0 %v1813
        %2204 = vmatpush1.msra.mxu0 %v1812
        %2205 = vmatprep.subr.mxu0 %v1937
        %2206 = vmatpush2.msra.mxu0 %v1936
        %2207 = vmatprep.subr.mxu0 %v1933
        %2208 = vmatpush2.msra.mxu0 %v1932
        %2209 = vmatprep.subr.mxu0 %v1929
        %2210 = vmatpush2.msra.mxu0 %v1928
        %2211 = vmatprep.subr.mxu0 %v1925
        %2212 = vmatpush2.msra.mxu0 %v1924
        %2213 = vmatprep.subr.mxu0 %v1921
        %2214 = vmatpush2.msra.mxu0 %v1920
        %2215 = vmatprep.subr.mxu0 %v1917
        %2216 = vmatpush2.msra.mxu0 %v1916
        %2217 = vmatprep.subr.mxu0 %v1913
        %2218 = vmatpush2.msra.mxu0 %v1912
        %2219 = vmatprep.subr.mxu0 %v1909
        %2220 = vmatpush2.msra.mxu0 %v1908
        %2221 = vmatprep.subr.mxu0 %v1905
        %2222 = vmatpush2.msra.mxu0 %v1904
        %2223 = vmatprep.subr.mxu0 %v1901
        %2224 = vmatpush2.msra.mxu0 %v1900
        %2225 = vmatprep.subr.mxu0 %v1897
        %2226 = vmatpush2.msra.mxu0 %v1896
        %2227 = vmatprep.subr.mxu0 %v1893
        %2228 = vmatpush2.msra.mxu0 %v1892
        %2229 = vmatprep.subr.mxu0 %v1889
        %2230 = vmatpush2.msra.mxu0 %v1888
        %2231 = vmatprep.subr.mxu0 %v1885
        %2232 = vmatpush2.msra.mxu0 %v1884
        %2233 = vmatprep.subr.mxu0 %v1881
        %2234 = vmatpush2.msra.mxu0 %v1880
        %2235 = vmatprep.subr.mxu0 %v1877
        %2236 = vmatpush2.msra.mxu0 %v1876
        %2237 = vmatprep.mubr.f32.mxu0 %v1681
        %2238 = vmatmul.mubr.f32.gmra.mxu0 %v1680
        %v2239 = vpop.f32.mrf.mxu0
        %v2240 = vadd.f32 %v2169, %v2239
        %v2241 = vpop.f32.mrf.mxu0
        %v2242 = vadd.f32 %v2171, %v2241
        %2243 = vdwg.mxu0
        %2244 = vst [vmem:[#allocation4] sm:$0xff] %v2098
        %2245 = vst [vmem:[#allocation4 + $0x8] sm:$0xff] %v2100
        %2246 = vst [vmem:[#allocation4 + $0x10] sm:$0xff] %v2240
        %2247 = vst [vmem:[#allocation4 + $0x18] sm:$0xff] %v2242
        %v2248 = vld [vmem:[%s10] sm:$0xf]
        %v2250 = vlaneseq
        %v2251 = vshrl.u32 %v2250, 7
        %v2252 = vsub.s32 0, %v2251
        %v2253 = vrot.slane %v2248, %v2252
        %v2254 = vlaneseq
        %v2255 = vshrl.u32 %v2254, 7
        %v2256 = vsub.s32 1, %v2255
        %v2257 = vrot.slane %v2248, %v2256
        %v2258 = vlaneseq
        %v2259 = vshrl.u32 %v2258, 7
        %v2260 = vsub.s32 2, %v2259
        %v2261 = vrot.slane %v2248, %v2260
        %v2262 = vlaneseq
        %v2263 = vshrl.u32 %v2262, 7
        %v2264 = vsub.s32 3, %v2263
        %v2265 = vrot.slane %v2248, %v2264
        %v2270 = vld [vmem:[#allocation2] sm:$0xff]
        %v2271 = vld [vmem:[#allocation3] sm:$0xff]
        %v2272 = vld [vmem:[#allocation4] sm:$0xff]
        %vm2273 = vcmask 523264
        %v2275 = vsel %vm2273, %v2270, 0
        %v2278 = vsel %vm2273, %v2271, 0
        %2280 = vmatprep.subr.mxu0 0.0
        %2281 = vmatpush1.xpose.msra.mxu0 0.0
        %2282 = vmatprep.subr.mxu0 0.0
        %2283 = vmatpush1.xpose.msra.mxu0 0.0
        %2284 = vmatprep.subr.mxu0 0.0
        %2285 = vmatpush1.xpose.msra.mxu0 0.0
        %2286 = vmatprep.subr.mxu0 0.0
        %2287 = vmatpush1.xpose.msra.mxu0 0.0
        %2288 = vmatprep.subr.mxu0 0.0
        %2289 = vmatpush1.xpose.msra.mxu0 0.0
        %2290 = vmatprep.subr.mxu0 0.0
        %2291 = vmatpush1.xpose.msra.mxu0 0.0
        %2292 = vmatprep.subr.mxu0 0.0
        %2293 = vmatpush1.xpose.msra.mxu0 0.0
        %2294 = vmatprep.subr.mxu0 0.0
        %2295 = vmatpush1.xpose.msra.mxu0 0.0
        %2296 = vmatprep.subr.mxu0 0.0
        %2297 = vmatpush1.xpose.msra.mxu0 0.0
        %2298 = vmatprep.subr.mxu0 0.0
        %2299 = vmatpush1.xpose.msra.mxu0 0.0
        %2300 = vmatprep.subr.mxu0 0.0
        %2301 = vmatpush1.xpose.msra.mxu0 0.0
        %2302 = vmatprep.subr.mxu0 0.0
        %2303 = vmatpush1.xpose.msra.mxu0 0.0
        %2304 = vmatprep.subr.mxu0 0.0
        %2305 = vmatpush1.xpose.msra.mxu0 0.0
        %2306 = vmatprep.subr.mxu0 0.0
        %2307 = vmatpush1.xpose.msra.mxu0 0.0
        %2308 = vmatprep.subr.mxu0 0.0
        %2309 = vmatpush1.xpose.msra.mxu0 0.0
        %2310 = vmatprep.subr.mxu0 0.0
        %2311 = vmatpush1.xpose.msra.mxu0 %v2278
        %2312 = vmatprep.subr.mxu0 0.0
        %2313 = vmatpush2.xpose.msra.mxu0 0.0
        %2314 = vmatprep.subr.mxu0 0.0
        %2315 = vmatpush2.xpose.msra.mxu0 0.0
        %2316 = vmatprep.subr.mxu0 0.0
        %2317 = vmatpush2.xpose.msra.mxu0 0.0
        %2318 = vmatprep.subr.mxu0 0.0
        %2319 = vmatpush2.xpose.msra.mxu0 0.0
        %2320 = vmatprep.subr.mxu0 0.0
        %2321 = vmatpush2.xpose.msra.mxu0 0.0
        %2322 = vmatprep.subr.mxu0 0.0
        %2323 = vmatpush2.xpose.msra.mxu0 0.0
        %2324 = vmatprep.subr.mxu0 0.0
        %2325 = vmatpush2.xpose.msra.mxu0 0.0
        %2326 = vmatprep.subr.mxu0 0.0
        %2327 = vmatpush2.xpose.msra.mxu0 0.0
        %2328 = vmatprep.subr.mxu0 0.0
        %2329 = vmatpush2.xpose.msra.mxu0 0.0
        %2330 = vmatprep.subr.mxu0 0.0
        %2331 = vmatpush2.xpose.msra.mxu0 0.0
        %2332 = vmatprep.subr.mxu0 0.0
        %2333 = vmatpush2.xpose.msra.mxu0 0.0
        %2334 = vmatprep.subr.mxu0 0.0
        %2335 = vmatpush2.xpose.msra.mxu0 0.0
        %2336 = vmatprep.subr.mxu0 0.0
        %2337 = vmatpush2.xpose.msra.mxu0 0.0
        %2338 = vmatprep.subr.mxu0 0.0
        %2339 = vmatpush2.xpose.msra.mxu0 0.0
        %2340 = vmatprep.subr.mxu0 0.0
        %2341 = vmatpush2.xpose.msra.mxu0 0.0
        %2342 = vmatprep.subr.mxu0 0.0
        %2343 = vmatpush2.xpose.msra.mxu0 0.0
        %2344 = vmatprep.mubr.f32.mxu0 0.0
        %2345 = vmatmul.mubr.f32.gmra.mxu0 %v2275
        %v2346 = vpop.f32.mrf.mxu0
        %v2347 = vadd.f32 0.0, %v2346
        %v2348 = vpop.f32.mrf.mxu0
        %2349 = vdwg.mxu0
        %vm2350 = vcmask 64512
        %v2351 = vsel %vm2350, %v2347, -inf
        %2352 = vmax.xlane.f32.xlu0 %v2351
        %v2353 = vpop.xlane.xlu0 %2352
        %v2354 = vsub.f32 %v2347, %v2353
        %v2355 = vmul.f32 %v2354, 1.442695
        %v2356 = vpow.pop %v2355
        %v2357 = vsel %vm2350, %v2356, 0.0
        %2358 = vadd.xlane.f32.xlu0 %v2357
        %v2359 = vpop.xlane.xlu0 %2358
        %v2360 = vrcp.pop %v2359
        %v2361 = vmul.f32 %v2356, %v2360
        %v2363 = vsel %vm2350, %v2361, 0
        %2365 = vmatprep.subr.mxu0 0.0
        %2366 = vmatpush1.msra.mxu0 0.0
        %2367 = vmatprep.subr.mxu0 0.0
        %2368 = vmatpush1.msra.mxu0 0.0
        %2369 = vmatprep.subr.mxu0 0.0
        %2370 = vmatpush1.msra.mxu0 0.0
        %2371 = vmatprep.subr.mxu0 0.0
        %2372 = vmatpush1.msra.mxu0 0.0
        %2373 = vmatprep.subr.mxu0 0.0
        %2374 = vmatpush1.msra.mxu0 0.0
        %2375 = vmatprep.subr.mxu0 0.0
        %2376 = vmatpush1.msra.mxu0 0.0
        %2377 = vmatprep.subr.mxu0 0.0
        %2378 = vmatpush1.msra.mxu0 0.0
        %2379 = vmatprep.subr.mxu0 0.0
        %2380 = vmatpush1.msra.mxu0 0.0
        %2381 = vmatprep.subr.mxu0 0.0
        %2382 = vmatpush1.msra.mxu0 0.0
        %2383 = vmatprep.subr.mxu0 0.0
        %2384 = vmatpush1.msra.mxu0 0.0
        %2385 = vmatprep.subr.mxu0 0.0
        %2386 = vmatpush1.msra.mxu0 0.0
        %2387 = vmatprep.subr.mxu0 0.0
        %2388 = vmatpush1.msra.mxu0 0.0
        %2389 = vmatprep.subr.mxu0 0.0
        %2390 = vmatpush1.msra.mxu0 0.0
        %2391 = vmatprep.subr.mxu0 0.0
        %2392 = vmatpush1.msra.mxu0 0.0
        %2393 = vmatprep.subr.mxu0 0.0
        %2394 = vmatpush1.msra.mxu0 0.0
        %2395 = vmatprep.subr.mxu0 0.0
        %2396 = vmatpush1.msra.mxu0 %v2272
        %2397 = vmatprep.subr.mxu0 0.0
        %2398 = vmatpush2.msra.mxu0 0.0
        %2399 = vmatprep.subr.mxu0 0.0
        %2400 = vmatpush2.msra.mxu0 0.0
        %2401 = vmatprep.subr.mxu0 0.0
        %2402 = vmatpush2.msra.mxu0 0.0
        %2403 = vmatprep.subr.mxu0 0.0
        %2404 = vmatpush2.msra.mxu0 0.0
        %2405 = vmatprep.subr.mxu0 0.0
        %2406 = vmatpush2.msra.mxu0 0.0
        %2407 = vmatprep.subr.mxu0 0.0
        %2408 = vmatpush2.msra.mxu0 0.0
        %2409 = vmatprep.subr.mxu0 0.0
        %2410 = vmatpush2.msra.mxu0 0.0
        %2411 = vmatprep.subr.mxu0 0.0
        %2412 = vmatpush2.msra.mxu0 0.0
        %2413 = vmatprep.subr.mxu0 0.0
        %2414 = vmatpush2.msra.mxu0 0.0
        %2415 = vmatprep.subr.mxu0 0.0
        %2416 = vmatpush2.msra.mxu0 0.0
        %2417 = vmatprep.subr.mxu0 0.0
        %2418 = vmatpush2.msra.mxu0 0.0
        %2419 = vmatprep.subr.mxu0 0.0
        %2420 = vmatpush2.msra.mxu0 0.0
        %2421 = vmatprep.subr.mxu0 0.0
        %2422 = vmatpush2.msra.mxu0 0.0
        %2423 = vmatprep.subr.mxu0 0.0
        %2424 = vmatpush2.msra.mxu0 0.0
        %2425 = vmatprep.subr.mxu0 0.0
        %2426 = vmatpush2.msra.mxu0 0.0
        %2427 = vmatprep.subr.mxu0 0.0
        %2428 = vmatpush2.msra.mxu0 0.0
        %2429 = vmatprep.mubr.f32.mxu0 0.0
        %2430 = vmatmul.mubr.f32.gmra.mxu0 %v2363
        %v2431 = vpop.f32.mrf.mxu0
        %v2432 = vadd.f32 0.0, %v2431
        %v2433 = vpop.f32.mrf.mxu0
        %2434 = vdwg.mxu0
        %v2435 = vld [vmem:[#allocation16] sm:$0xff]
        %v2436 = vld [vmem:[#allocation16 + $0x8] sm:$0xff]
        %v2437 = vld [vmem:[#allocation16 + $0x10] sm:$0xff]
        %v2438 = vld [vmem:[#allocation16 + $0x18] sm:$0xff]
        %v2439 = vld [vmem:[#allocation16 + $0x20] sm:$0xff]
        %v2440 = vld [vmem:[#allocation16 + $0x28] sm:$0xff]
        %v2441 = vld [vmem:[#allocation16 + $0x30] sm:$0xff]
        %v2442 = vld [vmem:[#allocation16 + $0x38] sm:$0xff]
        %v2443 = vld [vmem:[#allocation16 + $0x40] sm:$0xff]
        %v2444 = vld [vmem:[#allocation16 + $0x48] sm:$0xff]
        %v2445 = vld [vmem:[#allocation16 + $0x50] sm:$0xff]
        %v2446 = vld [vmem:[#allocation16 + $0x58] sm:$0xff]
        %v2447 = vld [vmem:[#allocation16 + $0x60] sm:$0xff]
        %v2448 = vld [vmem:[#allocation16 + $0x68] sm:$0xff]
        %v2449 = vld [vmem:[#allocation16 + $0x70] sm:$0xff]
        %v2450 = vld [vmem:[#allocation16 + $0x78] sm:$0xff]
        %v2451 = vld [vmem:[#allocation16 + $0x80] sm:$0xff]
        %v2452 = vld [vmem:[#allocation16 + $0x88] sm:$0xff]
        %v2453 = vld [vmem:[#allocation16 + $0x90] sm:$0xff]
        %v2454 = vld [vmem:[#allocation16 + $0x98] sm:$0xff]
        %v2455 = vld [vmem:[#allocation16 + $0xa0] sm:$0xff]
        %v2456 = vld [vmem:[#allocation16 + $0xa8] sm:$0xff]
        %v2457 = vld [vmem:[#allocation16 + $0xb0] sm:$0xff]
        %v2458 = vld [vmem:[#allocation16 + $0xb8] sm:$0xff]
        %v2459 = vld [vmem:[#allocation16 + $0xc0] sm:$0xff]
        %v2460 = vld [vmem:[#allocation16 + $0xc8] sm:$0xff]
        %v2461 = vld [vmem:[#allocation16 + $0xd0] sm:$0xff]
        %v2462 = vld [vmem:[#allocation16 + $0xd8] sm:$0xff]
        %v2463 = vld [vmem:[#allocation16 + $0xe0] sm:$0xff]
        %v2464 = vld [vmem:[#allocation16 + $0xe8] sm:$0xff]
        %v2465 = vld [vmem:[#allocation16 + $0xf0] sm:$0xff]
        %v2466 = vld [vmem:[#allocation16 + $0xf8] sm:$0xff]
        %v2468 = vsel %vm2273, %v2432, 0
        %2470 = vmatprep.subr.mxu0 0.0
        %2471 = vmatpush1.msra.mxu0 0.0
        %2472 = vmatprep.subr.mxu0 0.0
        %2473 = vmatpush1.msra.mxu0 0.0
        %2474 = vmatprep.subr.mxu0 0.0
        %2475 = vmatpush1.msra.mxu0 0.0
        %2476 = vmatprep.subr.mxu0 0.0
        %2477 = vmatpush1.msra.mxu0 0.0
        %2478 = vmatprep.subr.mxu0 0.0
        %2479 = vmatpush1.msra.mxu0 0.0
        %2480 = vmatprep.subr.mxu0 0.0
        %2481 = vmatpush1.msra.mxu0 0.0
        %2482 = vmatprep.subr.mxu0 0.0
        %2483 = vmatpush1.msra.mxu0 0.0
        %2484 = vmatprep.subr.mxu0 0.0
        %2485 = vmatpush1.msra.mxu0 0.0
        %2486 = vmatprep.subr.mxu0 %v2464
        %2487 = vmatpush1.msra.mxu0 %v2463
        %2488 = vmatprep.subr.mxu0 %v2460
        %2489 = vmatpush1.msra.mxu0 %v2459
        %2490 = vmatprep.subr.mxu0 %v2456
        %2491 = vmatpush1.msra.mxu0 %v2455
        %2492 = vmatprep.subr.mxu0 %v2452
        %2493 = vmatpush1.msra.mxu0 %v2451
        %2494 = vmatprep.subr.mxu0 %v2448
        %2495 = vmatpush1.msra.mxu0 %v2447
        %2496 = vmatprep.subr.mxu0 %v2444
        %2497 = vmatpush1.msra.mxu0 %v2443
        %2498 = vmatprep.subr.mxu0 %v2440
        %2499 = vmatpush1.msra.mxu0 %v2439
        %2500 = vmatprep.subr.mxu0 %v2436
        %2501 = vmatpush1.msra.mxu0 %v2435
        %2502 = vmatprep.subr.mxu0 0.0
        %2503 = vmatpush2.msra.mxu0 0.0
        %2504 = vmatprep.subr.mxu0 0.0
        %2505 = vmatpush2.msra.mxu0 0.0
        %2506 = vmatprep.subr.mxu0 0.0
        %2507 = vmatpush2.msra.mxu0 0.0
        %2508 = vmatprep.subr.mxu0 0.0
        %2509 = vmatpush2.msra.mxu0 0.0
        %2510 = vmatprep.subr.mxu0 0.0
        %2511 = vmatpush2.msra.mxu0 0.0
        %2512 = vmatprep.subr.mxu0 0.0
        %2513 = vmatpush2.msra.mxu0 0.0
        %2514 = vmatprep.subr.mxu0 0.0
        %2515 = vmatpush2.msra.mxu0 0.0
        %2516 = vmatprep.subr.mxu0 0.0
        %2517 = vmatpush2.msra.mxu0 0.0
        %2518 = vmatprep.subr.mxu0 0.0
        %2519 = vmatpush2.msra.mxu0 0.0
        %2520 = vmatprep.subr.mxu0 0.0
        %2521 = vmatpush2.msra.mxu0 0.0
        %2522 = vmatprep.subr.mxu0 0.0
        %2523 = vmatpush2.msra.mxu0 0.0
        %2524 = vmatprep.subr.mxu0 0.0
        %2525 = vmatpush2.msra.mxu0 0.0
        %2526 = vmatprep.subr.mxu0 0.0
        %2527 = vmatpush2.msra.mxu0 0.0
        %2528 = vmatprep.subr.mxu0 0.0
        %2529 = vmatpush2.msra.mxu0 0.0
        %2530 = vmatprep.subr.mxu0 0.0
        %2531 = vmatpush2.msra.mxu0 0.0
        %2532 = vmatprep.subr.mxu0 0.0
        %2533 = vmatpush2.msra.mxu0 0.0
        %2534 = vmatprep.mubr.f32.mxu0 0.0
        %2535 = vmatmul.mubr.f32.gmra.mxu0 %v2468
        %v2536 = vpop.f32.mrf.mxu0
        %v2537 = vadd.f32 0.0, %v2536
        %v2538 = vpop.f32.mrf.mxu0
        %v2539 = vadd.f32 0.0, %v2538
        %2540 = vdwg.mxu0
        %2541 = vmatprep.subr.mxu0 0.0
        %2542 = vmatpush1.msra.mxu0 0.0
        %2543 = vmatprep.subr.mxu0 0.0
        %2544 = vmatpush1.msra.mxu0 0.0
        %2545 = vmatprep.subr.mxu0 0.0
        %2546 = vmatpush1.msra.mxu0 0.0
        %2547 = vmatprep.subr.mxu0 0.0
        %2548 = vmatpush1.msra.mxu0 0.0
        %2549 = vmatprep.subr.mxu0 0.0
        %2550 = vmatpush1.msra.mxu0 0.0
        %2551 = vmatprep.subr.mxu0 0.0
        %2552 = vmatpush1.msra.mxu0 0.0
        %2553 = vmatprep.subr.mxu0 0.0
        %2554 = vmatpush1.msra.mxu0 0.0
        %2555 = vmatprep.subr.mxu0 0.0
        %2556 = vmatpush1.msra.mxu0 0.0
        %2557 = vmatprep.subr.mxu0 %v2466
        %2558 = vmatpush1.msra.mxu0 %v2465
        %2559 = vmatprep.subr.mxu0 %v2462
        %2560 = vmatpush1.msra.mxu0 %v2461
        %2561 = vmatprep.subr.mxu0 %v2458
        %2562 = vmatpush1.msra.mxu0 %v2457
        %2563 = vmatprep.subr.mxu0 %v2454
        %2564 = vmatpush1.msra.mxu0 %v2453
        %2565 = vmatprep.subr.mxu0 %v2450
        %2566 = vmatpush1.msra.mxu0 %v2449
        %2567 = vmatprep.subr.mxu0 %v2446
        %2568 = vmatpush1.msra.mxu0 %v2445
        %2569 = vmatprep.subr.mxu0 %v2442
        %2570 = vmatpush1.msra.mxu0 %v2441
        %2571 = vmatprep.subr.mxu0 %v2438
        %2572 = vmatpush1.msra.mxu0 %v2437
        %2573 = vmatprep.subr.mxu0 0.0
        %2574 = vmatpush2.msra.mxu0 0.0
        %2575 = vmatprep.subr.mxu0 0.0
        %2576 = vmatpush2.msra.mxu0 0.0
        %2577 = vmatprep.subr.mxu0 0.0
        %2578 = vmatpush2.msra.mxu0 0.0
        %2579 = vmatprep.subr.mxu0 0.0
        %2580 = vmatpush2.msra.mxu0 0.0
        %2581 = vmatprep.subr.mxu0 0.0
        %2582 = vmatpush2.msra.mxu0 0.0
        %2583 = vmatprep.subr.mxu0 0.0
        %2584 = vmatpush2.msra.mxu0 0.0
        %2585 = vmatprep.subr.mxu0 0.0
        %2586 = vmatpush2.msra.mxu0 0.0
        %2587 = vmatprep.subr.mxu0 0.0
        %2588 = vmatpush2.msra.mxu0 0.0
        %2589 = vmatprep.subr.mxu0 0.0
        %2590 = vmatpush2.msra.mxu0 0.0
        %2591 = vmatprep.subr.mxu0 0.0
        %2592 = vmatpush2.msra.mxu0 0.0
        %2593 = vmatprep.subr.mxu0 0.0
        %2594 = vmatpush2.msra.mxu0 0.0
        %2595 = vmatprep.subr.mxu0 0.0
        %2596 = vmatpush2.msra.mxu0 0.0
        %2597 = vmatprep.subr.mxu0 0.0
        %2598 = vmatpush2.msra.mxu0 0.0
        %2599 = vmatprep.subr.mxu0 0.0
        %2600 = vmatpush2.msra.mxu0 0.0
        %2601 = vmatprep.subr.mxu0 0.0
        %2602 = vmatpush2.msra.mxu0 0.0
        %2603 = vmatprep.subr.mxu0 0.0
        %2604 = vmatpush2.msra.mxu0 0.0
        %2605 = vmatprep.mubr.f32.mxu0 0.0
        %2606 = vmatmul.mubr.f32.gmra.mxu0 %v2468
        %v2607 = vpop.f32.mrf.mxu0
        %v2608 = vadd.f32 0.0, %v2607
        %v2609 = vpop.f32.mrf.mxu0
        %v2610 = vadd.f32 0.0, %v2609
        %2611 = vdwg.mxu0
        %v2612 = vadd.f32 %v2253, %v2537
        %v2613 = vadd.f32 %v2257, %v2539
        %v2614 = vadd.f32 %v2261, %v2608
        %v2615 = vadd.f32 %v2265, %v2610
        %2616 = vrot.lane.b32.xlu0 %v2270, 64
        %v2617 = vpop.permute.xlu0 %2616
        %2618 = vrot.lane.b32.xlu0 %v2271, 64
        %v2619 = vpop.permute.xlu0 %2618
        %v2620 = vsel %vm2273, %v2617, 0
        %v2622 = vsel %vm2273, %v2619, 0
        %2624 = vmatprep.subr.mxu0 0.0
        %2625 = vmatpush1.xpose.msra.mxu0 0.0
        %2626 = vmatprep.subr.mxu0 0.0
        %2627 = vmatpush1.xpose.msra.mxu0 0.0
        %2628 = vmatprep.subr.mxu0 0.0
        %2629 = vmatpush1.xpose.msra.mxu0 0.0
        %2630 = vmatprep.subr.mxu0 0.0
        %2631 = vmatpush1.xpose.msra.mxu0 0.0
        %2632 = vmatprep.subr.mxu0 0.0
        %2633 = vmatpush1.xpose.msra.mxu0 0.0
        %2634 = vmatprep.subr.mxu0 0.0
        %2635 = vmatpush1.xpose.msra.mxu0 0.0
        %2636 = vmatprep.subr.mxu0 0.0
        %2637 = vmatpush1.xpose.msra.mxu0 0.0
        %2638 = vmatprep.subr.mxu0 0.0
        %2639 = vmatpush1.xpose.msra.mxu0 0.0
        %2640 = vmatprep.subr.mxu0 0.0
        %2641 = vmatpush1.xpose.msra.mxu0 0.0
        %2642 = vmatprep.subr.mxu0 0.0
        %2643 = vmatpush1.xpose.msra.mxu0 0.0
        %2644 = vmatprep.subr.mxu0 0.0
        %2645 = vmatpush1.xpose.msra.mxu0 0.0
        %2646 = vmatprep.subr.mxu0 0.0
        %2647 = vmatpush1.xpose.msra.mxu0 0.0
        %2648 = vmatprep.subr.mxu0 0.0
        %2649 = vmatpush1.xpose.msra.mxu0 0.0
        %2650 = vmatprep.subr.mxu0 0.0
        %2651 = vmatpush1.xpose.msra.mxu0 0.0
        %2652 = vmatprep.subr.mxu0 0.0
        %2653 = vmatpush1.xpose.msra.mxu0 0.0
        %2654 = vmatprep.subr.mxu0 0.0
        %2655 = vmatpush1.xpose.msra.mxu0 %v2622
        %2656 = vmatprep.subr.mxu0 0.0
        %2657 = vmatpush2.xpose.msra.mxu0 0.0
        %2658 = vmatprep.subr.mxu0 0.0
        %2659 = vmatpush2.xpose.msra.mxu0 0.0
        %2660 = vmatprep.subr.mxu0 0.0
        %2661 = vmatpush2.xpose.msra.mxu0 0.0
        %2662 = vmatprep.subr.mxu0 0.0
        %2663 = vmatpush2.xpose.msra.mxu0 0.0
        %2664 = vmatprep.subr.mxu0 0.0
        %2665 = vmatpush2.xpose.msra.mxu0 0.0
        %2666 = vmatprep.subr.mxu0 0.0
        %2667 = vmatpush2.xpose.msra.mxu0 0.0
        %2668 = vmatprep.subr.mxu0 0.0
        %2669 = vmatpush2.xpose.msra.mxu0 0.0
        %2670 = vmatprep.subr.mxu0 0.0
        %2671 = vmatpush2.xpose.msra.mxu0 0.0
        %2672 = vmatprep.subr.mxu0 0.0
        %2673 = vmatpush2.xpose.msra.mxu0 0.0
        %2674 = vmatprep.subr.mxu0 0.0
        %2675 = vmatpush2.xpose.msra.mxu0 0.0
        %2676 = vmatprep.subr.mxu0 0.0
        %2677 = vmatpush2.xpose.msra.mxu0 0.0
        %2678 = vmatprep.subr.mxu0 0.0
        %2679 = vmatpush2.xpose.msra.mxu0 0.0
        %2680 = vmatprep.subr.mxu0 0.0
        %2681 = vmatpush2.xpose.msra.mxu0 0.0
        %2682 = vmatprep.subr.mxu0 0.0
        %2683 = vmatpush2.xpose.msra.mxu0 0.0
        %2684 = vmatprep.subr.mxu0 0.0
        %2685 = vmatpush2.xpose.msra.mxu0 0.0
        %2686 = vmatprep.subr.mxu0 0.0
        %2687 = vmatpush2.xpose.msra.mxu0 0.0
        %2688 = vmatprep.mubr.f32.mxu0 0.0
        %2689 = vmatmul.mubr.f32.gmra.mxu0 %v2620
        %v2690 = vpop.f32.mrf.mxu0
        %v2691 = vadd.f32 0.0, %v2690
        %v2692 = vpop.f32.mrf.mxu0
        %2693 = vdwg.mxu0
        %v2694 = vsel %vm2350, %v2691, -inf
        %2695 = vmax.xlane.f32.xlu0 %v2694
        %v2696 = vpop.xlane.xlu0 %2695
        %v2697 = vsub.f32 %v2691, %v2696
        %v2698 = vmul.f32 %v2697, 1.442695
        %v2699 = vpow.pop %v2698
        %v2700 = vsel %vm2350, %v2699, 0.0
        %2701 = vadd.xlane.f32.xlu0 %v2700
        %v2702 = vpop.xlane.xlu0 %2701
        %v2703 = vrcp.pop %v2702
        %v2704 = vmul.f32 %v2699, %v2703
        %2706 = vrot.lane.b32.xlu0 %v2272, 64
        %v2707 = vpop.permute.xlu0 %2706
        %v2710 = vsel %vm2350, %v2704, 0
        %2712 = vmatprep.subr.mxu0 0.0
        %2713 = vmatpush1.msra.mxu0 0.0
        %2714 = vmatprep.subr.mxu0 0.0
        %2715 = vmatpush1.msra.mxu0 0.0
        %2716 = vmatprep.subr.mxu0 0.0
        %2717 = vmatpush1.msra.mxu0 0.0
        %2718 = vmatprep.subr.mxu0 0.0
        %2719 = vmatpush1.msra.mxu0 0.0
        %2720 = vmatprep.subr.mxu0 0.0
        %2721 = vmatpush1.msra.mxu0 0.0
        %2722 = vmatprep.subr.mxu0 0.0
        %2723 = vmatpush1.msra.mxu0 0.0
        %2724 = vmatprep.subr.mxu0 0.0
        %2725 = vmatpush1.msra.mxu0 0.0
        %2726 = vmatprep.subr.mxu0 0.0
        %2727 = vmatpush1.msra.mxu0 0.0
        %2728 = vmatprep.subr.mxu0 0.0
        %2729 = vmatpush1.msra.mxu0 0.0
        %2730 = vmatprep.subr.mxu0 0.0
        %2731 = vmatpush1.msra.mxu0 0.0
        %2732 = vmatprep.subr.mxu0 0.0
        %2733 = vmatpush1.msra.mxu0 0.0
        %2734 = vmatprep.subr.mxu0 0.0
        %2735 = vmatpush1.msra.mxu0 0.0
        %2736 = vmatprep.subr.mxu0 0.0
        %2737 = vmatpush1.msra.mxu0 0.0
        %2738 = vmatprep.subr.mxu0 0.0
        %2739 = vmatpush1.msra.mxu0 0.0
        %2740 = vmatprep.subr.mxu0 0.0
        %2741 = vmatpush1.msra.mxu0 0.0
        %2742 = vmatprep.subr.mxu0 0.0
        %2743 = vmatpush1.msra.mxu0 %v2707
        %2744 = vmatprep.subr.mxu0 0.0
        %2745 = vmatpush2.msra.mxu0 0.0
        %2746 = vmatprep.subr.mxu0 0.0
        %2747 = vmatpush2.msra.mxu0 0.0
        %2748 = vmatprep.subr.mxu0 0.0
        %2749 = vmatpush2.msra.mxu0 0.0
        %2750 = vmatprep.subr.mxu0 0.0
        %2751 = vmatpush2.msra.mxu0 0.0
        %2752 = vmatprep.subr.mxu0 0.0
        %2753 = vmatpush2.msra.mxu0 0.0
        %2754 = vmatprep.subr.mxu0 0.0
        %2755 = vmatpush2.msra.mxu0 0.0
        %2756 = vmatprep.subr.mxu0 0.0
        %2757 = vmatpush2.msra.mxu0 0.0
        %2758 = vmatprep.subr.mxu0 0.0
        %2759 = vmatpush2.msra.mxu0 0.0
        %2760 = vmatprep.subr.mxu0 0.0
        %2761 = vmatpush2.msra.mxu0 0.0
        %2762 = vmatprep.subr.mxu0 0.0
        %2763 = vmatpush2.msra.mxu0 0.0
        %2764 = vmatprep.subr.mxu0 0.0
        %2765 = vmatpush2.msra.mxu0 0.0
        %2766 = vmatprep.subr.mxu0 0.0
        %2767 = vmatpush2.msra.mxu0 0.0
        %2768 = vmatprep.subr.mxu0 0.0
        %2769 = vmatpush2.msra.mxu0 0.0
        %2770 = vmatprep.subr.mxu0 0.0
        %2771 = vmatpush2.msra.mxu0 0.0
        %2772 = vmatprep.subr.mxu0 0.0
        %2773 = vmatpush2.msra.mxu0 0.0
        %2774 = vmatprep.subr.mxu0 0.0
        %2775 = vmatpush2.msra.mxu0 0.0
        %2776 = vmatprep.mubr.f32.mxu0 0.0
        %2777 = vmatmul.mubr.f32.gmra.mxu0 %v2710
        %v2778 = vpop.f32.mrf.mxu0
        %v2779 = vadd.f32 0.0, %v2778
        %v2780 = vpop.f32.mrf.mxu0
        %2781 = vdwg.mxu0
        %v2782 = vld [vmem:[#allocation16 + $0x100] sm:$0xff]
        %v2783 = vld [vmem:[#allocation16 + $0x108] sm:$0xff]
        %v2784 = vld [vmem:[#allocation16 + $0x110] sm:$0xff]
        %v2785 = vld [vmem:[#allocation16 + $0x118] sm:$0xff]
        %v2786 = vld [vmem:[#allocation16 + $0x120] sm:$0xff]
        %v2787 = vld [vmem:[#allocation16 + $0x128] sm:$0xff]
        %v2788 = vld [vmem:[#allocation16 + $0x130] sm:$0xff]
        %v2789 = vld [vmem:[#allocation16 + $0x138] sm:$0xff]
        %v2790 = vld [vmem:[#allocation16 + $0x140] sm:$0xff]
        %v2791 = vld [vmem:[#allocation16 + $0x148] sm:$0xff]
        %v2792 = vld [vmem:[#allocation16 + $0x150] sm:$0xff]
        %v2793 = vld [vmem:[#allocation16 + $0x158] sm:$0xff]
        %v2794 = vld [vmem:[#allocation16 + $0x160] sm:$0xff]
        %v2795 = vld [vmem:[#allocation16 + $0x168] sm:$0xff]
        %v2796 = vld [vmem:[#allocation16 + $0x170] sm:$0xff]
        %v2797 = vld [vmem:[#allocation16 + $0x178] sm:$0xff]
        %v2798 = vld [vmem:[#allocation16 + $0x180] sm:$0xff]
        %v2799 = vld [vmem:[#allocation16 + $0x188] sm:$0xff]
        %v2800 = vld [vmem:[#allocation16 + $0x190] sm:$0xff]
        %v2801 = vld [vmem:[#allocation16 + $0x198] sm:$0xff]
        %v2802 = vld [vmem:[#allocation16 + $0x1a0] sm:$0xff]
        %v2803 = vld [vmem:[#allocation16 + $0x1a8] sm:$0xff]
        %v2804 = vld [vmem:[#allocation16 + $0x1b0] sm:$0xff]
        %v2805 = vld [vmem:[#allocation16 + $0x1b8] sm:$0xff]
        %v2806 = vld [vmem:[#allocation16 + $0x1c0] sm:$0xff]
        %v2807 = vld [vmem:[#allocation16 + $0x1c8] sm:$0xff]
        %v2808 = vld [vmem:[#allocation16 + $0x1d0] sm:$0xff]
        %v2809 = vld [vmem:[#allocation16 + $0x1d8] sm:$0xff]
        %v2810 = vld [vmem:[#allocation16 + $0x1e0] sm:$0xff]
        %v2811 = vld [vmem:[#allocation16 + $0x1e8] sm:$0xff]
        %v2812 = vld [vmem:[#allocation16 + $0x1f0] sm:$0xff]
        %v2813 = vld [vmem:[#allocation16 + $0x1f8] sm:$0xff]
        %v2815 = vsel %vm2273, %v2779, 0
        %2817 = vmatprep.subr.mxu0 0.0
        %2818 = vmatpush1.msra.mxu0 0.0
        %2819 = vmatprep.subr.mxu0 0.0
        %2820 = vmatpush1.msra.mxu0 0.0
        %2821 = vmatprep.subr.mxu0 0.0
        %2822 = vmatpush1.msra.mxu0 0.0
        %2823 = vmatprep.subr.mxu0 0.0
        %2824 = vmatpush1.msra.mxu0 0.0
        %2825 = vmatprep.subr.mxu0 0.0
        %2826 = vmatpush1.msra.mxu0 0.0
        %2827 = vmatprep.subr.mxu0 0.0
        %2828 = vmatpush1.msra.mxu0 0.0
        %2829 = vmatprep.subr.mxu0 0.0
        %2830 = vmatpush1.msra.mxu0 0.0
        %2831 = vmatprep.subr.mxu0 0.0
        %2832 = vmatpush1.msra.mxu0 0.0
        %2833 = vmatprep.subr.mxu0 %v2811
        %2834 = vmatpush1.msra.mxu0 %v2810
        %2835 = vmatprep.subr.mxu0 %v2807
        %2836 = vmatpush1.msra.mxu0 %v2806
        %2837 = vmatprep.subr.mxu0 %v2803
        %2838 = vmatpush1.msra.mxu0 %v2802
        %2839 = vmatprep.subr.mxu0 %v2799
        %2840 = vmatpush1.msra.mxu0 %v2798
        %2841 = vmatprep.subr.mxu0 %v2795
        %2842 = vmatpush1.msra.mxu0 %v2794
        %2843 = vmatprep.subr.mxu0 %v2791
        %2844 = vmatpush1.msra.mxu0 %v2790
        %2845 = vmatprep.subr.mxu0 %v2787
        %2846 = vmatpush1.msra.mxu0 %v2786
        %2847 = vmatprep.subr.mxu0 %v2783
        %2848 = vmatpush1.msra.mxu0 %v2782
        %2849 = vmatprep.subr.mxu0 0.0
        %2850 = vmatpush2.msra.mxu0 0.0
        %2851 = vmatprep.subr.mxu0 0.0
        %2852 = vmatpush2.msra.mxu0 0.0
        %2853 = vmatprep.subr.mxu0 0.0
        %2854 = vmatpush2.msra.mxu0 0.0
        %2855 = vmatprep.subr.mxu0 0.0
        %2856 = vmatpush2.msra.mxu0 0.0
        %2857 = vmatprep.subr.mxu0 0.0
        %2858 = vmatpush2.msra.mxu0 0.0
        %2859 = vmatprep.subr.mxu0 0.0
        %2860 = vmatpush2.msra.mxu0 0.0
        %2861 = vmatprep.subr.mxu0 0.0
        %2862 = vmatpush2.msra.mxu0 0.0
        %2863 = vmatprep.subr.mxu0 0.0
        %2864 = vmatpush2.msra.mxu0 0.0
        %2865 = vmatprep.subr.mxu0 0.0
        %2866 = vmatpush2.msra.mxu0 0.0
        %2867 = vmatprep.subr.mxu0 0.0
        %2868 = vmatpush2.msra.mxu0 0.0
        %2869 = vmatprep.subr.mxu0 0.0
        %2870 = vmatpush2.msra.mxu0 0.0
        %2871 = vmatprep.subr.mxu0 0.0
        %2872 = vmatpush2.msra.mxu0 0.0
        %2873 = vmatprep.subr.mxu0 0.0
        %2874 = vmatpush2.msra.mxu0 0.0
        %2875 = vmatprep.subr.mxu0 0.0
        %2876 = vmatpush2.msra.mxu0 0.0
        %2877 = vmatprep.subr.mxu0 0.0
        %2878 = vmatpush2.msra.mxu0 0.0
        %2879 = vmatprep.subr.mxu0 0.0
        %2880 = vmatpush2.msra.mxu0 0.0
        %2881 = vmatprep.mubr.f32.mxu0 0.0
        %2882 = vmatmul.mubr.f32.gmra.mxu0 %v2815
        %v2883 = vpop.f32.mrf.mxu0
        %v2884 = vadd.f32 0.0, %v2883
        %v2885 = vpop.f32.mrf.mxu0
        %v2886 = vadd.f32 0.0, %v2885
        %2887 = vdwg.mxu0
        %2888 = vmatprep.subr.mxu0 0.0
        %2889 = vmatpush1.msra.mxu0 0.0
        %2890 = vmatprep.subr.mxu0 0.0
        %2891 = vmatpush1.msra.mxu0 0.0
        %2892 = vmatprep.subr.mxu0 0.0
        %2893 = vmatpush1.msra.mxu0 0.0
        %2894 = vmatprep.subr.mxu0 0.0
        %2895 = vmatpush1.msra.mxu0 0.0
        %2896 = vmatprep.subr.mxu0 0.0
        %2897 = vmatpush1.msra.mxu0 0.0
        %2898 = vmatprep.subr.mxu0 0.0
        %2899 = vmatpush1.msra.mxu0 0.0
        %2900 = vmatprep.subr.mxu0 0.0
        %2901 = vmatpush1.msra.mxu0 0.0
        %2902 = vmatprep.subr.mxu0 0.0
        %2903 = vmatpush1.msra.mxu0 0.0
        %2904 = vmatprep.subr.mxu0 %v2813
        %2905 = vmatpush1.msra.mxu0 %v2812
        %2906 = vmatprep.subr.mxu0 %v2809
        %2907 = vmatpush1.msra.mxu0 %v2808
        %2908 = vmatprep.subr.mxu0 %v2805
        %2909 = vmatpush1.msra.mxu0 %v2804
        %2910 = vmatprep.subr.mxu0 %v2801
        %2911 = vmatpush1.msra.mxu0 %v2800
        %2912 = vmatprep.subr.mxu0 %v2797
        %2913 = vmatpush1.msra.mxu0 %v2796
        %2914 = vmatprep.subr.mxu0 %v2793
        %2915 = vmatpush1.msra.mxu0 %v2792
        %2916 = vmatprep.subr.mxu0 %v2789
        %2917 = vmatpush1.msra.mxu0 %v2788
        %2918 = vmatprep.subr.mxu0 %v2785
        %2919 = vmatpush1.msra.mxu0 %v2784
        %2920 = vmatprep.subr.mxu0 0.0
        %2921 = vmatpush2.msra.mxu0 0.0
        %2922 = vmatprep.subr.mxu0 0.0
        %2923 = vmatpush2.msra.mxu0 0.0
        %2924 = vmatprep.subr.mxu0 0.0
        %2925 = vmatpush2.msra.mxu0 0.0
        %2926 = vmatprep.subr.mxu0 0.0
        %2927 = vmatpush2.msra.mxu0 0.0
        %2928 = vmatprep.subr.mxu0 0.0
        %2929 = vmatpush2.msra.mxu0 0.0
        %2930 = vmatprep.subr.mxu0 0.0
        %2931 = vmatpush2.msra.mxu0 0.0
        %2932 = vmatprep.subr.mxu0 0.0
        %2933 = vmatpush2.msra.mxu0 0.0
        %2934 = vmatprep.subr.mxu0 0.0
        %2935 = vmatpush2.msra.mxu0 0.0
        %2936 = vmatprep.subr.mxu0 0.0
        %2937 = vmatpush2.msra.mxu0 0.0
        %2938 = vmatprep.subr.mxu0 0.0
        %2939 = vmatpush2.msra.mxu0 0.0
        %2940 = vmatprep.subr.mxu0 0.0
        %2941 = vmatpush2.msra.mxu0 0.0
        %2942 = vmatprep.subr.mxu0 0.0
        %2943 = vmatpush2.msra.mxu0 0.0
        %2944 = vmatprep.subr.mxu0 0.0
        %2945 = vmatpush2.msra.mxu0 0.0
        %2946 = vmatprep.subr.mxu0 0.0
        %2947 = vmatpush2.msra.mxu0 0.0
        %2948 = vmatprep.subr.mxu0 0.0
        %2949 = vmatpush2.msra.mxu0 0.0
        %2950 = vmatprep.subr.mxu0 0.0
        %2951 = vmatpush2.msra.mxu0 0.0
        %2952 = vmatprep.mubr.f32.mxu0 0.0
        %2953 = vmatmul.mubr.f32.gmra.mxu0 %v2815
        %v2954 = vpop.f32.mrf.mxu0
        %v2955 = vadd.f32 0.0, %v2954
        %v2956 = vpop.f32.mrf.mxu0
        %v2957 = vadd.f32 0.0, %v2956
        %2958 = vdwg.mxu0
        %v2959 = vadd.f32 %v2612, %v2884
        %v2960 = vadd.f32 %v2613, %v2886
        %v2961 = vadd.f32 %v2614, %v2955
        %v2962 = vadd.f32 %v2615, %v2957
        %v2963 = vld [vmem:[#allocation2 + $0x8] sm:$0xff]
        %v2964 = vld [vmem:[#allocation3 + $0x8] sm:$0xff]
        %v2965 = vld [vmem:[#allocation4 + $0x8] sm:$0xff]
        %v2967 = vsel %vm2273, %v2963, 0
        %v2970 = vsel %vm2273, %v2964, 0
        %2972 = vmatprep.subr.mxu0 0.0
        %2973 = vmatpush1.xpose.msra.mxu0 0.0
        %2974 = vmatprep.subr.mxu0 0.0
        %2975 = vmatpush1.xpose.msra.mxu0 0.0
        %2976 = vmatprep.subr.mxu0 0.0
        %2977 = vmatpush1.xpose.msra.mxu0 0.0
        %2978 = vmatprep.subr.mxu0 0.0
        %2979 = vmatpush1.xpose.msra.mxu0 0.0
        %2980 = vmatprep.subr.mxu0 0.0
        %2981 = vmatpush1.xpose.msra.mxu0 0.0
        %2982 = vmatprep.subr.mxu0 0.0
        %2983 = vmatpush1.xpose.msra.mxu0 0.0
        %2984 = vmatprep.subr.mxu0 0.0
        %2985 = vmatpush1.xpose.msra.mxu0 0.0
        %2986 = vmatprep.subr.mxu0 0.0
        %2987 = vmatpush1.xpose.msra.mxu0 0.0
        %2988 = vmatprep.subr.mxu0 0.0
        %2989 = vmatpush1.xpose.msra.mxu0 0.0
        %2990 = vmatprep.subr.mxu0 0.0
        %2991 = vmatpush1.xpose.msra.mxu0 0.0
        %2992 = vmatprep.subr.mxu0 0.0
        %2993 = vmatpush1.xpose.msra.mxu0 0.0
        %2994 = vmatprep.subr.mxu0 0.0
        %2995 = vmatpush1.xpose.msra.mxu0 0.0
        %2996 = vmatprep.subr.mxu0 0.0
        %2997 = vmatpush1.xpose.msra.mxu0 0.0
        %2998 = vmatprep.subr.mxu0 0.0
        %2999 = vmatpush1.xpose.msra.mxu0 0.0
        %3000 = vmatprep.subr.mxu0 0.0
        %3001 = vmatpush1.xpose.msra.mxu0 0.0
        %3002 = vmatprep.subr.mxu0 0.0
        %3003 = vmatpush1.xpose.msra.mxu0 %v2970
        %3004 = vmatprep.subr.mxu0 0.0
        %3005 = vmatpush2.xpose.msra.mxu0 0.0
        %3006 = vmatprep.subr.mxu0 0.0
        %3007 = vmatpush2.xpose.msra.mxu0 0.0
        %3008 = vmatprep.subr.mxu0 0.0
        %3009 = vmatpush2.xpose.msra.mxu0 0.0
        %3010 = vmatprep.subr.mxu0 0.0
        %3011 = vmatpush2.xpose.msra.mxu0 0.0
        %3012 = vmatprep.subr.mxu0 0.0
        %3013 = vmatpush2.xpose.msra.mxu0 0.0
        %3014 = vmatprep.subr.mxu0 0.0
        %3015 = vmatpush2.xpose.msra.mxu0 0.0
        %3016 = vmatprep.subr.mxu0 0.0
        %3017 = vmatpush2.xpose.msra.mxu0 0.0
        %3018 = vmatprep.subr.mxu0 0.0
        %3019 = vmatpush2.xpose.msra.mxu0 0.0
        %3020 = vmatprep.subr.mxu0 0.0
        %3021 = vmatpush2.xpose.msra.mxu0 0.0
        %3022 = vmatprep.subr.mxu0 0.0
        %3023 = vmatpush2.xpose.msra.mxu0 0.0
        %3024 = vmatprep.subr.mxu0 0.0
        %3025 = vmatpush2.xpose.msra.mxu0 0.0
        %3026 = vmatprep.subr.mxu0 0.0
        %3027 = vmatpush2.xpose.msra.mxu0 0.0
        %3028 = vmatprep.subr.mxu0 0.0
        %3029 = vmatpush2.xpose.msra.mxu0 0.0
        %3030 = vmatprep.subr.mxu0 0.0
        %3031 = vmatpush2.xpose.msra.mxu0 0.0
        %3032 = vmatprep.subr.mxu0 0.0
        %3033 = vmatpush2.xpose.msra.mxu0 0.0
        %3034 = vmatprep.subr.mxu0 0.0
        %3035 = vmatpush2.xpose.msra.mxu0 0.0
        %3036 = vmatprep.mubr.f32.mxu0 0.0
        %3037 = vmatmul.mubr.f32.gmra.mxu0 %v2967
        %v3038 = vpop.f32.mrf.mxu0
        %v3039 = vadd.f32 0.0, %v3038
        %v3040 = vpop.f32.mrf.mxu0
        %3041 = vdwg.mxu0
        %v3042 = vsel %vm2350, %v3039, -inf
        %3043 = vmax.xlane.f32.xlu0 %v3042
        %v3044 = vpop.xlane.xlu0 %3043
        %v3045 = vsub.f32 %v3039, %v3044
        %v3046 = vmul.f32 %v3045, 1.442695
        %v3047 = vpow.pop %v3046
        %v3048 = vsel %vm2350, %v3047, 0.0
        %3049 = vadd.xlane.f32.xlu0 %v3048
        %v3050 = vpop.xlane.xlu0 %3049
        %v3051 = vrcp.pop %v3050
        %v3052 = vmul.f32 %v3047, %v3051
        %v3054 = vsel %vm2350, %v3052, 0
        %3056 = vmatprep.subr.mxu0 0.0
        %3057 = vmatpush1.msra.mxu0 0.0
        %3058 = vmatprep.subr.mxu0 0.0
        %3059 = vmatpush1.msra.mxu0 0.0
        %3060 = vmatprep.subr.mxu0 0.0
        %3061 = vmatpush1.msra.mxu0 0.0
        %3062 = vmatprep.subr.mxu0 0.0
        %3063 = vmatpush1.msra.mxu0 0.0
        %3064 = vmatprep.subr.mxu0 0.0
        %3065 = vmatpush1.msra.mxu0 0.0
        %3066 = vmatprep.subr.mxu0 0.0
        %3067 = vmatpush1.msra.mxu0 0.0
        %3068 = vmatprep.subr.mxu0 0.0
        %3069 = vmatpush1.msra.mxu0 0.0
        %3070 = vmatprep.subr.mxu0 0.0
        %3071 = vmatpush1.msra.mxu0 0.0
        %3072 = vmatprep.subr.mxu0 0.0
        %3073 = vmatpush1.msra.mxu0 0.0
        %3074 = vmatprep.subr.mxu0 0.0
        %3075 = vmatpush1.msra.mxu0 0.0
        %3076 = vmatprep.subr.mxu0 0.0
        %3077 = vmatpush1.msra.mxu0 0.0
        %3078 = vmatprep.subr.mxu0 0.0
        %3079 = vmatpush1.msra.mxu0 0.0
        %3080 = vmatprep.subr.mxu0 0.0
        %3081 = vmatpush1.msra.mxu0 0.0
        %3082 = vmatprep.subr.mxu0 0.0
        %3083 = vmatpush1.msra.mxu0 0.0
        %3084 = vmatprep.subr.mxu0 0.0
        %3085 = vmatpush1.msra.mxu0 0.0
        %3086 = vmatprep.subr.mxu0 0.0
        %3087 = vmatpush1.msra.mxu0 %v2965
        %3088 = vmatprep.subr.mxu0 0.0
        %3089 = vmatpush2.msra.mxu0 0.0
        %3090 = vmatprep.subr.mxu0 0.0
        %3091 = vmatpush2.msra.mxu0 0.0
        %3092 = vmatprep.subr.mxu0 0.0
        %3093 = vmatpush2.msra.mxu0 0.0
        %3094 = vmatprep.subr.mxu0 0.0
        %3095 = vmatpush2.msra.mxu0 0.0
        %3096 = vmatprep.subr.mxu0 0.0
        %3097 = vmatpush2.msra.mxu0 0.0
        %3098 = vmatprep.subr.mxu0 0.0
        %3099 = vmatpush2.msra.mxu0 0.0
        %3100 = vmatprep.subr.mxu0 0.0
        %3101 = vmatpush2.msra.mxu0 0.0
        %3102 = vmatprep.subr.mxu0 0.0
        %3103 = vmatpush2.msra.mxu0 0.0
        %3104 = vmatprep.subr.mxu0 0.0
        %3105 = vmatpush2.msra.mxu0 0.0
        %3106 = vmatprep.subr.mxu0 0.0
        %3107 = vmatpush2.msra.mxu0 0.0
        %3108 = vmatprep.subr.mxu0 0.0
        %3109 = vmatpush2.msra.mxu0 0.0
        %3110 = vmatprep.subr.mxu0 0.0
        %3111 = vmatpush2.msra.mxu0 0.0
        %3112 = vmatprep.subr.mxu0 0.0
        %3113 = vmatpush2.msra.mxu0 0.0
        %3114 = vmatprep.subr.mxu0 0.0
        %3115 = vmatpush2.msra.mxu0 0.0
        %3116 = vmatprep.subr.mxu0 0.0
        %3117 = vmatpush2.msra.mxu0 0.0
        %3118 = vmatprep.subr.mxu0 0.0
        %3119 = vmatpush2.msra.mxu0 0.0
        %3120 = vmatprep.mubr.f32.mxu0 0.0
        %3121 = vmatmul.mubr.f32.gmra.mxu0 %v3054
        %v3122 = vpop.f32.mrf.mxu0
        %v3123 = vadd.f32 0.0, %v3122
        %v3124 = vpop.f32.mrf.mxu0
        %3125 = vdwg.mxu0
        %v3126 = vld [vmem:[#allocation16 + $0x200] sm:$0xff]
        %v3127 = vld [vmem:[#allocation16 + $0x208] sm:$0xff]
        %v3128 = vld [vmem:[#allocation16 + $0x210] sm:$0xff]
        %v3129 = vld [vmem:[#allocation16 + $0x218] sm:$0xff]
        %v3130 = vld [vmem:[#allocation16 + $0x220] sm:$0xff]
        %v3131 = vld [vmem:[#allocation16 + $0x228] sm:$0xff]
        %v3132 = vld [vmem:[#allocation16 + $0x230] sm:$0xff]
        %v3133 = vld [vmem:[#allocation16 + $0x238] sm:$0xff]
        %v3134 = vld [vmem:[#allocation16 + $0x240] sm:$0xff]
        %v3135 = vld [vmem:[#allocation16 + $0x248] sm:$0xff]
        %v3136 = vld [vmem:[#allocation16 + $0x250] sm:$0xff]
        %v3137 = vld [vmem:[#allocation16 + $0x258] sm:$0xff]
        %v3138 = vld [vmem:[#allocation16 + $0x260] sm:$0xff]
        %v3139 = vld [vmem:[#allocation16 + $0x268] sm:$0xff]
        %v3140 = vld [vmem:[#allocation16 + $0x270] sm:$0xff]
        %v3141 = vld [vmem:[#allocation16 + $0x278] sm:$0xff]
        %v3142 = vld [vmem:[#allocation16 + $0x280] sm:$0xff]
        %v3143 = vld [vmem:[#allocation16 + $0x288] sm:$0xff]
        %v3144 = vld [vmem:[#allocation16 + $0x290] sm:$0xff]
        %v3145 = vld [vmem:[#allocation16 + $0x298] sm:$0xff]
        %v3146 = vld [vmem:[#allocation16 + $0x2a0] sm:$0xff]
        %v3147 = vld [vmem:[#allocation16 + $0x2a8] sm:$0xff]
        %v3148 = vld [vmem:[#allocation16 + $0x2b0] sm:$0xff]
        %v3149 = vld [vmem:[#allocation16 + $0x2b8] sm:$0xff]
        %v3150 = vld [vmem:[#allocation16 + $0x2c0] sm:$0xff]
        %v3151 = vld [vmem:[#allocation16 + $0x2c8] sm:$0xff]
        %v3152 = vld [vmem:[#allocation16 + $0x2d0] sm:$0xff]
        %v3153 = vld [vmem:[#allocation16 + $0x2d8] sm:$0xff]
        %v3154 = vld [vmem:[#allocation16 + $0x2e0] sm:$0xff]
        %v3155 = vld [vmem:[#allocation16 + $0x2e8] sm:$0xff]
        %v3156 = vld [vmem:[#allocation16 + $0x2f0] sm:$0xff]
        %v3157 = vld [vmem:[#allocation16 + $0x2f8] sm:$0xff]
        %v3159 = vsel %vm2273, %v3123, 0
        %3161 = vmatprep.subr.mxu0 0.0
        %3162 = vmatpush1.msra.mxu0 0.0
        %3163 = vmatprep.subr.mxu0 0.0
        %3164 = vmatpush1.msra.mxu0 0.0
        %3165 = vmatprep.subr.mxu0 0.0
        %3166 = vmatpush1.msra.mxu0 0.0
        %3167 = vmatprep.subr.mxu0 0.0
        %3168 = vmatpush1.msra.mxu0 0.0
        %3169 = vmatprep.subr.mxu0 0.0
        %3170 = vmatpush1.msra.mxu0 0.0
        %3171 = vmatprep.subr.mxu0 0.0
        %3172 = vmatpush1.msra.mxu0 0.0
        %3173 = vmatprep.subr.mxu0 0.0
        %3174 = vmatpush1.msra.mxu0 0.0
        %3175 = vmatprep.subr.mxu0 0.0
        %3176 = vmatpush1.msra.mxu0 0.0
        %3177 = vmatprep.subr.mxu0 %v3155
        %3178 = vmatpush1.msra.mxu0 %v3154
        %3179 = vmatprep.subr.mxu0 %v3151
        %3180 = vmatpush1.msra.mxu0 %v3150
        %3181 = vmatprep.subr.mxu0 %v3147
        %3182 = vmatpush1.msra.mxu0 %v3146
        %3183 = vmatprep.subr.mxu0 %v3143
        %3184 = vmatpush1.msra.mxu0 %v3142
        %3185 = vmatprep.subr.mxu0 %v3139
        %3186 = vmatpush1.msra.mxu0 %v3138
        %3187 = vmatprep.subr.mxu0 %v3135
        %3188 = vmatpush1.msra.mxu0 %v3134
        %3189 = vmatprep.subr.mxu0 %v3131
        %3190 = vmatpush1.msra.mxu0 %v3130
        %3191 = vmatprep.subr.mxu0 %v3127
        %3192 = vmatpush1.msra.mxu0 %v3126
        %3193 = vmatprep.subr.mxu0 0.0
        %3194 = vmatpush2.msra.mxu0 0.0
        %3195 = vmatprep.subr.mxu0 0.0
        %3196 = vmatpush2.msra.mxu0 0.0
        %3197 = vmatprep.subr.mxu0 0.0
        %3198 = vmatpush2.msra.mxu0 0.0
        %3199 = vmatprep.subr.mxu0 0.0
        %3200 = vmatpush2.msra.mxu0 0.0
        %3201 = vmatprep.subr.mxu0 0.0
        %3202 = vmatpush2.msra.mxu0 0.0
        %3203 = vmatprep.subr.mxu0 0.0
        %3204 = vmatpush2.msra.mxu0 0.0
        %3205 = vmatprep.subr.mxu0 0.0
        %3206 = vmatpush2.msra.mxu0 0.0
        %3207 = vmatprep.subr.mxu0 0.0
        %3208 = vmatpush2.msra.mxu0 0.0
        %3209 = vmatprep.subr.mxu0 0.0
        %3210 = vmatpush2.msra.mxu0 0.0
        %3211 = vmatprep.subr.mxu0 0.0
        %3212 = vmatpush2.msra.mxu0 0.0
        %3213 = vmatprep.subr.mxu0 0.0
        %3214 = vmatpush2.msra.mxu0 0.0
        %3215 = vmatprep.subr.mxu0 0.0
        %3216 = vmatpush2.msra.mxu0 0.0
        %3217 = vmatprep.subr.mxu0 0.0
        %3218 = vmatpush2.msra.mxu0 0.0
        %3219 = vmatprep.subr.mxu0 0.0
        %3220 = vmatpush2.msra.mxu0 0.0
        %3221 = vmatprep.subr.mxu0 0.0
        %3222 = vmatpush2.msra.mxu0 0.0
        %3223 = vmatprep.subr.mxu0 0.0
        %3224 = vmatpush2.msra.mxu0 0.0
        %3225 = vmatprep.mubr.f32.mxu0 0.0
        %3226 = vmatmul.mubr.f32.gmra.mxu0 %v3159
        %v3227 = vpop.f32.mrf.mxu0
        %v3228 = vadd.f32 0.0, %v3227
        %v3229 = vpop.f32.mrf.mxu0
        %v3230 = vadd.f32 0.0, %v3229
        %3231 = vdwg.mxu0
        %3232 = vmatprep.subr.mxu0 0.0
        %3233 = vmatpush1.msra.mxu0 0.0
        %3234 = vmatprep.subr.mxu0 0.0
        %3235 = vmatpush1.msra.mxu0 0.0
        %3236 = vmatprep.subr.mxu0 0.0
        %3237 = vmatpush1.msra.mxu0 0.0
        %3238 = vmatprep.subr.mxu0 0.0
        %3239 = vmatpush1.msra.mxu0 0.0
        %3240 = vmatprep.subr.mxu0 0.0
        %3241 = vmatpush1.msra.mxu0 0.0
        %3242 = vmatprep.subr.mxu0 0.0
        %3243 = vmatpush1.msra.mxu0 0.0
        %3244 = vmatprep.subr.mxu0 0.0
        %3245 = vmatpush1.msra.mxu0 0.0
        %3246 = vmatprep.subr.mxu0 0.0
        %3247 = vmatpush1.msra.mxu0 0.0
        %3248 = vmatprep.subr.mxu0 %v3157
        %3249 = vmatpush1.msra.mxu0 %v3156
        %3250 = vmatprep.subr.mxu0 %v3153
        %3251 = vmatpush1.msra.mxu0 %v3152
        %3252 = vmatprep.subr.mxu0 %v3149
        %3253 = vmatpush1.msra.mxu0 %v3148
        %3254 = vmatprep.subr.mxu0 %v3145
        %3255 = vmatpush1.msra.mxu0 %v3144
        %3256 = vmatprep.subr.mxu0 %v3141
        %3257 = vmatpush1.msra.mxu0 %v3140
        %3258 = vmatprep.subr.mxu0 %v3137
        %3259 = vmatpush1.msra.mxu0 %v3136
        %3260 = vmatprep.subr.mxu0 %v3133
        %3261 = vmatpush1.msra.mxu0 %v3132
        %3262 = vmatprep.subr.mxu0 %v3129
        %3263 = vmatpush1.msra.mxu0 %v3128
        %3264 = vmatprep.subr.mxu0 0.0
        %3265 = vmatpush2.msra.mxu0 0.0
        %3266 = vmatprep.subr.mxu0 0.0
        %3267 = vmatpush2.msra.mxu0 0.0
        %3268 = vmatprep.subr.mxu0 0.0
        %3269 = vmatpush2.msra.mxu0 0.0
        %3270 = vmatprep.subr.mxu0 0.0
        %3271 = vmatpush2.msra.mxu0 0.0
        %3272 = vmatprep.subr.mxu0 0.0
        %3273 = vmatpush2.msra.mxu0 0.0
        %3274 = vmatprep.subr.mxu0 0.0
        %3275 = vmatpush2.msra.mxu0 0.0
        %3276 = vmatprep.subr.mxu0 0.0
        %3277 = vmatpush2.msra.mxu0 0.0
        %3278 = vmatprep.subr.mxu0 0.0
        %3279 = vmatpush2.msra.mxu0 0.0
        %3280 = vmatprep.subr.mxu0 0.0
        %3281 = vmatpush2.msra.mxu0 0.0
        %3282 = vmatprep.subr.mxu0 0.0
        %3283 = vmatpush2.msra.mxu0 0.0
        %3284 = vmatprep.subr.mxu0 0.0
        %3285 = vmatpush2.msra.mxu0 0.0
        %3286 = vmatprep.subr.mxu0 0.0
        %3287 = vmatpush2.msra.mxu0 0.0
        %3288 = vmatprep.subr.mxu0 0.0
        %3289 = vmatpush2.msra.mxu0 0.0
        %3290 = vmatprep.subr.mxu0 0.0
        %3291 = vmatpush2.msra.mxu0 0.0
        %3292 = vmatprep.subr.mxu0 0.0
        %3293 = vmatpush2.msra.mxu0 0.0
        %3294 = vmatprep.subr.mxu0 0.0
        %3295 = vmatpush2.msra.mxu0 0.0
        %3296 = vmatprep.mubr.f32.mxu0 0.0
        %3297 = vmatmul.mubr.f32.gmra.mxu0 %v3159
        %v3298 = vpop.f32.mrf.mxu0
        %v3299 = vadd.f32 0.0, %v3298
        %v3300 = vpop.f32.mrf.mxu0
        %v3301 = vadd.f32 0.0, %v3300
        %3302 = vdwg.mxu0
        %v3303 = vadd.f32 %v2959, %v3228
        %v3304 = vadd.f32 %v2960, %v3230
        %v3305 = vadd.f32 %v2961, %v3299
        %v3306 = vadd.f32 %v2962, %v3301
        %3307 = vrot.lane.b32.xlu0 %v2963, 64
        %v3308 = vpop.permute.xlu0 %3307
        %3309 = vrot.lane.b32.xlu0 %v2964, 64
        %v3310 = vpop.permute.xlu0 %3309
        %v3311 = vsel %vm2273, %v3308, 0
        %v3313 = vsel %vm2273, %v3310, 0
        %3315 = vmatprep.subr.mxu0 0.0
        %3316 = vmatpush1.xpose.msra.mxu0 0.0
        %3317 = vmatprep.subr.mxu0 0.0
        %3318 = vmatpush1.xpose.msra.mxu0 0.0
        %3319 = vmatprep.subr.mxu0 0.0
        %3320 = vmatpush1.xpose.msra.mxu0 0.0
        %3321 = vmatprep.subr.mxu0 0.0
        %3322 = vmatpush1.xpose.msra.mxu0 0.0
        %3323 = vmatprep.subr.mxu0 0.0
        %3324 = vmatpush1.xpose.msra.mxu0 0.0
        %3325 = vmatprep.subr.mxu0 0.0
        %3326 = vmatpush1.xpose.msra.mxu0 0.0
        %3327 = vmatprep.subr.mxu0 0.0
        %3328 = vmatpush1.xpose.msra.mxu0 0.0
        %3329 = vmatprep.subr.mxu0 0.0
        %3330 = vmatpush1.xpose.msra.mxu0 0.0
        %3331 = vmatprep.subr.mxu0 0.0
        %3332 = vmatpush1.xpose.msra.mxu0 0.0
        %3333 = vmatprep.subr.mxu0 0.0
        %3334 = vmatpush1.xpose.msra.mxu0 0.0
        %3335 = vmatprep.subr.mxu0 0.0
        %3336 = vmatpush1.xpose.msra.mxu0 0.0
        %3337 = vmatprep.subr.mxu0 0.0
        %3338 = vmatpush1.xpose.msra.mxu0 0.0
        %3339 = vmatprep.subr.mxu0 0.0
        %3340 = vmatpush1.xpose.msra.mxu0 0.0
        %3341 = vmatprep.subr.mxu0 0.0
        %3342 = vmatpush1.xpose.msra.mxu0 0.0
        %3343 = vmatprep.subr.mxu0 0.0
        %3344 = vmatpush1.xpose.msra.mxu0 0.0
        %3345 = vmatprep.subr.mxu0 0.0
        %3346 = vmatpush1.xpose.msra.mxu0 %v3313
        %3347 = vmatprep.subr.mxu0 0.0
        %3348 = vmatpush2.xpose.msra.mxu0 0.0
        %3349 = vmatprep.subr.mxu0 0.0
        %3350 = vmatpush2.xpose.msra.mxu0 0.0
        %3351 = vmatprep.subr.mxu0 0.0
        %3352 = vmatpush2.xpose.msra.mxu0 0.0
        %3353 = vmatprep.subr.mxu0 0.0
        %3354 = vmatpush2.xpose.msra.mxu0 0.0
        %3355 = vmatprep.subr.mxu0 0.0
        %3356 = vmatpush2.xpose.msra.mxu0 0.0
        %3357 = vmatprep.subr.mxu0 0.0
        %3358 = vmatpush2.xpose.msra.mxu0 0.0
        %3359 = vmatprep.subr.mxu0 0.0
        %3360 = vmatpush2.xpose.msra.mxu0 0.0
        %3361 = vmatprep.subr.mxu0 0.0
        %3362 = vmatpush2.xpose.msra.mxu0 0.0
        %3363 = vmatprep.subr.mxu0 0.0
        %3364 = vmatpush2.xpose.msra.mxu0 0.0
        %3365 = vmatprep.subr.mxu0 0.0
        %3366 = vmatpush2.xpose.msra.mxu0 0.0
        %3367 = vmatprep.subr.mxu0 0.0
        %3368 = vmatpush2.xpose.msra.mxu0 0.0
        %3369 = vmatprep.subr.mxu0 0.0
        %3370 = vmatpush2.xpose.msra.mxu0 0.0
        %3371 = vmatprep.subr.mxu0 0.0
        %3372 = vmatpush2.xpose.msra.mxu0 0.0
        %3373 = vmatprep.subr.mxu0 0.0
        %3374 = vmatpush2.xpose.msra.mxu0 0.0
        %3375 = vmatprep.subr.mxu0 0.0
        %3376 = vmatpush2.xpose.msra.mxu0 0.0
        %3377 = vmatprep.subr.mxu0 0.0
        %3378 = vmatpush2.xpose.msra.mxu0 0.0
        %3379 = vmatprep.mubr.f32.mxu0 0.0
        %3380 = vmatmul.mubr.f32.gmra.mxu0 %v3311
        %v3381 = vpop.f32.mrf.mxu0
        %v3382 = vadd.f32 0.0, %v3381
        %v3383 = vpop.f32.mrf.mxu0
        %3384 = vdwg.mxu0
        %v3385 = vsel %vm2350, %v3382, -inf
        %3386 = vmax.xlane.f32.xlu0 %v3385
        %v3387 = vpop.xlane.xlu0 %3386
        %v3388 = vsub.f32 %v3382, %v3387
        %v3389 = vmul.f32 %v3388, 1.442695
        %v3390 = vpow.pop %v3389
        %v3391 = vsel %vm2350, %v3390, 0.0
        %3392 = vadd.xlane.f32.xlu0 %v3391
        %v3393 = vpop.xlane.xlu0 %3392
        %v3394 = vrcp.pop %v3393
        %v3395 = vmul.f32 %v3390, %v3394
        %3397 = vrot.lane.b32.xlu0 %v2965, 64
        %v3398 = vpop.permute.xlu0 %3397
        %v3401 = vsel %vm2350, %v3395, 0
        %3403 = vmatprep.subr.mxu0 0.0
        %3404 = vmatpush1.msra.mxu0 0.0
        %3405 = vmatprep.subr.mxu0 0.0
        %3406 = vmatpush1.msra.mxu0 0.0
        %3407 = vmatprep.subr.mxu0 0.0
        %3408 = vmatpush1.msra.mxu0 0.0
        %3409 = vmatprep.subr.mxu0 0.0
        %3410 = vmatpush1.msra.mxu0 0.0
        %3411 = vmatprep.subr.mxu0 0.0
        %3412 = vmatpush1.msra.mxu0 0.0
        %3413 = vmatprep.subr.mxu0 0.0
        %3414 = vmatpush1.msra.mxu0 0.0
        %3415 = vmatprep.subr.mxu0 0.0
        %3416 = vmatpush1.msra.mxu0 0.0
        %3417 = vmatprep.subr.mxu0 0.0
        %3418 = vmatpush1.msra.mxu0 0.0
        %3419 = vmatprep.subr.mxu0 0.0
        %3420 = vmatpush1.msra.mxu0 0.0
        %3421 = vmatprep.subr.mxu0 0.0
        %3422 = vmatpush1.msra.mxu0 0.0
        %3423 = vmatprep.subr.mxu0 0.0
        %3424 = vmatpush1.msra.mxu0 0.0
        %3425 = vmatprep.subr.mxu0 0.0
        %3426 = vmatpush1.msra.mxu0 0.0
        %3427 = vmatprep.subr.mxu0 0.0
        %3428 = vmatpush1.msra.mxu0 0.0
        %3429 = vmatprep.subr.mxu0 0.0
        %3430 = vmatpush1.msra.mxu0 0.0
        %3431 = vmatprep.subr.mxu0 0.0
        %3432 = vmatpush1.msra.mxu0 0.0
        %3433 = vmatprep.subr.mxu0 0.0
        %3434 = vmatpush1.msra.mxu0 %v3398
        %3435 = vmatprep.subr.mxu0 0.0
        %3436 = vmatpush2.msra.mxu0 0.0
        %3437 = vmatprep.subr.mxu0 0.0
        %3438 = vmatpush2.msra.mxu0 0.0
        %3439 = vmatprep.subr.mxu0 0.0
        %3440 = vmatpush2.msra.mxu0 0.0
        %3441 = vmatprep.subr.mxu0 0.0
        %3442 = vmatpush2.msra.mxu0 0.0
        %3443 = vmatprep.subr.mxu0 0.0
        %3444 = vmatpush2.msra.mxu0 0.0
        %3445 = vmatprep.subr.mxu0 0.0
        %3446 = vmatpush2.msra.mxu0 0.0
        %3447 = vmatprep.subr.mxu0 0.0
        %3448 = vmatpush2.msra.mxu0 0.0
        %3449 = vmatprep.subr.mxu0 0.0
        %3450 = vmatpush2.msra.mxu0 0.0
        %3451 = vmatprep.subr.mxu0 0.0
        %3452 = vmatpush2.msra.mxu0 0.0
        %3453 = vmatprep.subr.mxu0 0.0
        %3454 = vmatpush2.msra.mxu0 0.0
        %3455 = vmatprep.subr.mxu0 0.0
        %3456 = vmatpush2.msra.mxu0 0.0
        %3457 = vmatprep.subr.mxu0 0.0
        %3458 = vmatpush2.msra.mxu0 0.0
        %3459 = vmatprep.subr.mxu0 0.0
        %3460 = vmatpush2.msra.mxu0 0.0
        %3461 = vmatprep.subr.mxu0 0.0
        %3462 = vmatpush2.msra.mxu0 0.0
        %3463 = vmatprep.subr.mxu0 0.0
        %3464 = vmatpush2.msra.mxu0 0.0
        %3465 = vmatprep.subr.mxu0 0.0
        %3466 = vmatpush2.msra.mxu0 0.0
        %3467 = vmatprep.mubr.f32.mxu0 0.0
        %3468 = vmatmul.mubr.f32.gmra.mxu0 %v3401
        %v3469 = vpop.f32.mrf.mxu0
        %v3470 = vadd.f32 0.0, %v3469
        %v3471 = vpop.f32.mrf.mxu0
        %3472 = vdwg.mxu0
        %v3473 = vld [vmem:[#allocation16 + $0x300] sm:$0xff]
        %v3474 = vld [vmem:[#allocation16 + $0x308] sm:$0xff]
        %v3475 = vld [vmem:[#allocation16 + $0x310] sm:$0xff]
        %v3476 = vld [vmem:[#allocation16 + $0x318] sm:$0xff]
        %v3477 = vld [vmem:[#allocation16 + $0x320] sm:$0xff]
        %v3478 = vld [vmem:[#allocation16 + $0x328] sm:$0xff]
        %v3479 = vld [vmem:[#allocation16 + $0x330] sm:$0xff]
        %v3480 = vld [vmem:[#allocation16 + $0x338] sm:$0xff]
        %v3481 = vld [vmem:[#allocation16 + $0x340] sm:$0xff]
        %v3482 = vld [vmem:[#allocation16 + $0x348] sm:$0xff]
        %v3483 = vld [vmem:[#allocation16 + $0x350] sm:$0xff]
        %v3484 = vld [vmem:[#allocation16 + $0x358] sm:$0xff]
        %v3485 = vld [vmem:[#allocation16 + $0x360] sm:$0xff]
        %v3486 = vld [vmem:[#allocation16 + $0x368] sm:$0xff]
        %v3487 = vld [vmem:[#allocation16 + $0x370] sm:$0xff]
        %v3488 = vld [vmem:[#allocation16 + $0x378] sm:$0xff]
        %v3489 = vld [vmem:[#allocation16 + $0x380] sm:$0xff]
        %v3490 = vld [vmem:[#allocation16 + $0x388] sm:$0xff]
        %v3491 = vld [vmem:[#allocation16 + $0x390] sm:$0xff]
        %v3492 = vld [vmem:[#allocation16 + $0x398] sm:$0xff]
        %v3493 = vld [vmem:[#allocation16 + $0x3a0] sm:$0xff]
        %v3494 = vld [vmem:[#allocation16 + $0x3a8] sm:$0xff]
        %v3495 = vld [vmem:[#allocation16 + $0x3b0] sm:$0xff]
        %v3496 = vld [vmem:[#allocation16 + $0x3b8] sm:$0xff]
        %v3497 = vld [vmem:[#allocation16 + $0x3c0] sm:$0xff]
        %v3498 = vld [vmem:[#allocation16 + $0x3c8] sm:$0xff]
        %v3499 = vld [vmem:[#allocation16 + $0x3d0] sm:$0xff]
        %v3500 = vld [vmem:[#allocation16 + $0x3d8] sm:$0xff]
        %v3501 = vld [vmem:[#allocation16 + $0x3e0] sm:$0xff]
        %v3502 = vld [vmem:[#allocation16 + $0x3e8] sm:$0xff]
        %v3503 = vld [vmem:[#allocation16 + $0x3f0] sm:$0xff]
        %v3504 = vld [vmem:[#allocation16 + $0x3f8] sm:$0xff]
        %v3506 = vsel %vm2273, %v3470, 0
        %3508 = vmatprep.subr.mxu0 0.0
        %3509 = vmatpush1.msra.mxu0 0.0
        %3510 = vmatprep.subr.mxu0 0.0
        %3511 = vmatpush1.msra.mxu0 0.0
        %3512 = vmatprep.subr.mxu0 0.0
        %3513 = vmatpush1.msra.mxu0 0.0
        %3514 = vmatprep.subr.mxu0 0.0
        %3515 = vmatpush1.msra.mxu0 0.0
        %3516 = vmatprep.subr.mxu0 0.0
        %3517 = vmatpush1.msra.mxu0 0.0
        %3518 = vmatprep.subr.mxu0 0.0
        %3519 = vmatpush1.msra.mxu0 0.0
        %3520 = vmatprep.subr.mxu0 0.0
        %3521 = vmatpush1.msra.mxu0 0.0
        %3522 = vmatprep.subr.mxu0 0.0
        %3523 = vmatpush1.msra.mxu0 0.0
        %3524 = vmatprep.subr.mxu0 %v3502
        %3525 = vmatpush1.msra.mxu0 %v3501
        %3526 = vmatprep.subr.mxu0 %v3498
        %3527 = vmatpush1.msra.mxu0 %v3497
        %3528 = vmatprep.subr.mxu0 %v3494
        %3529 = vmatpush1.msra.mxu0 %v3493
        %3530 = vmatprep.subr.mxu0 %v3490
        %3531 = vmatpush1.msra.mxu0 %v3489
        %3532 = vmatprep.subr.mxu0 %v3486
        %3533 = vmatpush1.msra.mxu0 %v3485
        %3534 = vmatprep.subr.mxu0 %v3482
        %3535 = vmatpush1.msra.mxu0 %v3481
        %3536 = vmatprep.subr.mxu0 %v3478
        %3537 = vmatpush1.msra.mxu0 %v3477
        %3538 = vmatprep.subr.mxu0 %v3474
        %3539 = vmatpush1.msra.mxu0 %v3473
        %3540 = vmatprep.subr.mxu0 0.0
        %3541 = vmatpush2.msra.mxu0 0.0
        %3542 = vmatprep.subr.mxu0 0.0
        %3543 = vmatpush2.msra.mxu0 0.0
        %3544 = vmatprep.subr.mxu0 0.0
        %3545 = vmatpush2.msra.mxu0 0.0
        %3546 = vmatprep.subr.mxu0 0.0
        %3547 = vmatpush2.msra.mxu0 0.0
        %3548 = vmatprep.subr.mxu0 0.0
        %3549 = vmatpush2.msra.mxu0 0.0
        %3550 = vmatprep.subr.mxu0 0.0
        %3551 = vmatpush2.msra.mxu0 0.0
        %3552 = vmatprep.subr.mxu0 0.0
        %3553 = vmatpush2.msra.mxu0 0.0
        %3554 = vmatprep.subr.mxu0 0.0
        %3555 = vmatpush2.msra.mxu0 0.0
        %3556 = vmatprep.subr.mxu0 0.0
        %3557 = vmatpush2.msra.mxu0 0.0
        %3558 = vmatprep.subr.mxu0 0.0
        %3559 = vmatpush2.msra.mxu0 0.0
        %3560 = vmatprep.subr.mxu0 0.0
        %3561 = vmatpush2.msra.mxu0 0.0
        %3562 = vmatprep.subr.mxu0 0.0
        %3563 = vmatpush2.msra.mxu0 0.0
        %3564 = vmatprep.subr.mxu0 0.0
        %3565 = vmatpush2.msra.mxu0 0.0
        %3566 = vmatprep.subr.mxu0 0.0
        %3567 = vmatpush2.msra.mxu0 0.0
        %3568 = vmatprep.subr.mxu0 0.0
        %3569 = vmatpush2.msra.mxu0 0.0
        %3570 = vmatprep.subr.mxu0 0.0
        %3571 = vmatpush2.msra.mxu0 0.0
        %3572 = vmatprep.mubr.f32.mxu0 0.0
        %3573 = vmatmul.mubr.f32.gmra.mxu0 %v3506
        %v3574 = vpop.f32.mrf.mxu0
        %v3575 = vadd.f32 0.0, %v3574
        %v3576 = vpop.f32.mrf.mxu0
        %v3577 = vadd.f32 0.0, %v3576
        %3578 = vdwg.mxu0
        %3579 = vmatprep.subr.mxu0 0.0
        %3580 = vmatpush1.msra.mxu0 0.0
        %3581 = vmatprep.subr.mxu0 0.0
        %3582 = vmatpush1.msra.mxu0 0.0
        %3583 = vmatprep.subr.mxu0 0.0
        %3584 = vmatpush1.msra.mxu0 0.0
        %3585 = vmatprep.subr.mxu0 0.0
        %3586 = vmatpush1.msra.mxu0 0.0
        %3587 = vmatprep.subr.mxu0 0.0
        %3588 = vmatpush1.msra.mxu0 0.0
        %3589 = vmatprep.subr.mxu0 0.0
        %3590 = vmatpush1.msra.mxu0 0.0
        %3591 = vmatprep.subr.mxu0 0.0
        %3592 = vmatpush1.msra.mxu0 0.0
        %3593 = vmatprep.subr.mxu0 0.0
        %3594 = vmatpush1.msra.mxu0 0.0
        %3595 = vmatprep.subr.mxu0 %v3504
        %3596 = vmatpush1.msra.mxu0 %v3503
        %3597 = vmatprep.subr.mxu0 %v3500
        %3598 = vmatpush1.msra.mxu0 %v3499
        %3599 = vmatprep.subr.mxu0 %v3496
        %3600 = vmatpush1.msra.mxu0 %v3495
        %3601 = vmatprep.subr.mxu0 %v3492
        %3602 = vmatpush1.msra.mxu0 %v3491
        %3603 = vmatprep.subr.mxu0 %v3488
        %3604 = vmatpush1.msra.mxu0 %v3487
        %3605 = vmatprep.subr.mxu0 %v3484
        %3606 = vmatpush1.msra.mxu0 %v3483
        %3607 = vmatprep.subr.mxu0 %v3480
        %3608 = vmatpush1.msra.mxu0 %v3479
        %3609 = vmatprep.subr.mxu0 %v3476
        %3610 = vmatpush1.msra.mxu0 %v3475
        %3611 = vmatprep.subr.mxu0 0.0
        %3612 = vmatpush2.msra.mxu0 0.0
        %3613 = vmatprep.subr.mxu0 0.0
        %3614 = vmatpush2.msra.mxu0 0.0
        %3615 = vmatprep.subr.mxu0 0.0
        %3616 = vmatpush2.msra.mxu0 0.0
        %3617 = vmatprep.subr.mxu0 0.0
        %3618 = vmatpush2.msra.mxu0 0.0
        %3619 = vmatprep.subr.mxu0 0.0
        %3620 = vmatpush2.msra.mxu0 0.0
        %3621 = vmatprep.subr.mxu0 0.0
        %3622 = vmatpush2.msra.mxu0 0.0
        %3623 = vmatprep.subr.mxu0 0.0
        %3624 = vmatpush2.msra.mxu0 0.0
        %3625 = vmatprep.subr.mxu0 0.0
        %3626 = vmatpush2.msra.mxu0 0.0
        %3627 = vmatprep.subr.mxu0 0.0
        %3628 = vmatpush2.msra.mxu0 0.0
        %3629 = vmatprep.subr.mxu0 0.0
        %3630 = vmatpush2.msra.mxu0 0.0
        %3631 = vmatprep.subr.mxu0 0.0
        %3632 = vmatpush2.msra.mxu0 0.0
        %3633 = vmatprep.subr.mxu0 0.0
        %3634 = vmatpush2.msra.mxu0 0.0
        %3635 = vmatprep.subr.mxu0 0.0
        %3636 = vmatpush2.msra.mxu0 0.0
        %3637 = vmatprep.subr.mxu0 0.0
        %3638 = vmatpush2.msra.mxu0 0.0
        %3639 = vmatprep.subr.mxu0 0.0
        %3640 = vmatpush2.msra.mxu0 0.0
        %3641 = vmatprep.subr.mxu0 0.0
        %3642 = vmatpush2.msra.mxu0 0.0
        %3643 = vmatprep.mubr.f32.mxu0 0.0
        %3644 = vmatmul.mubr.f32.gmra.mxu0 %v3506
        %v3645 = vpop.f32.mrf.mxu0
        %v3646 = vadd.f32 0.0, %v3645
        %v3647 = vpop.f32.mrf.mxu0
        %v3648 = vadd.f32 0.0, %v3647
        %3649 = vdwg.mxu0
        %v3650 = vadd.f32 %v3303, %v3575
        %v3651 = vadd.f32 %v3304, %v3577
        %v3652 = vadd.f32 %v3305, %v3646
        %v3653 = vadd.f32 %v3306, %v3648
        %v3654 = vld [vmem:[#allocation2 + $0x10] sm:$0xff]
        %v3655 = vld [vmem:[#allocation3 + $0x10] sm:$0xff]
        %v3656 = vld [vmem:[#allocation4 + $0x10] sm:$0xff]
        %v3658 = vsel %vm2273, %v3654, 0
        %v3661 = vsel %vm2273, %v3655, 0
        %3663 = vmatprep.subr.mxu0 0.0
        %3664 = vmatpush1.xpose.msra.mxu0 0.0
        %3665 = vmatprep.subr.mxu0 0.0
        %3666 = vmatpush1.xpose.msra.mxu0 0.0
        %3667 = vmatprep.subr.mxu0 0.0
        %3668 = vmatpush1.xpose.msra.mxu0 0.0
        %3669 = vmatprep.subr.mxu0 0.0
        %3670 = vmatpush1.xpose.msra.mxu0 0.0
        %3671 = vmatprep.subr.mxu0 0.0
        %3672 = vmatpush1.xpose.msra.mxu0 0.0
        %3673 = vmatprep.subr.mxu0 0.0
        %3674 = vmatpush1.xpose.msra.mxu0 0.0
        %3675 = vmatprep.subr.mxu0 0.0
        %3676 = vmatpush1.xpose.msra.mxu0 0.0
        %3677 = vmatprep.subr.mxu0 0.0
        %3678 = vmatpush1.xpose.msra.mxu0 0.0
        %3679 = vmatprep.subr.mxu0 0.0
        %3680 = vmatpush1.xpose.msra.mxu0 0.0
        %3681 = vmatprep.subr.mxu0 0.0
        %3682 = vmatpush1.xpose.msra.mxu0 0.0
        %3683 = vmatprep.subr.mxu0 0.0
        %3684 = vmatpush1.xpose.msra.mxu0 0.0
        %3685 = vmatprep.subr.mxu0 0.0
        %3686 = vmatpush1.xpose.msra.mxu0 0.0
        %3687 = vmatprep.subr.mxu0 0.0
        %3688 = vmatpush1.xpose.msra.mxu0 0.0
        %3689 = vmatprep.subr.mxu0 0.0
        %3690 = vmatpush1.xpose.msra.mxu0 0.0
        %3691 = vmatprep.subr.mxu0 0.0
        %3692 = vmatpush1.xpose.msra.mxu0 0.0
        %3693 = vmatprep.subr.mxu0 0.0
        %3694 = vmatpush1.xpose.msra.mxu0 %v3661
        %3695 = vmatprep.subr.mxu0 0.0
        %3696 = vmatpush2.xpose.msra.mxu0 0.0
        %3697 = vmatprep.subr.mxu0 0.0
        %3698 = vmatpush2.xpose.msra.mxu0 0.0
        %3699 = vmatprep.subr.mxu0 0.0
        %3700 = vmatpush2.xpose.msra.mxu0 0.0
        %3701 = vmatprep.subr.mxu0 0.0
        %3702 = vmatpush2.xpose.msra.mxu0 0.0
        %3703 = vmatprep.subr.mxu0 0.0
        %3704 = vmatpush2.xpose.msra.mxu0 0.0
        %3705 = vmatprep.subr.mxu0 0.0
        %3706 = vmatpush2.xpose.msra.mxu0 0.0
        %3707 = vmatprep.subr.mxu0 0.0
        %3708 = vmatpush2.xpose.msra.mxu0 0.0
        %3709 = vmatprep.subr.mxu0 0.0
        %3710 = vmatpush2.xpose.msra.mxu0 0.0
        %3711 = vmatprep.subr.mxu0 0.0
        %3712 = vmatpush2.xpose.msra.mxu0 0.0
        %3713 = vmatprep.subr.mxu0 0.0
        %3714 = vmatpush2.xpose.msra.mxu0 0.0
        %3715 = vmatprep.subr.mxu0 0.0
        %3716 = vmatpush2.xpose.msra.mxu0 0.0
        %3717 = vmatprep.subr.mxu0 0.0
        %3718 = vmatpush2.xpose.msra.mxu0 0.0
        %3719 = vmatprep.subr.mxu0 0.0
        %3720 = vmatpush2.xpose.msra.mxu0 0.0
        %3721 = vmatprep.subr.mxu0 0.0
        %3722 = vmatpush2.xpose.msra.mxu0 0.0
        %3723 = vmatprep.subr.mxu0 0.0
        %3724 = vmatpush2.xpose.msra.mxu0 0.0
        %3725 = vmatprep.subr.mxu0 0.0
        %3726 = vmatpush2.xpose.msra.mxu0 0.0
        %3727 = vmatprep.mubr.f32.mxu0 0.0
        %3728 = vmatmul.mubr.f32.gmra.mxu0 %v3658
        %v3729 = vpop.f32.mrf.mxu0
        %v3730 = vadd.f32 0.0, %v3729
        %v3731 = vpop.f32.mrf.mxu0
        %3732 = vdwg.mxu0
        %v3733 = vsel %vm2350, %v3730, -inf
        %3734 = vmax.xlane.f32.xlu0 %v3733
        %v3735 = vpop.xlane.xlu0 %3734
        %v3736 = vsub.f32 %v3730, %v3735
        %v3737 = vmul.f32 %v3736, 1.442695
        %v3738 = vpow.pop %v3737
        %v3739 = vsel %vm2350, %v3738, 0.0
        %3740 = vadd.xlane.f32.xlu0 %v3739
        %v3741 = vpop.xlane.xlu0 %3740
        %v3742 = vrcp.pop %v3741
        %v3743 = vmul.f32 %v3738, %v3742
        %v3745 = vsel %vm2350, %v3743, 0
        %3747 = vmatprep.subr.mxu0 0.0
        %3748 = vmatpush1.msra.mxu0 0.0
        %3749 = vmatprep.subr.mxu0 0.0
        %3750 = vmatpush1.msra.mxu0 0.0
        %3751 = vmatprep.subr.mxu0 0.0
        %3752 = vmatpush1.msra.mxu0 0.0
        %3753 = vmatprep.subr.mxu0 0.0
        %3754 = vmatpush1.msra.mxu0 0.0
        %3755 = vmatprep.subr.mxu0 0.0
        %3756 = vmatpush1.msra.mxu0 0.0
        %3757 = vmatprep.subr.mxu0 0.0
        %3758 = vmatpush1.msra.mxu0 0.0
        %3759 = vmatprep.subr.mxu0 0.0
        %3760 = vmatpush1.msra.mxu0 0.0
        %3761 = vmatprep.subr.mxu0 0.0
        %3762 = vmatpush1.msra.mxu0 0.0
        %3763 = vmatprep.subr.mxu0 0.0
        %3764 = vmatpush1.msra.mxu0 0.0
        %3765 = vmatprep.subr.mxu0 0.0
        %3766 = vmatpush1.msra.mxu0 0.0
        %3767 = vmatprep.subr.mxu0 0.0
        %3768 = vmatpush1.msra.mxu0 0.0
        %3769 = vmatprep.subr.mxu0 0.0
        %3770 = vmatpush1.msra.mxu0 0.0
        %3771 = vmatprep.subr.mxu0 0.0
        %3772 = vmatpush1.msra.mxu0 0.0
        %3773 = vmatprep.subr.mxu0 0.0
        %3774 = vmatpush1.msra.mxu0 0.0
        %3775 = vmatprep.subr.mxu0 0.0
        %3776 = vmatpush1.msra.mxu0 0.0
        %3777 = vmatprep.subr.mxu0 0.0
        %3778 = vmatpush1.msra.mxu0 %v3656
        %3779 = vmatprep.subr.mxu0 0.0
        %3780 = vmatpush2.msra.mxu0 0.0
        %3781 = vmatprep.subr.mxu0 0.0
        %3782 = vmatpush2.msra.mxu0 0.0
        %3783 = vmatprep.subr.mxu0 0.0
        %3784 = vmatpush2.msra.mxu0 0.0
        %3785 = vmatprep.subr.mxu0 0.0
        %3786 = vmatpush2.msra.mxu0 0.0
        %3787 = vmatprep.subr.mxu0 0.0
        %3788 = vmatpush2.msra.mxu0 0.0
        %3789 = vmatprep.subr.mxu0 0.0
        %3790 = vmatpush2.msra.mxu0 0.0
        %3791 = vmatprep.subr.mxu0 0.0
        %3792 = vmatpush2.msra.mxu0 0.0
        %3793 = vmatprep.subr.mxu0 0.0
        %3794 = vmatpush2.msra.mxu0 0.0
        %3795 = vmatprep.subr.mxu0 0.0
        %3796 = vmatpush2.msra.mxu0 0.0
        %3797 = vmatprep.subr.mxu0 0.0
        %3798 = vmatpush2.msra.mxu0 0.0
        %3799 = vmatprep.subr.mxu0 0.0
        %3800 = vmatpush2.msra.mxu0 0.0
        %3801 = vmatprep.subr.mxu0 0.0
        %3802 = vmatpush2.msra.mxu0 0.0
        %3803 = vmatprep.subr.mxu0 0.0
        %3804 = vmatpush2.msra.mxu0 0.0
        %3805 = vmatprep.subr.mxu0 0.0
        %3806 = vmatpush2.msra.mxu0 0.0
        %3807 = vmatprep.subr.mxu0 0.0
        %3808 = vmatpush2.msra.mxu0 0.0
        %3809 = vmatprep.subr.mxu0 0.0
        %3810 = vmatpush2.msra.mxu0 0.0
        %3811 = vmatprep.mubr.f32.mxu0 0.0
        %3812 = vmatmul.mubr.f32.gmra.mxu0 %v3745
        %v3813 = vpop.f32.mrf.mxu0
        %v3814 = vadd.f32 0.0, %v3813
        %v3815 = vpop.f32.mrf.mxu0
        %3816 = vdwg.mxu0
        %v3817 = vld [vmem:[#allocation16 + $0x400] sm:$0xff]
        %v3818 = vld [vmem:[#allocation16 + $0x408] sm:$0xff]
        %v3819 = vld [vmem:[#allocation16 + $0x410] sm:$0xff]
        %v3820 = vld [vmem:[#allocation16 + $0x418] sm:$0xff]
        %v3821 = vld [vmem:[#allocation16 + $0x420] sm:$0xff]
        %v3822 = vld [vmem:[#allocation16 + $0x428] sm:$0xff]
        %v3823 = vld [vmem:[#allocation16 + $0x430] sm:$0xff]
        %v3824 = vld [vmem:[#allocation16 + $0x438] sm:$0xff]
        %v3825 = vld [vmem:[#allocation16 + $0x440] sm:$0xff]
        %v3826 = vld [vmem:[#allocation16 + $0x448] sm:$0xff]
        %v3827 = vld [vmem:[#allocation16 + $0x450] sm:$0xff]
        %v3828 = vld [vmem:[#allocation16 + $0x458] sm:$0xff]
        %v3829 = vld [vmem:[#allocation16 + $0x460] sm:$0xff]
        %v3830 = vld [vmem:[#allocation16 + $0x468] sm:$0xff]
        %v3831 = vld [vmem:[#allocation16 + $0x470] sm:$0xff]
        %v3832 = vld [vmem:[#allocation16 + $0x478] sm:$0xff]
        %v3833 = vld [vmem:[#allocation16 + $0x480] sm:$0xff]
        %v3834 = vld [vmem:[#allocation16 + $0x488] sm:$0xff]
        %v3835 = vld [vmem:[#allocation16 + $0x490] sm:$0xff]
        %v3836 = vld [vmem:[#allocation16 + $0x498] sm:$0xff]
        %v3837 = vld [vmem:[#allocation16 + $0x4a0] sm:$0xff]
        %v3838 = vld [vmem:[#allocation16 + $0x4a8] sm:$0xff]
        %v3839 = vld [vmem:[#allocation16 + $0x4b0] sm:$0xff]
        %v3840 = vld [vmem:[#allocation16 + $0x4b8] sm:$0xff]
        %v3841 = vld [vmem:[#allocation16 + $0x4c0] sm:$0xff]
        %v3842 = vld [vmem:[#allocation16 + $0x4c8] sm:$0xff]
        %v3843 = vld [vmem:[#allocation16 + $0x4d0] sm:$0xff]
        %v3844 = vld [vmem:[#allocation16 + $0x4d8] sm:$0xff]
        %v3845 = vld [vmem:[#allocation16 + $0x4e0] sm:$0xff]
        %v3846 = vld [vmem:[#allocation16 + $0x4e8] sm:$0xff]
        %v3847 = vld [vmem:[#allocation16 + $0x4f0] sm:$0xff]
        %v3848 = vld [vmem:[#allocation16 + $0x4f8] sm:$0xff]
        %v3850 = vsel %vm2273, %v3814, 0
        %3852 = vmatprep.subr.mxu0 0.0
        %3853 = vmatpush1.msra.mxu0 0.0
        %3854 = vmatprep.subr.mxu0 0.0
        %3855 = vmatpush1.msra.mxu0 0.0
        %3856 = vmatprep.subr.mxu0 0.0
        %3857 = vmatpush1.msra.mxu0 0.0
        %3858 = vmatprep.subr.mxu0 0.0
        %3859 = vmatpush1.msra.mxu0 0.0
        %3860 = vmatprep.subr.mxu0 0.0
        %3861 = vmatpush1.msra.mxu0 0.0
        %3862 = vmatprep.subr.mxu0 0.0
        %3863 = vmatpush1.msra.mxu0 0.0
        %3864 = vmatprep.subr.mxu0 0.0
        %3865 = vmatpush1.msra.mxu0 0.0
        %3866 = vmatprep.subr.mxu0 0.0
        %3867 = vmatpush1.msra.mxu0 0.0
        %3868 = vmatprep.subr.mxu0 %v3846
        %3869 = vmatpush1.msra.mxu0 %v3845
        %3870 = vmatprep.subr.mxu0 %v3842
        %3871 = vmatpush1.msra.mxu0 %v3841
        %3872 = vmatprep.subr.mxu0 %v3838
        %3873 = vmatpush1.msra.mxu0 %v3837
        %3874 = vmatprep.subr.mxu0 %v3834
        %3875 = vmatpush1.msra.mxu0 %v3833
        %3876 = vmatprep.subr.mxu0 %v3830
        %3877 = vmatpush1.msra.mxu0 %v3829
        %3878 = vmatprep.subr.mxu0 %v3826
        %3879 = vmatpush1.msra.mxu0 %v3825
        %3880 = vmatprep.subr.mxu0 %v3822
        %3881 = vmatpush1.msra.mxu0 %v3821
        %3882 = vmatprep.subr.mxu0 %v3818
        %3883 = vmatpush1.msra.mxu0 %v3817
        %3884 = vmatprep.subr.mxu0 0.0
        %3885 = vmatpush2.msra.mxu0 0.0
        %3886 = vmatprep.subr.mxu0 0.0
        %3887 = vmatpush2.msra.mxu0 0.0
        %3888 = vmatprep.subr.mxu0 0.0
        %3889 = vmatpush2.msra.mxu0 0.0
        %3890 = vmatprep.subr.mxu0 0.0
        %3891 = vmatpush2.msra.mxu0 0.0
        %3892 = vmatprep.subr.mxu0 0.0
        %3893 = vmatpush2.msra.mxu0 0.0
        %3894 = vmatprep.subr.mxu0 0.0
        %3895 = vmatpush2.msra.mxu0 0.0
        %3896 = vmatprep.subr.mxu0 0.0
        %3897 = vmatpush2.msra.mxu0 0.0
        %3898 = vmatprep.subr.mxu0 0.0
        %3899 = vmatpush2.msra.mxu0 0.0
        %3900 = vmatprep.subr.mxu0 0.0
        %3901 = vmatpush2.msra.mxu0 0.0
        %3902 = vmatprep.subr.mxu0 0.0
        %3903 = vmatpush2.msra.mxu0 0.0
        %3904 = vmatprep.subr.mxu0 0.0
        %3905 = vmatpush2.msra.mxu0 0.0
        %3906 = vmatprep.subr.mxu0 0.0
        %3907 = vmatpush2.msra.mxu0 0.0
        %3908 = vmatprep.subr.mxu0 0.0
        %3909 = vmatpush2.msra.mxu0 0.0
        %3910 = vmatprep.subr.mxu0 0.0
        %3911 = vmatpush2.msra.mxu0 0.0
        %3912 = vmatprep.subr.mxu0 0.0
        %3913 = vmatpush2.msra.mxu0 0.0
        %3914 = vmatprep.subr.mxu0 0.0
        %3915 = vmatpush2.msra.mxu0 0.0
        %3916 = vmatprep.mubr.f32.mxu0 0.0
        %3917 = vmatmul.mubr.f32.gmra.mxu0 %v3850
        %v3918 = vpop.f32.mrf.mxu0
        %v3919 = vadd.f32 0.0, %v3918
        %v3920 = vpop.f32.mrf.mxu0
        %v3921 = vadd.f32 0.0, %v3920
        %3922 = vdwg.mxu0
        %3923 = vmatprep.subr.mxu0 0.0
        %3924 = vmatpush1.msra.mxu0 0.0
        %3925 = vmatprep.subr.mxu0 0.0
        %3926 = vmatpush1.msra.mxu0 0.0
        %3927 = vmatprep.subr.mxu0 0.0
        %3928 = vmatpush1.msra.mxu0 0.0
        %3929 = vmatprep.subr.mxu0 0.0
        %3930 = vmatpush1.msra.mxu0 0.0
        %3931 = vmatprep.subr.mxu0 0.0
        %3932 = vmatpush1.msra.mxu0 0.0
        %3933 = vmatprep.subr.mxu0 0.0
        %3934 = vmatpush1.msra.mxu0 0.0
        %3935 = vmatprep.subr.mxu0 0.0
        %3936 = vmatpush1.msra.mxu0 0.0
        %3937 = vmatprep.subr.mxu0 0.0
        %3938 = vmatpush1.msra.mxu0 0.0
        %3939 = vmatprep.subr.mxu0 %v3848
        %3940 = vmatpush1.msra.mxu0 %v3847
        %3941 = vmatprep.subr.mxu0 %v3844
        %3942 = vmatpush1.msra.mxu0 %v3843
        %3943 = vmatprep.subr.mxu0 %v3840
        %3944 = vmatpush1.msra.mxu0 %v3839
        %3945 = vmatprep.subr.mxu0 %v3836
        %3946 = vmatpush1.msra.mxu0 %v3835
        %3947 = vmatprep.subr.mxu0 %v3832
        %3948 = vmatpush1.msra.mxu0 %v3831
        %3949 = vmatprep.subr.mxu0 %v3828
        %3950 = vmatpush1.msra.mxu0 %v3827
        %3951 = vmatprep.subr.mxu0 %v3824
        %3952 = vmatpush1.msra.mxu0 %v3823
        %3953 = vmatprep.subr.mxu0 %v3820
        %3954 = vmatpush1.msra.mxu0 %v3819
        %3955 = vmatprep.subr.mxu0 0.0
        %3956 = vmatpush2.msra.mxu0 0.0
        %3957 = vmatprep.subr.mxu0 0.0
        %3958 = vmatpush2.msra.mxu0 0.0
        %3959 = vmatprep.subr.mxu0 0.0
        %3960 = vmatpush2.msra.mxu0 0.0
        %3961 = vmatprep.subr.mxu0 0.0
        %3962 = vmatpush2.msra.mxu0 0.0
        %3963 = vmatprep.subr.mxu0 0.0
        %3964 = vmatpush2.msra.mxu0 0.0
        %3965 = vmatprep.subr.mxu0 0.0
        %3966 = vmatpush2.msra.mxu0 0.0
        %3967 = vmatprep.subr.mxu0 0.0
        %3968 = vmatpush2.msra.mxu0 0.0
        %3969 = vmatprep.subr.mxu0 0.0
        %3970 = vmatpush2.msra.mxu0 0.0
        %3971 = vmatprep.subr.mxu0 0.0
        %3972 = vmatpush2.msra.mxu0 0.0
        %3973 = vmatprep.subr.mxu0 0.0
        %3974 = vmatpush2.msra.mxu0 0.0
        %3975 = vmatprep.subr.mxu0 0.0
        %3976 = vmatpush2.msra.mxu0 0.0
        %3977 = vmatprep.subr.mxu0 0.0
        %3978 = vmatpush2.msra.mxu0 0.0
        %3979 = vmatprep.subr.mxu0 0.0
        %3980 = vmatpush2.msra.mxu0 0.0
        %3981 = vmatprep.subr.mxu0 0.0
        %3982 = vmatpush2.msra.mxu0 0.0
        %3983 = vmatprep.subr.mxu0 0.0
        %3984 = vmatpush2.msra.mxu0 0.0
        %3985 = vmatprep.subr.mxu0 0.0
        %3986 = vmatpush2.msra.mxu0 0.0
        %3987 = vmatprep.mubr.f32.mxu0 0.0
        %3988 = vmatmul.mubr.f32.gmra.mxu0 %v3850
        %v3989 = vpop.f32.mrf.mxu0
        %v3990 = vadd.f32 0.0, %v3989
        %v3991 = vpop.f32.mrf.mxu0
        %v3992 = vadd.f32 0.0, %v3991
        %3993 = vdwg.mxu0
        %v3994 = vadd.f32 %v3650, %v3919
        %v3995 = vadd.f32 %v3651, %v3921
        %v3996 = vadd.f32 %v3652, %v3990
        %v3997 = vadd.f32 %v3653, %v3992
        %3998 = vrot.lane.b32.xlu0 %v3654, 64
        %v3999 = vpop.permute.xlu0 %3998
        %4000 = vrot.lane.b32.xlu0 %v3655, 64
        %v4001 = vpop.permute.xlu0 %4000
        %v4002 = vsel %vm2273, %v3999, 0
        %v4004 = vsel %vm2273, %v4001, 0
        %4006 = vmatprep.subr.mxu0 0.0
        %4007 = vmatpush1.xpose.msra.mxu0 0.0
        %4008 = vmatprep.subr.mxu0 0.0
        %4009 = vmatpush1.xpose.msra.mxu0 0.0
        %4010 = vmatprep.subr.mxu0 0.0
        %4011 = vmatpush1.xpose.msra.mxu0 0.0
        %4012 = vmatprep.subr.mxu0 0.0
        %4013 = vmatpush1.xpose.msra.mxu0 0.0
        %4014 = vmatprep.subr.mxu0 0.0
        %4015 = vmatpush1.xpose.msra.mxu0 0.0
        %4016 = vmatprep.subr.mxu0 0.0
        %4017 = vmatpush1.xpose.msra.mxu0 0.0
        %4018 = vmatprep.subr.mxu0 0.0
        %4019 = vmatpush1.xpose.msra.mxu0 0.0
        %4020 = vmatprep.subr.mxu0 0.0
        %4021 = vmatpush1.xpose.msra.mxu0 0.0
        %4022 = vmatprep.subr.mxu0 0.0
        %4023 = vmatpush1.xpose.msra.mxu0 0.0
        %4024 = vmatprep.subr.mxu0 0.0
        %4025 = vmatpush1.xpose.msra.mxu0 0.0
        %4026 = vmatprep.subr.mxu0 0.0
        %4027 = vmatpush1.xpose.msra.mxu0 0.0
        %4028 = vmatprep.subr.mxu0 0.0
        %4029 = vmatpush1.xpose.msra.mxu0 0.0
        %4030 = vmatprep.subr.mxu0 0.0
        %4031 = vmatpush1.xpose.msra.mxu0 0.0
        %4032 = vmatprep.subr.mxu0 0.0
        %4033 = vmatpush1.xpose.msra.mxu0 0.0
        %4034 = vmatprep.subr.mxu0 0.0
        %4035 = vmatpush1.xpose.msra.mxu0 0.0
        %4036 = vmatprep.subr.mxu0 0.0
        %4037 = vmatpush1.xpose.msra.mxu0 %v4004
        %4038 = vmatprep.subr.mxu0 0.0
        %4039 = vmatpush2.xpose.msra.mxu0 0.0
        %4040 = vmatprep.subr.mxu0 0.0
        %4041 = vmatpush2.xpose.msra.mxu0 0.0
        %4042 = vmatprep.subr.mxu0 0.0
        %4043 = vmatpush2.xpose.msra.mxu0 0.0
        %4044 = vmatprep.subr.mxu0 0.0
        %4045 = vmatpush2.xpose.msra.mxu0 0.0
        %4046 = vmatprep.subr.mxu0 0.0
        %4047 = vmatpush2.xpose.msra.mxu0 0.0
        %4048 = vmatprep.subr.mxu0 0.0
        %4049 = vmatpush2.xpose.msra.mxu0 0.0
        %4050 = vmatprep.subr.mxu0 0.0
        %4051 = vmatpush2.xpose.msra.mxu0 0.0
        %4052 = vmatprep.subr.mxu0 0.0
        %4053 = vmatpush2.xpose.msra.mxu0 0.0
        %4054 = vmatprep.subr.mxu0 0.0
        %4055 = vmatpush2.xpose.msra.mxu0 0.0
        %4056 = vmatprep.subr.mxu0 0.0
        %4057 = vmatpush2.xpose.msra.mxu0 0.0
        %4058 = vmatprep.subr.mxu0 0.0
        %4059 = vmatpush2.xpose.msra.mxu0 0.0
        %4060 = vmatprep.subr.mxu0 0.0
        %4061 = vmatpush2.xpose.msra.mxu0 0.0
        %4062 = vmatprep.subr.mxu0 0.0
        %4063 = vmatpush2.xpose.msra.mxu0 0.0
        %4064 = vmatprep.subr.mxu0 0.0
        %4065 = vmatpush2.xpose.msra.mxu0 0.0
        %4066 = vmatprep.subr.mxu0 0.0
        %4067 = vmatpush2.xpose.msra.mxu0 0.0
        %4068 = vmatprep.subr.mxu0 0.0
        %4069 = vmatpush2.xpose.msra.mxu0 0.0
        %4070 = vmatprep.mubr.f32.mxu0 0.0
        %4071 = vmatmul.mubr.f32.gmra.mxu0 %v4002
        %v4072 = vpop.f32.mrf.mxu0
        %v4073 = vadd.f32 0.0, %v4072
        %v4074 = vpop.f32.mrf.mxu0
        %4075 = vdwg.mxu0
        %v4076 = vsel %vm2350, %v4073, -inf
        %4077 = vmax.xlane.f32.xlu0 %v4076
        %v4078 = vpop.xlane.xlu0 %4077
        %v4079 = vsub.f32 %v4073, %v4078
        %v4080 = vmul.f32 %v4079, 1.442695
        %v4081 = vpow.pop %v4080
        %v4082 = vsel %vm2350, %v4081, 0.0
        %4083 = vadd.xlane.f32.xlu0 %v4082
        %v4084 = vpop.xlane.xlu0 %4083
        %v4085 = vrcp.pop %v4084
        %v4086 = vmul.f32 %v4081, %v4085
        %4088 = vrot.lane.b32.xlu0 %v3656, 64
        %v4089 = vpop.permute.xlu0 %4088
        %v4092 = vsel %vm2350, %v4086, 0
        %4094 = vmatprep.subr.mxu0 0.0
        %4095 = vmatpush1.msra.mxu0 0.0
        %4096 = vmatprep.subr.mxu0 0.0
        %4097 = vmatpush1.msra.mxu0 0.0
        %4098 = vmatprep.subr.mxu0 0.0
        %4099 = vmatpush1.msra.mxu0 0.0
        %4100 = vmatprep.subr.mxu0 0.0
        %4101 = vmatpush1.msra.mxu0 0.0
        %4102 = vmatprep.subr.mxu0 0.0
        %4103 = vmatpush1.msra.mxu0 0.0
        %4104 = vmatprep.subr.mxu0 0.0
        %4105 = vmatpush1.msra.mxu0 0.0
        %4106 = vmatprep.subr.mxu0 0.0
        %4107 = vmatpush1.msra.mxu0 0.0
        %4108 = vmatprep.subr.mxu0 0.0
        %4109 = vmatpush1.msra.mxu0 0.0
        %4110 = vmatprep.subr.mxu0 0.0
        %4111 = vmatpush1.msra.mxu0 0.0
        %4112 = vmatprep.subr.mxu0 0.0
        %4113 = vmatpush1.msra.mxu0 0.0
        %4114 = vmatprep.subr.mxu0 0.0
        %4115 = vmatpush1.msra.mxu0 0.0
        %4116 = vmatprep.subr.mxu0 0.0
        %4117 = vmatpush1.msra.mxu0 0.0
        %4118 = vmatprep.subr.mxu0 0.0
        %4119 = vmatpush1.msra.mxu0 0.0
        %4120 = vmatprep.subr.mxu0 0.0
        %4121 = vmatpush1.msra.mxu0 0.0
        %4122 = vmatprep.subr.mxu0 0.0
        %4123 = vmatpush1.msra.mxu0 0.0
        %4124 = vmatprep.subr.mxu0 0.0
        %4125 = vmatpush1.msra.mxu0 %v4089
        %4126 = vmatprep.subr.mxu0 0.0
        %4127 = vmatpush2.msra.mxu0 0.0
        %4128 = vmatprep.subr.mxu0 0.0
        %4129 = vmatpush2.msra.mxu0 0.0
        %4130 = vmatprep.subr.mxu0 0.0
        %4131 = vmatpush2.msra.mxu0 0.0
        %4132 = vmatprep.subr.mxu0 0.0
        %4133 = vmatpush2.msra.mxu0 0.0
        %4134 = vmatprep.subr.mxu0 0.0
        %4135 = vmatpush2.msra.mxu0 0.0
        %4136 = vmatprep.subr.mxu0 0.0
        %4137 = vmatpush2.msra.mxu0 0.0
        %4138 = vmatprep.subr.mxu0 0.0
        %4139 = vmatpush2.msra.mxu0 0.0
        %4140 = vmatprep.subr.mxu0 0.0
        %4141 = vmatpush2.msra.mxu0 0.0
        %4142 = vmatprep.subr.mxu0 0.0
        %4143 = vmatpush2.msra.mxu0 0.0
        %4144 = vmatprep.subr.mxu0 0.0
        %4145 = vmatpush2.msra.mxu0 0.0
        %4146 = vmatprep.subr.mxu0 0.0
        %4147 = vmatpush2.msra.mxu0 0.0
        %4148 = vmatprep.subr.mxu0 0.0
        %4149 = vmatpush2.msra.mxu0 0.0
        %4150 = vmatprep.subr.mxu0 0.0
        %4151 = vmatpush2.msra.mxu0 0.0
        %4152 = vmatprep.subr.mxu0 0.0
        %4153 = vmatpush2.msra.mxu0 0.0
        %4154 = vmatprep.subr.mxu0 0.0
        %4155 = vmatpush2.msra.mxu0 0.0
        %4156 = vmatprep.subr.mxu0 0.0
        %4157 = vmatpush2.msra.mxu0 0.0
        %4158 = vmatprep.mubr.f32.mxu0 0.0
        %4159 = vmatmul.mubr.f32.gmra.mxu0 %v4092
        %v4160 = vpop.f32.mrf.mxu0
        %v4161 = vadd.f32 0.0, %v4160
        %v4162 = vpop.f32.mrf.mxu0
        %4163 = vdwg.mxu0
        %v4164 = vld [vmem:[#allocation16 + $0x500] sm:$0xff]
        %v4165 = vld [vmem:[#allocation16 + $0x508] sm:$0xff]
        %v4166 = vld [vmem:[#allocation16 + $0x510] sm:$0xff]
        %v4167 = vld [vmem:[#allocation16 + $0x518] sm:$0xff]
        %v4168 = vld [vmem:[#allocation16 + $0x520] sm:$0xff]
        %v4169 = vld [vmem:[#allocation16 + $0x528] sm:$0xff]
        %v4170 = vld [vmem:[#allocation16 + $0x530] sm:$0xff]
        %v4171 = vld [vmem:[#allocation16 + $0x538] sm:$0xff]
        %v4172 = vld [vmem:[#allocation16 + $0x540] sm:$0xff]
        %v4173 = vld [vmem:[#allocation16 + $0x548] sm:$0xff]
        %v4174 = vld [vmem:[#allocation16 + $0x550] sm:$0xff]
        %v4175 = vld [vmem:[#allocation16 + $0x558] sm:$0xff]
        %v4176 = vld [vmem:[#allocation16 + $0x560] sm:$0xff]
        %v4177 = vld [vmem:[#allocation16 + $0x568] sm:$0xff]
        %v4178 = vld [vmem:[#allocation16 + $0x570] sm:$0xff]
        %v4179 = vld [vmem:[#allocation16 + $0x578] sm:$0xff]
        %v4180 = vld [vmem:[#allocation16 + $0x580] sm:$0xff]
        %v4181 = vld [vmem:[#allocation16 + $0x588] sm:$0xff]
        %v4182 = vld [vmem:[#allocation16 + $0x590] sm:$0xff]
        %v4183 = vld [vmem:[#allocation16 + $0x598] sm:$0xff]
        %v4184 = vld [vmem:[#allocation16 + $0x5a0] sm:$0xff]
        %v4185 = vld [vmem:[#allocation16 + $0x5a8] sm:$0xff]
        %v4186 = vld [vmem:[#allocation16 + $0x5b0] sm:$0xff]
        %v4187 = vld [vmem:[#allocation16 + $0x5b8] sm:$0xff]
        %v4188 = vld [vmem:[#allocation16 + $0x5c0] sm:$0xff]
        %v4189 = vld [vmem:[#allocation16 + $0x5c8] sm:$0xff]
        %v4190 = vld [vmem:[#allocation16 + $0x5d0] sm:$0xff]
        %v4191 = vld [vmem:[#allocation16 + $0x5d8] sm:$0xff]
        %v4192 = vld [vmem:[#allocation16 + $0x5e0] sm:$0xff]
        %v4193 = vld [vmem:[#allocation16 + $0x5e8] sm:$0xff]
        %v4194 = vld [vmem:[#allocation16 + $0x5f0] sm:$0xff]
        %v4195 = vld [vmem:[#allocation16 + $0x5f8] sm:$0xff]
        %v4197 = vsel %vm2273, %v4161, 0
        %4199 = vmatprep.subr.mxu0 0.0
        %4200 = vmatpush1.msra.mxu0 0.0
        %4201 = vmatprep.subr.mxu0 0.0
        %4202 = vmatpush1.msra.mxu0 0.0
        %4203 = vmatprep.subr.mxu0 0.0
        %4204 = vmatpush1.msra.mxu0 0.0
        %4205 = vmatprep.subr.mxu0 0.0
        %4206 = vmatpush1.msra.mxu0 0.0
        %4207 = vmatprep.subr.mxu0 0.0
        %4208 = vmatpush1.msra.mxu0 0.0
        %4209 = vmatprep.subr.mxu0 0.0
        %4210 = vmatpush1.msra.mxu0 0.0
        %4211 = vmatprep.subr.mxu0 0.0
        %4212 = vmatpush1.msra.mxu0 0.0
        %4213 = vmatprep.subr.mxu0 0.0
        %4214 = vmatpush1.msra.mxu0 0.0
        %4215 = vmatprep.subr.mxu0 %v4193
        %4216 = vmatpush1.msra.mxu0 %v4192
        %4217 = vmatprep.subr.mxu0 %v4189
        %4218 = vmatpush1.msra.mxu0 %v4188
        %4219 = vmatprep.subr.mxu0 %v4185
        %4220 = vmatpush1.msra.mxu0 %v4184
        %4221 = vmatprep.subr.mxu0 %v4181
        %4222 = vmatpush1.msra.mxu0 %v4180
        %4223 = vmatprep.subr.mxu0 %v4177
        %4224 = vmatpush1.msra.mxu0 %v4176
        %4225 = vmatprep.subr.mxu0 %v4173
        %4226 = vmatpush1.msra.mxu0 %v4172
        %4227 = vmatprep.subr.mxu0 %v4169
        %4228 = vmatpush1.msra.mxu0 %v4168
        %4229 = vmatprep.subr.mxu0 %v4165
        %4230 = vmatpush1.msra.mxu0 %v4164
        %4231 = vmatprep.subr.mxu0 0.0
        %4232 = vmatpush2.msra.mxu0 0.0
        %4233 = vmatprep.subr.mxu0 0.0
        %4234 = vmatpush2.msra.mxu0 0.0
        %4235 = vmatprep.subr.mxu0 0.0
        %4236 = vmatpush2.msra.mxu0 0.0
        %4237 = vmatprep.subr.mxu0 0.0
        %4238 = vmatpush2.msra.mxu0 0.0
        %4239 = vmatprep.subr.mxu0 0.0
        %4240 = vmatpush2.msra.mxu0 0.0
        %4241 = vmatprep.subr.mxu0 0.0
        %4242 = vmatpush2.msra.mxu0 0.0
        %4243 = vmatprep.subr.mxu0 0.0
        %4244 = vmatpush2.msra.mxu0 0.0
        %4245 = vmatprep.subr.mxu0 0.0
        %4246 = vmatpush2.msra.mxu0 0.0
        %4247 = vmatprep.subr.mxu0 0.0
        %4248 = vmatpush2.msra.mxu0 0.0
        %4249 = vmatprep.subr.mxu0 0.0
        %4250 = vmatpush2.msra.mxu0 0.0
        %4251 = vmatprep.subr.mxu0 0.0
        %4252 = vmatpush2.msra.mxu0 0.0
        %4253 = vmatprep.subr.mxu0 0.0
        %4254 = vmatpush2.msra.mxu0 0.0
        %4255 = vmatprep.subr.mxu0 0.0
        %4256 = vmatpush2.msra.mxu0 0.0
        %4257 = vmatprep.subr.mxu0 0.0
        %4258 = vmatpush2.msra.mxu0 0.0
        %4259 = vmatprep.subr.mxu0 0.0
        %4260 = vmatpush2.msra.mxu0 0.0
        %4261 = vmatprep.subr.mxu0 0.0
        %4262 = vmatpush2.msra.mxu0 0.0
        %4263 = vmatprep.mubr.f32.mxu0 0.0
        %4264 = vmatmul.mubr.f32.gmra.mxu0 %v4197
        %v4265 = vpop.f32.mrf.mxu0
        %v4266 = vadd.f32 0.0, %v4265
        %v4267 = vpop.f32.mrf.mxu0
        %v4268 = vadd.f32 0.0, %v4267
        %4269 = vdwg.mxu0
        %4270 = vmatprep.subr.mxu0 0.0
        %4271 = vmatpush1.msra.mxu0 0.0
        %4272 = vmatprep.subr.mxu0 0.0
        %4273 = vmatpush1.msra.mxu0 0.0
        %4274 = vmatprep.subr.mxu0 0.0
        %4275 = vmatpush1.msra.mxu0 0.0
        %4276 = vmatprep.subr.mxu0 0.0
        %4277 = vmatpush1.msra.mxu0 0.0
        %4278 = vmatprep.subr.mxu0 0.0
        %4279 = vmatpush1.msra.mxu0 0.0
        %4280 = vmatprep.subr.mxu0 0.0
        %4281 = vmatpush1.msra.mxu0 0.0
        %4282 = vmatprep.subr.mxu0 0.0
        %4283 = vmatpush1.msra.mxu0 0.0
        %4284 = vmatprep.subr.mxu0 0.0
        %4285 = vmatpush1.msra.mxu0 0.0
        %4286 = vmatprep.subr.mxu0 %v4195
        %4287 = vmatpush1.msra.mxu0 %v4194
        %4288 = vmatprep.subr.mxu0 %v4191
        %4289 = vmatpush1.msra.mxu0 %v4190
        %4290 = vmatprep.subr.mxu0 %v4187
        %4291 = vmatpush1.msra.mxu0 %v4186
        %4292 = vmatprep.subr.mxu0 %v4183
        %4293 = vmatpush1.msra.mxu0 %v4182
        %4294 = vmatprep.subr.mxu0 %v4179
        %4295 = vmatpush1.msra.mxu0 %v4178
        %4296 = vmatprep.subr.mxu0 %v4175
        %4297 = vmatpush1.msra.mxu0 %v4174
        %4298 = vmatprep.subr.mxu0 %v4171
        %4299 = vmatpush1.msra.mxu0 %v4170
        %4300 = vmatprep.subr.mxu0 %v4167
        %4301 = vmatpush1.msra.mxu0 %v4166
        %4302 = vmatprep.subr.mxu0 0.0
        %4303 = vmatpush2.msra.mxu0 0.0
        %4304 = vmatprep.subr.mxu0 0.0
        %4305 = vmatpush2.msra.mxu0 0.0
        %4306 = vmatprep.subr.mxu0 0.0
        %4307 = vmatpush2.msra.mxu0 0.0
        %4308 = vmatprep.subr.mxu0 0.0
        %4309 = vmatpush2.msra.mxu0 0.0
        %4310 = vmatprep.subr.mxu0 0.0
        %4311 = vmatpush2.msra.mxu0 0.0
        %4312 = vmatprep.subr.mxu0 0.0
        %4313 = vmatpush2.msra.mxu0 0.0
        %4314 = vmatprep.subr.mxu0 0.0
        %4315 = vmatpush2.msra.mxu0 0.0
        %4316 = vmatprep.subr.mxu0 0.0
        %4317 = vmatpush2.msra.mxu0 0.0
        %4318 = vmatprep.subr.mxu0 0.0
        %4319 = vmatpush2.msra.mxu0 0.0
        %4320 = vmatprep.subr.mxu0 0.0
        %4321 = vmatpush2.msra.mxu0 0.0
        %4322 = vmatprep.subr.mxu0 0.0
        %4323 = vmatpush2.msra.mxu0 0.0
        %4324 = vmatprep.subr.mxu0 0.0
        %4325 = vmatpush2.msra.mxu0 0.0
        %4326 = vmatprep.subr.mxu0 0.0
        %4327 = vmatpush2.msra.mxu0 0.0
        %4328 = vmatprep.subr.mxu0 0.0
        %4329 = vmatpush2.msra.mxu0 0.0
        %4330 = vmatprep.subr.mxu0 0.0
        %4331 = vmatpush2.msra.mxu0 0.0
        %4332 = vmatprep.subr.mxu0 0.0
        %4333 = vmatpush2.msra.mxu0 0.0
        %4334 = vmatprep.mubr.f32.mxu0 0.0
        %4335 = vmatmul.mubr.f32.gmra.mxu0 %v4197
        %v4336 = vpop.f32.mrf.mxu0
        %v4337 = vadd.f32 0.0, %v4336
        %v4338 = vpop.f32.mrf.mxu0
        %v4339 = vadd.f32 0.0, %v4338
        %4340 = vdwg.mxu0
        %v4341 = vadd.f32 %v3994, %v4266
        %v4342 = vadd.f32 %v3995, %v4268
        %v4343 = vadd.f32 %v3996, %v4337
        %v4344 = vadd.f32 %v3997, %v4339
        %v4345 = vld [vmem:[#allocation2 + $0x18] sm:$0xff]
        %v4346 = vld [vmem:[#allocation3 + $0x18] sm:$0xff]
        %v4347 = vld [vmem:[#allocation4 + $0x18] sm:$0xff]
        %v4349 = vsel %vm2273, %v4345, 0
        %v4352 = vsel %vm2273, %v4346, 0
        %4354 = vmatprep.subr.mxu0 0.0
        %4355 = vmatpush1.xpose.msra.mxu0 0.0
        %4356 = vmatprep.subr.mxu0 0.0
        %4357 = vmatpush1.xpose.msra.mxu0 0.0
        %4358 = vmatprep.subr.mxu0 0.0
        %4359 = vmatpush1.xpose.msra.mxu0 0.0
        %4360 = vmatprep.subr.mxu0 0.0
        %4361 = vmatpush1.xpose.msra.mxu0 0.0
        %4362 = vmatprep.subr.mxu0 0.0
        %4363 = vmatpush1.xpose.msra.mxu0 0.0
        %4364 = vmatprep.subr.mxu0 0.0
        %4365 = vmatpush1.xpose.msra.mxu0 0.0
        %4366 = vmatprep.subr.mxu0 0.0
        %4367 = vmatpush1.xpose.msra.mxu0 0.0
        %4368 = vmatprep.subr.mxu0 0.0
        %4369 = vmatpush1.xpose.msra.mxu0 0.0
        %4370 = vmatprep.subr.mxu0 0.0
        %4371 = vmatpush1.xpose.msra.mxu0 0.0
        %4372 = vmatprep.subr.mxu0 0.0
        %4373 = vmatpush1.xpose.msra.mxu0 0.0
        %4374 = vmatprep.subr.mxu0 0.0
        %4375 = vmatpush1.xpose.msra.mxu0 0.0
        %4376 = vmatprep.subr.mxu0 0.0
        %4377 = vmatpush1.xpose.msra.mxu0 0.0
        %4378 = vmatprep.subr.mxu0 0.0
        %4379 = vmatpush1.xpose.msra.mxu0 0.0
        %4380 = vmatprep.subr.mxu0 0.0
        %4381 = vmatpush1.xpose.msra.mxu0 0.0
        %4382 = vmatprep.subr.mxu0 0.0
        %4383 = vmatpush1.xpose.msra.mxu0 0.0
        %4384 = vmatprep.subr.mxu0 0.0
        %4385 = vmatpush1.xpose.msra.mxu0 %v4352
        %4386 = vmatprep.subr.mxu0 0.0
        %4387 = vmatpush2.xpose.msra.mxu0 0.0
        %4388 = vmatprep.subr.mxu0 0.0
        %4389 = vmatpush2.xpose.msra.mxu0 0.0
        %4390 = vmatprep.subr.mxu0 0.0
        %4391 = vmatpush2.xpose.msra.mxu0 0.0
        %4392 = vmatprep.subr.mxu0 0.0
        %4393 = vmatpush2.xpose.msra.mxu0 0.0
        %4394 = vmatprep.subr.mxu0 0.0
        %4395 = vmatpush2.xpose.msra.mxu0 0.0
        %4396 = vmatprep.subr.mxu0 0.0
        %4397 = vmatpush2.xpose.msra.mxu0 0.0
        %4398 = vmatprep.subr.mxu0 0.0
        %4399 = vmatpush2.xpose.msra.mxu0 0.0
        %4400 = vmatprep.subr.mxu0 0.0
        %4401 = vmatpush2.xpose.msra.mxu0 0.0
        %4402 = vmatprep.subr.mxu0 0.0
        %4403 = vmatpush2.xpose.msra.mxu0 0.0
        %4404 = vmatprep.subr.mxu0 0.0
        %4405 = vmatpush2.xpose.msra.mxu0 0.0
        %4406 = vmatprep.subr.mxu0 0.0
        %4407 = vmatpush2.xpose.msra.mxu0 0.0
        %4408 = vmatprep.subr.mxu0 0.0
        %4409 = vmatpush2.xpose.msra.mxu0 0.0
        %4410 = vmatprep.subr.mxu0 0.0
        %4411 = vmatpush2.xpose.msra.mxu0 0.0
        %4412 = vmatprep.subr.mxu0 0.0
        %4413 = vmatpush2.xpose.msra.mxu0 0.0
        %4414 = vmatprep.subr.mxu0 0.0
        %4415 = vmatpush2.xpose.msra.mxu0 0.0
        %4416 = vmatprep.subr.mxu0 0.0
        %4417 = vmatpush2.xpose.msra.mxu0 0.0
        %4418 = vmatprep.mubr.f32.mxu0 0.0
        %4419 = vmatmul.mubr.f32.gmra.mxu0 %v4349
        %v4420 = vpop.f32.mrf.mxu0
        %v4421 = vadd.f32 0.0, %v4420
        %v4422 = vpop.f32.mrf.mxu0
        %4423 = vdwg.mxu0
        %v4424 = vsel %vm2350, %v4421, -inf
        %4425 = vmax.xlane.f32.xlu0 %v4424
        %v4426 = vpop.xlane.xlu0 %4425
        %v4427 = vsub.f32 %v4421, %v4426
        %v4428 = vmul.f32 %v4427, 1.442695
        %v4429 = vpow.pop %v4428
        %v4430 = vsel %vm2350, %v4429, 0.0
        %4431 = vadd.xlane.f32.xlu0 %v4430
        %v4432 = vpop.xlane.xlu0 %4431
        %v4433 = vrcp.pop %v4432
        %v4434 = vmul.f32 %v4429, %v4433
        %v4436 = vsel %vm2350, %v4434, 0
        %4438 = vmatprep.subr.mxu0 0.0
        %4439 = vmatpush1.msra.mxu0 0.0
        %4440 = vmatprep.subr.mxu0 0.0
        %4441 = vmatpush1.msra.mxu0 0.0
        %4442 = vmatprep.subr.mxu0 0.0
        %4443 = vmatpush1.msra.mxu0 0.0
        %4444 = vmatprep.subr.mxu0 0.0
        %4445 = vmatpush1.msra.mxu0 0.0
        %4446 = vmatprep.subr.mxu0 0.0
        %4447 = vmatpush1.msra.mxu0 0.0
        %4448 = vmatprep.subr.mxu0 0.0
        %4449 = vmatpush1.msra.mxu0 0.0
        %4450 = vmatprep.subr.mxu0 0.0
        %4451 = vmatpush1.msra.mxu0 0.0
        %4452 = vmatprep.subr.mxu0 0.0
        %4453 = vmatpush1.msra.mxu0 0.0
        %4454 = vmatprep.subr.mxu0 0.0
        %4455 = vmatpush1.msra.mxu0 0.0
        %4456 = vmatprep.subr.mxu0 0.0
        %4457 = vmatpush1.msra.mxu0 0.0
        %4458 = vmatprep.subr.mxu0 0.0
        %4459 = vmatpush1.msra.mxu0 0.0
        %4460 = vmatprep.subr.mxu0 0.0
        %4461 = vmatpush1.msra.mxu0 0.0
        %4462 = vmatprep.subr.mxu0 0.0
        %4463 = vmatpush1.msra.mxu0 0.0
        %4464 = vmatprep.subr.mxu0 0.0
        %4465 = vmatpush1.msra.mxu0 0.0
        %4466 = vmatprep.subr.mxu0 0.0
        %4467 = vmatpush1.msra.mxu0 0.0
        %4468 = vmatprep.subr.mxu0 0.0
        %4469 = vmatpush1.msra.mxu0 %v4347
        %4470 = vmatprep.subr.mxu0 0.0
        %4471 = vmatpush2.msra.mxu0 0.0
        %4472 = vmatprep.subr.mxu0 0.0
        %4473 = vmatpush2.msra.mxu0 0.0
        %4474 = vmatprep.subr.mxu0 0.0
        %4475 = vmatpush2.msra.mxu0 0.0
        %4476 = vmatprep.subr.mxu0 0.0
        %4477 = vmatpush2.msra.mxu0 0.0
        %4478 = vmatprep.subr.mxu0 0.0
        %4479 = vmatpush2.msra.mxu0 0.0
        %4480 = vmatprep.subr.mxu0 0.0
        %4481 = vmatpush2.msra.mxu0 0.0
        %4482 = vmatprep.subr.mxu0 0.0
        %4483 = vmatpush2.msra.mxu0 0.0
        %4484 = vmatprep.subr.mxu0 0.0
        %4485 = vmatpush2.msra.mxu0 0.0
        %4486 = vmatprep.subr.mxu0 0.0
        %4487 = vmatpush2.msra.mxu0 0.0
        %4488 = vmatprep.subr.mxu0 0.0
        %4489 = vmatpush2.msra.mxu0 0.0
        %4490 = vmatprep.subr.mxu0 0.0
        %4491 = vmatpush2.msra.mxu0 0.0
        %4492 = vmatprep.subr.mxu0 0.0
        %4493 = vmatpush2.msra.mxu0 0.0
        %4494 = vmatprep.subr.mxu0 0.0
        %4495 = vmatpush2.msra.mxu0 0.0
        %4496 = vmatprep.subr.mxu0 0.0
        %4497 = vmatpush2.msra.mxu0 0.0
        %4498 = vmatprep.subr.mxu0 0.0
        %4499 = vmatpush2.msra.mxu0 0.0
        %4500 = vmatprep.subr.mxu0 0.0
        %4501 = vmatpush2.msra.mxu0 0.0
        %4502 = vmatprep.mubr.f32.mxu0 0.0
        %4503 = vmatmul.mubr.f32.gmra.mxu0 %v4436
        %v4504 = vpop.f32.mrf.mxu0
        %v4505 = vadd.f32 0.0, %v4504
        %v4506 = vpop.f32.mrf.mxu0
        %4507 = vdwg.mxu0
        %v4508 = vld [vmem:[#allocation16 + $0x600] sm:$0xff]
        %v4509 = vld [vmem:[#allocation16 + $0x608] sm:$0xff]
        %v4510 = vld [vmem:[#allocation16 + $0x610] sm:$0xff]
        %v4511 = vld [vmem:[#allocation16 + $0x618] sm:$0xff]
        %v4512 = vld [vmem:[#allocation16 + $0x620] sm:$0xff]
        %v4513 = vld [vmem:[#allocation16 + $0x628] sm:$0xff]
        %v4514 = vld [vmem:[#allocation16 + $0x630] sm:$0xff]
        %v4515 = vld [vmem:[#allocation16 + $0x638] sm:$0xff]
        %v4516 = vld [vmem:[#allocation16 + $0x640] sm:$0xff]
        %v4517 = vld [vmem:[#allocation16 + $0x648] sm:$0xff]
        %v4518 = vld [vmem:[#allocation16 + $0x650] sm:$0xff]
        %v4519 = vld [vmem:[#allocation16 + $0x658] sm:$0xff]
        %v4520 = vld [vmem:[#allocation16 + $0x660] sm:$0xff]
        %v4521 = vld [vmem:[#allocation16 + $0x668] sm:$0xff]
        %v4522 = vld [vmem:[#allocation16 + $0x670] sm:$0xff]
        %v4523 = vld [vmem:[#allocation16 + $0x678] sm:$0xff]
        %v4524 = vld [vmem:[#allocation16 + $0x680] sm:$0xff]
        %v4525 = vld [vmem:[#allocation16 + $0x688] sm:$0xff]
        %v4526 = vld [vmem:[#allocation16 + $0x690] sm:$0xff]
        %v4527 = vld [vmem:[#allocation16 + $0x698] sm:$0xff]
        %v4528 = vld [vmem:[#allocation16 + $0x6a0] sm:$0xff]
        %v4529 = vld [vmem:[#allocation16 + $0x6a8] sm:$0xff]
        %v4530 = vld [vmem:[#allocation16 + $0x6b0] sm:$0xff]
        %v4531 = vld [vmem:[#allocation16 + $0x6b8] sm:$0xff]
        %v4532 = vld [vmem:[#allocation16 + $0x6c0] sm:$0xff]
        %v4533 = vld [vmem:[#allocation16 + $0x6c8] sm:$0xff]
        %v4534 = vld [vmem:[#allocation16 + $0x6d0] sm:$0xff]
        %v4535 = vld [vmem:[#allocation16 + $0x6d8] sm:$0xff]
        %v4536 = vld [vmem:[#allocation16 + $0x6e0] sm:$0xff]
        %v4537 = vld [vmem:[#allocation16 + $0x6e8] sm:$0xff]
        %v4538 = vld [vmem:[#allocation16 + $0x6f0] sm:$0xff]
        %v4539 = vld [vmem:[#allocation16 + $0x6f8] sm:$0xff]
        %v4541 = vsel %vm2273, %v4505, 0
        %4543 = vmatprep.subr.mxu0 0.0
        %4544 = vmatpush1.msra.mxu0 0.0
        %4545 = vmatprep.subr.mxu0 0.0
        %4546 = vmatpush1.msra.mxu0 0.0
        %4547 = vmatprep.subr.mxu0 0.0
        %4548 = vmatpush1.msra.mxu0 0.0
        %4549 = vmatprep.subr.mxu0 0.0
        %4550 = vmatpush1.msra.mxu0 0.0
        %4551 = vmatprep.subr.mxu0 0.0
        %4552 = vmatpush1.msra.mxu0 0.0
        %4553 = vmatprep.subr.mxu0 0.0
        %4554 = vmatpush1.msra.mxu0 0.0
        %4555 = vmatprep.subr.mxu0 0.0
        %4556 = vmatpush1.msra.mxu0 0.0
        %4557 = vmatprep.subr.mxu0 0.0
        %4558 = vmatpush1.msra.mxu0 0.0
        %4559 = vmatprep.subr.mxu0 %v4537
        %4560 = vmatpush1.msra.mxu0 %v4536
        %4561 = vmatprep.subr.mxu0 %v4533
        %4562 = vmatpush1.msra.mxu0 %v4532
        %4563 = vmatprep.subr.mxu0 %v4529
        %4564 = vmatpush1.msra.mxu0 %v4528
        %4565 = vmatprep.subr.mxu0 %v4525
        %4566 = vmatpush1.msra.mxu0 %v4524
        %4567 = vmatprep.subr.mxu0 %v4521
        %4568 = vmatpush1.msra.mxu0 %v4520
        %4569 = vmatprep.subr.mxu0 %v4517
        %4570 = vmatpush1.msra.mxu0 %v4516
        %4571 = vmatprep.subr.mxu0 %v4513
        %4572 = vmatpush1.msra.mxu0 %v4512
        %4573 = vmatprep.subr.mxu0 %v4509
        %4574 = vmatpush1.msra.mxu0 %v4508
        %4575 = vmatprep.subr.mxu0 0.0
        %4576 = vmatpush2.msra.mxu0 0.0
        %4577 = vmatprep.subr.mxu0 0.0
        %4578 = vmatpush2.msra.mxu0 0.0
        %4579 = vmatprep.subr.mxu0 0.0
        %4580 = vmatpush2.msra.mxu0 0.0
        %4581 = vmatprep.subr.mxu0 0.0
        %4582 = vmatpush2.msra.mxu0 0.0
        %4583 = vmatprep.subr.mxu0 0.0
        %4584 = vmatpush2.msra.mxu0 0.0
        %4585 = vmatprep.subr.mxu0 0.0
        %4586 = vmatpush2.msra.mxu0 0.0
        %4587 = vmatprep.subr.mxu0 0.0
        %4588 = vmatpush2.msra.mxu0 0.0
        %4589 = vmatprep.subr.mxu0 0.0
        %4590 = vmatpush2.msra.mxu0 0.0
        %4591 = vmatprep.subr.mxu0 0.0
        %4592 = vmatpush2.msra.mxu0 0.0
        %4593 = vmatprep.subr.mxu0 0.0
        %4594 = vmatpush2.msra.mxu0 0.0
        %4595 = vmatprep.subr.mxu0 0.0
        %4596 = vmatpush2.msra.mxu0 0.0
        %4597 = vmatprep.subr.mxu0 0.0
        %4598 = vmatpush2.msra.mxu0 0.0
        %4599 = vmatprep.subr.mxu0 0.0
        %4600 = vmatpush2.msra.mxu0 0.0
        %4601 = vmatprep.subr.mxu0 0.0
        %4602 = vmatpush2.msra.mxu0 0.0
        %4603 = vmatprep.subr.mxu0 0.0
        %4604 = vmatpush2.msra.mxu0 0.0
        %4605 = vmatprep.subr.mxu0 0.0
        %4606 = vmatpush2.msra.mxu0 0.0
        %4607 = vmatprep.mubr.f32.mxu0 0.0
        %4608 = vmatmul.mubr.f32.gmra.mxu0 %v4541
        %v4609 = vpop.f32.mrf.mxu0
        %v4610 = vadd.f32 0.0, %v4609
        %v4611 = vpop.f32.mrf.mxu0
        %v4612 = vadd.f32 0.0, %v4611
        %4613 = vdwg.mxu0
        %4614 = vmatprep.subr.mxu0 0.0
        %4615 = vmatpush1.msra.mxu0 0.0
        %4616 = vmatprep.subr.mxu0 0.0
        %4617 = vmatpush1.msra.mxu0 0.0
        %4618 = vmatprep.subr.mxu0 0.0
        %4619 = vmatpush1.msra.mxu0 0.0
        %4620 = vmatprep.subr.mxu0 0.0
        %4621 = vmatpush1.msra.mxu0 0.0
        %4622 = vmatprep.subr.mxu0 0.0
        %4623 = vmatpush1.msra.mxu0 0.0
        %4624 = vmatprep.subr.mxu0 0.0
        %4625 = vmatpush1.msra.mxu0 0.0
        %4626 = vmatprep.subr.mxu0 0.0
        %4627 = vmatpush1.msra.mxu0 0.0
        %4628 = vmatprep.subr.mxu0 0.0
        %4629 = vmatpush1.msra.mxu0 0.0
        %4630 = vmatprep.subr.mxu0 %v4539
        %4631 = vmatpush1.msra.mxu0 %v4538
        %4632 = vmatprep.subr.mxu0 %v4535
        %4633 = vmatpush1.msra.mxu0 %v4534
        %4634 = vmatprep.subr.mxu0 %v4531
        %4635 = vmatpush1.msra.mxu0 %v4530
        %4636 = vmatprep.subr.mxu0 %v4527
        %4637 = vmatpush1.msra.mxu0 %v4526
        %4638 = vmatprep.subr.mxu0 %v4523
        %4639 = vmatpush1.msra.mxu0 %v4522
        %4640 = vmatprep.subr.mxu0 %v4519
        %4641 = vmatpush1.msra.mxu0 %v4518
        %4642 = vmatprep.subr.mxu0 %v4515
        %4643 = vmatpush1.msra.mxu0 %v4514
        %4644 = vmatprep.subr.mxu0 %v4511
        %4645 = vmatpush1.msra.mxu0 %v4510
        %4646 = vmatprep.subr.mxu0 0.0
        %4647 = vmatpush2.msra.mxu0 0.0
        %4648 = vmatprep.subr.mxu0 0.0
        %4649 = vmatpush2.msra.mxu0 0.0
        %4650 = vmatprep.subr.mxu0 0.0
        %4651 = vmatpush2.msra.mxu0 0.0
        %4652 = vmatprep.subr.mxu0 0.0
        %4653 = vmatpush2.msra.mxu0 0.0
        %4654 = vmatprep.subr.mxu0 0.0
        %4655 = vmatpush2.msra.mxu0 0.0
        %4656 = vmatprep.subr.mxu0 0.0
        %4657 = vmatpush2.msra.mxu0 0.0
        %4658 = vmatprep.subr.mxu0 0.0
        %4659 = vmatpush2.msra.mxu0 0.0
        %4660 = vmatprep.subr.mxu0 0.0
        %4661 = vmatpush2.msra.mxu0 0.0
        %4662 = vmatprep.subr.mxu0 0.0
        %4663 = vmatpush2.msra.mxu0 0.0
        %4664 = vmatprep.subr.mxu0 0.0
        %4665 = vmatpush2.msra.mxu0 0.0
        %4666 = vmatprep.subr.mxu0 0.0
        %4667 = vmatpush2.msra.mxu0 0.0
        %4668 = vmatprep.subr.mxu0 0.0
        %4669 = vmatpush2.msra.mxu0 0.0
        %4670 = vmatprep.subr.mxu0 0.0
        %4671 = vmatpush2.msra.mxu0 0.0
        %4672 = vmatprep.subr.mxu0 0.0
        %4673 = vmatpush2.msra.mxu0 0.0
        %4674 = vmatprep.subr.mxu0 0.0
        %4675 = vmatpush2.msra.mxu0 0.0
        %4676 = vmatprep.subr.mxu0 0.0
        %4677 = vmatpush2.msra.mxu0 0.0
        %4678 = vmatprep.mubr.f32.mxu0 0.0
        %4679 = vmatmul.mubr.f32.gmra.mxu0 %v4541
        %v4680 = vpop.f32.mrf.mxu0
        %v4681 = vadd.f32 0.0, %v4680
        %v4682 = vpop.f32.mrf.mxu0
        %v4683 = vadd.f32 0.0, %v4682
        %4684 = vdwg.mxu0
        %v4685 = vadd.f32 %v4341, %v4610
        %v4686 = vadd.f32 %v4342, %v4612
        %v4687 = vadd.f32 %v4343, %v4681
        %v4688 = vadd.f32 %v4344, %v4683
        %4689 = vrot.lane.b32.xlu0 %v4345, 64
        %v4690 = vpop.permute.xlu0 %4689
        %4691 = vrot.lane.b32.xlu0 %v4346, 64
        %v4692 = vpop.permute.xlu0 %4691
        %v4693 = vsel %vm2273, %v4690, 0
        %v4695 = vsel %vm2273, %v4692, 0
        %4697 = vmatprep.subr.mxu0 0.0
        %4698 = vmatpush1.xpose.msra.mxu0 0.0
        %4699 = vmatprep.subr.mxu0 0.0
        %4700 = vmatpush1.xpose.msra.mxu0 0.0
        %4701 = vmatprep.subr.mxu0 0.0
        %4702 = vmatpush1.xpose.msra.mxu0 0.0
        %4703 = vmatprep.subr.mxu0 0.0
        %4704 = vmatpush1.xpose.msra.mxu0 0.0
        %4705 = vmatprep.subr.mxu0 0.0
        %4706 = vmatpush1.xpose.msra.mxu0 0.0
        %4707 = vmatprep.subr.mxu0 0.0
        %4708 = vmatpush1.xpose.msra.mxu0 0.0
        %4709 = vmatprep.subr.mxu0 0.0
        %4710 = vmatpush1.xpose.msra.mxu0 0.0
        %4711 = vmatprep.subr.mxu0 0.0
        %4712 = vmatpush1.xpose.msra.mxu0 0.0
        %4713 = vmatprep.subr.mxu0 0.0
        %4714 = vmatpush1.xpose.msra.mxu0 0.0
        %4715 = vmatprep.subr.mxu0 0.0
        %4716 = vmatpush1.xpose.msra.mxu0 0.0
        %4717 = vmatprep.subr.mxu0 0.0
        %4718 = vmatpush1.xpose.msra.mxu0 0.0
        %4719 = vmatprep.subr.mxu0 0.0
        %4720 = vmatpush1.xpose.msra.mxu0 0.0
        %4721 = vmatprep.subr.mxu0 0.0
        %4722 = vmatpush1.xpose.msra.mxu0 0.0
        %4723 = vmatprep.subr.mxu0 0.0
        %4724 = vmatpush1.xpose.msra.mxu0 0.0
        %4725 = vmatprep.subr.mxu0 0.0
        %4726 = vmatpush1.xpose.msra.mxu0 0.0
        %4727 = vmatprep.subr.mxu0 0.0
        %4728 = vmatpush1.xpose.msra.mxu0 %v4695
        %4729 = vmatprep.subr.mxu0 0.0
        %4730 = vmatpush2.xpose.msra.mxu0 0.0
        %4731 = vmatprep.subr.mxu0 0.0
        %4732 = vmatpush2.xpose.msra.mxu0 0.0
        %4733 = vmatprep.subr.mxu0 0.0
        %4734 = vmatpush2.xpose.msra.mxu0 0.0
        %4735 = vmatprep.subr.mxu0 0.0
        %4736 = vmatpush2.xpose.msra.mxu0 0.0
        %4737 = vmatprep.subr.mxu0 0.0
        %4738 = vmatpush2.xpose.msra.mxu0 0.0
        %4739 = vmatprep.subr.mxu0 0.0
        %4740 = vmatpush2.xpose.msra.mxu0 0.0
        %4741 = vmatprep.subr.mxu0 0.0
        %4742 = vmatpush2.xpose.msra.mxu0 0.0
        %4743 = vmatprep.subr.mxu0 0.0
        %4744 = vmatpush2.xpose.msra.mxu0 0.0
        %4745 = vmatprep.subr.mxu0 0.0
        %4746 = vmatpush2.xpose.msra.mxu0 0.0
        %4747 = vmatprep.subr.mxu0 0.0
        %4748 = vmatpush2.xpose.msra.mxu0 0.0
        %4749 = vmatprep.subr.mxu0 0.0
        %4750 = vmatpush2.xpose.msra.mxu0 0.0
        %4751 = vmatprep.subr.mxu0 0.0
        %4752 = vmatpush2.xpose.msra.mxu0 0.0
        %4753 = vmatprep.subr.mxu0 0.0
        %4754 = vmatpush2.xpose.msra.mxu0 0.0
        %4755 = vmatprep.subr.mxu0 0.0
        %4756 = vmatpush2.xpose.msra.mxu0 0.0
        %4757 = vmatprep.subr.mxu0 0.0
        %4758 = vmatpush2.xpose.msra.mxu0 0.0
        %4759 = vmatprep.subr.mxu0 0.0
        %4760 = vmatpush2.xpose.msra.mxu0 0.0
        %4761 = vmatprep.mubr.f32.mxu0 0.0
        %4762 = vmatmul.mubr.f32.gmra.mxu0 %v4693
        %v4763 = vpop.f32.mrf.mxu0
        %v4764 = vadd.f32 0.0, %v4763
        %v4765 = vpop.f32.mrf.mxu0
        %4766 = vdwg.mxu0
        %v4767 = vsel %vm2350, %v4764, -inf
        %4768 = vmax.xlane.f32.xlu0 %v4767
        %v4769 = vpop.xlane.xlu0 %4768
        %v4770 = vsub.f32 %v4764, %v4769
        %v4771 = vmul.f32 %v4770, 1.442695
        %v4772 = vpow.pop %v4771
        %v4773 = vsel %vm2350, %v4772, 0.0
        %4774 = vadd.xlane.f32.xlu0 %v4773
        %v4775 = vpop.xlane.xlu0 %4774
        %v4776 = vrcp.pop %v4775
        %v4777 = vmul.f32 %v4772, %v4776
        %4779 = vrot.lane.b32.xlu0 %v4347, 64
        %v4780 = vpop.permute.xlu0 %4779
        %v4783 = vsel %vm2350, %v4777, 0
        %4785 = vmatprep.subr.mxu0 0.0
        %4786 = vmatpush1.msra.mxu0 0.0
        %4787 = vmatprep.subr.mxu0 0.0
        %4788 = vmatpush1.msra.mxu0 0.0
        %4789 = vmatprep.subr.mxu0 0.0
        %4790 = vmatpush1.msra.mxu0 0.0
        %4791 = vmatprep.subr.mxu0 0.0
        %4792 = vmatpush1.msra.mxu0 0.0
        %4793 = vmatprep.subr.mxu0 0.0
        %4794 = vmatpush1.msra.mxu0 0.0
        %4795 = vmatprep.subr.mxu0 0.0
        %4796 = vmatpush1.msra.mxu0 0.0
        %4797 = vmatprep.subr.mxu0 0.0
        %4798 = vmatpush1.msra.mxu0 0.0
        %4799 = vmatprep.subr.mxu0 0.0
        %4800 = vmatpush1.msra.mxu0 0.0
        %4801 = vmatprep.subr.mxu0 0.0
        %4802 = vmatpush1.msra.mxu0 0.0
        %4803 = vmatprep.subr.mxu0 0.0
        %4804 = vmatpush1.msra.mxu0 0.0
        %4805 = vmatprep.subr.mxu0 0.0
        %4806 = vmatpush1.msra.mxu0 0.0
        %4807 = vmatprep.subr.mxu0 0.0
        %4808 = vmatpush1.msra.mxu0 0.0
        %4809 = vmatprep.subr.mxu0 0.0
        %4810 = vmatpush1.msra.mxu0 0.0
        %4811 = vmatprep.subr.mxu0 0.0
        %4812 = vmatpush1.msra.mxu0 0.0
        %4813 = vmatprep.subr.mxu0 0.0
        %4814 = vmatpush1.msra.mxu0 0.0
        %4815 = vmatprep.subr.mxu0 0.0
        %4816 = vmatpush1.msra.mxu0 %v4780
        %4817 = vmatprep.subr.mxu0 0.0
        %4818 = vmatpush2.msra.mxu0 0.0
        %4819 = vmatprep.subr.mxu0 0.0
        %4820 = vmatpush2.msra.mxu0 0.0
        %4821 = vmatprep.subr.mxu0 0.0
        %4822 = vmatpush2.msra.mxu0 0.0
        %4823 = vmatprep.subr.mxu0 0.0
        %4824 = vmatpush2.msra.mxu0 0.0
        %4825 = vmatprep.subr.mxu0 0.0
        %4826 = vmatpush2.msra.mxu0 0.0
        %4827 = vmatprep.subr.mxu0 0.0
        %4828 = vmatpush2.msra.mxu0 0.0
        %4829 = vmatprep.subr.mxu0 0.0
        %4830 = vmatpush2.msra.mxu0 0.0
        %4831 = vmatprep.subr.mxu0 0.0
        %4832 = vmatpush2.msra.mxu0 0.0
        %4833 = vmatprep.subr.mxu0 0.0
        %4834 = vmatpush2.msra.mxu0 0.0
        %4835 = vmatprep.subr.mxu0 0.0
        %4836 = vmatpush2.msra.mxu0 0.0
        %4837 = vmatprep.subr.mxu0 0.0
        %4838 = vmatpush2.msra.mxu0 0.0
        %4839 = vmatprep.subr.mxu0 0.0
        %4840 = vmatpush2.msra.mxu0 0.0
        %4841 = vmatprep.subr.mxu0 0.0
        %4842 = vmatpush2.msra.mxu0 0.0
        %4843 = vmatprep.subr.mxu0 0.0
        %4844 = vmatpush2.msra.mxu0 0.0
        %4845 = vmatprep.subr.mxu0 0.0
        %4846 = vmatpush2.msra.mxu0 0.0
        %4847 = vmatprep.subr.mxu0 0.0
        %4848 = vmatpush2.msra.mxu0 0.0
        %4849 = vmatprep.mubr.f32.mxu0 0.0
        %4850 = vmatmul.mubr.f32.gmra.mxu0 %v4783
        %v4851 = vpop.f32.mrf.mxu0
        %v4852 = vadd.f32 0.0, %v4851
        %v4853 = vpop.f32.mrf.mxu0
        %4854 = vdwg.mxu0
        %v4855 = vld [vmem:[#allocation16 + $0x700] sm:$0xff]
        %v4856 = vld [vmem:[#allocation16 + $0x708] sm:$0xff]
        %v4857 = vld [vmem:[#allocation16 + $0x710] sm:$0xff]
        %v4858 = vld [vmem:[#allocation16 + $0x718] sm:$0xff]
        %v4859 = vld [vmem:[#allocation16 + $0x720] sm:$0xff]
        %v4860 = vld [vmem:[#allocation16 + $0x728] sm:$0xff]
        %v4861 = vld [vmem:[#allocation16 + $0x730] sm:$0xff]
        %v4862 = vld [vmem:[#allocation16 + $0x738] sm:$0xff]
        %v4863 = vld [vmem:[#allocation16 + $0x740] sm:$0xff]
        %v4864 = vld [vmem:[#allocation16 + $0x748] sm:$0xff]
        %v4865 = vld [vmem:[#allocation16 + $0x750] sm:$0xff]
        %v4866 = vld [vmem:[#allocation16 + $0x758] sm:$0xff]
        %v4867 = vld [vmem:[#allocation16 + $0x760] sm:$0xff]
        %v4868 = vld [vmem:[#allocation16 + $0x768] sm:$0xff]
        %v4869 = vld [vmem:[#allocation16 + $0x770] sm:$0xff]
        %v4870 = vld [vmem:[#allocation16 + $0x778] sm:$0xff]
        %v4871 = vld [vmem:[#allocation16 + $0x780] sm:$0xff]
        %v4872 = vld [vmem:[#allocation16 + $0x788] sm:$0xff]
        %v4873 = vld [vmem:[#allocation16 + $0x790] sm:$0xff]
        %v4874 = vld [vmem:[#allocation16 + $0x798] sm:$0xff]
        %v4875 = vld [vmem:[#allocation16 + $0x7a0] sm:$0xff]
        %v4876 = vld [vmem:[#allocation16 + $0x7a8] sm:$0xff]
        %v4877 = vld [vmem:[#allocation16 + $0x7b0] sm:$0xff]
        %v4878 = vld [vmem:[#allocation16 + $0x7b8] sm:$0xff]
        %v4879 = vld [vmem:[#allocation16 + $0x7c0] sm:$0xff]
        %v4880 = vld [vmem:[#allocation16 + $0x7c8] sm:$0xff]
        %v4881 = vld [vmem:[#allocation16 + $0x7d0] sm:$0xff]
        %v4882 = vld [vmem:[#allocation16 + $0x7d8] sm:$0xff]
        %v4883 = vld [vmem:[#allocation16 + $0x7e0] sm:$0xff]
        %v4884 = vld [vmem:[#allocation16 + $0x7e8] sm:$0xff]
        %v4885 = vld [vmem:[#allocation16 + $0x7f0] sm:$0xff]
        %v4886 = vld [vmem:[#allocation16 + $0x7f8] sm:$0xff]
        %v4888 = vsel %vm2273, %v4852, 0
        %4890 = vmatprep.subr.mxu0 0.0
        %4891 = vmatpush1.msra.mxu0 0.0
        %4892 = vmatprep.subr.mxu0 0.0
        %4893 = vmatpush1.msra.mxu0 0.0
        %4894 = vmatprep.subr.mxu0 0.0
        %4895 = vmatpush1.msra.mxu0 0.0
        %4896 = vmatprep.subr.mxu0 0.0
        %4897 = vmatpush1.msra.mxu0 0.0
        %4898 = vmatprep.subr.mxu0 0.0
        %4899 = vmatpush1.msra.mxu0 0.0
        %4900 = vmatprep.subr.mxu0 0.0
        %4901 = vmatpush1.msra.mxu0 0.0
        %4902 = vmatprep.subr.mxu0 0.0
        %4903 = vmatpush1.msra.mxu0 0.0
        %4904 = vmatprep.subr.mxu0 0.0
        %4905 = vmatpush1.msra.mxu0 0.0
        %4906 = vmatprep.subr.mxu0 %v4884
        %4907 = vmatpush1.msra.mxu0 %v4883
        %4908 = vmatprep.subr.mxu0 %v4880
        %4909 = vmatpush1.msra.mxu0 %v4879
        %4910 = vmatprep.subr.mxu0 %v4876
        %4911 = vmatpush1.msra.mxu0 %v4875
        %4912 = vmatprep.subr.mxu0 %v4872
        %4913 = vmatpush1.msra.mxu0 %v4871
        %4914 = vmatprep.subr.mxu0 %v4868
        %4915 = vmatpush1.msra.mxu0 %v4867
        %4916 = vmatprep.subr.mxu0 %v4864
        %4917 = vmatpush1.msra.mxu0 %v4863
        %4918 = vmatprep.subr.mxu0 %v4860
        %4919 = vmatpush1.msra.mxu0 %v4859
        %4920 = vmatprep.subr.mxu0 %v4856
        %4921 = vmatpush1.msra.mxu0 %v4855
        %4922 = vmatprep.subr.mxu0 0.0
        %4923 = vmatpush2.msra.mxu0 0.0
        %4924 = vmatprep.subr.mxu0 0.0
        %4925 = vmatpush2.msra.mxu0 0.0
        %4926 = vmatprep.subr.mxu0 0.0
        %4927 = vmatpush2.msra.mxu0 0.0
        %4928 = vmatprep.subr.mxu0 0.0
        %4929 = vmatpush2.msra.mxu0 0.0
        %4930 = vmatprep.subr.mxu0 0.0
        %4931 = vmatpush2.msra.mxu0 0.0
        %4932 = vmatprep.subr.mxu0 0.0
        %4933 = vmatpush2.msra.mxu0 0.0
        %4934 = vmatprep.subr.mxu0 0.0
        %4935 = vmatpush2.msra.mxu0 0.0
        %4936 = vmatprep.subr.mxu0 0.0
        %4937 = vmatpush2.msra.mxu0 0.0
        %4938 = vmatprep.subr.mxu0 0.0
        %4939 = vmatpush2.msra.mxu0 0.0
        %4940 = vmatprep.subr.mxu0 0.0
        %4941 = vmatpush2.msra.mxu0 0.0
        %4942 = vmatprep.subr.mxu0 0.0
        %4943 = vmatpush2.msra.mxu0 0.0
        %4944 = vmatprep.subr.mxu0 0.0
        %4945 = vmatpush2.msra.mxu0 0.0
        %4946 = vmatprep.subr.mxu0 0.0
        %4947 = vmatpush2.msra.mxu0 0.0
        %4948 = vmatprep.subr.mxu0 0.0
        %4949 = vmatpush2.msra.mxu0 0.0
        %4950 = vmatprep.subr.mxu0 0.0
        %4951 = vmatpush2.msra.mxu0 0.0
        %4952 = vmatprep.subr.mxu0 0.0
        %4953 = vmatpush2.msra.mxu0 0.0
        %4954 = vmatprep.mubr.f32.mxu0 0.0
        %4955 = vmatmul.mubr.f32.gmra.mxu0 %v4888
        %v4956 = vpop.f32.mrf.mxu0
        %v4957 = vadd.f32 0.0, %v4956
        %v4958 = vpop.f32.mrf.mxu0
        %v4959 = vadd.f32 0.0, %v4958
        %4960 = vdwg.mxu0
        %4961 = vmatprep.subr.mxu0 0.0
        %4962 = vmatpush1.msra.mxu0 0.0
        %4963 = vmatprep.subr.mxu0 0.0
        %4964 = vmatpush1.msra.mxu0 0.0
        %4965 = vmatprep.subr.mxu0 0.0
        %4966 = vmatpush1.msra.mxu0 0.0
        %4967 = vmatprep.subr.mxu0 0.0
        %4968 = vmatpush1.msra.mxu0 0.0
        %4969 = vmatprep.subr.mxu0 0.0
        %4970 = vmatpush1.msra.mxu0 0.0
        %4971 = vmatprep.subr.mxu0 0.0
        %4972 = vmatpush1.msra.mxu0 0.0
        %4973 = vmatprep.subr.mxu0 0.0
        %4974 = vmatpush1.msra.mxu0 0.0
        %4975 = vmatprep.subr.mxu0 0.0
        %4976 = vmatpush1.msra.mxu0 0.0
        %4977 = vmatprep.subr.mxu0 %v4886
        %4978 = vmatpush1.msra.mxu0 %v4885
        %4979 = vmatprep.subr.mxu0 %v4882
        %4980 = vmatpush1.msra.mxu0 %v4881
        %4981 = vmatprep.subr.mxu0 %v4878
        %4982 = vmatpush1.msra.mxu0 %v4877
        %4983 = vmatprep.subr.mxu0 %v4874
        %4984 = vmatpush1.msra.mxu0 %v4873
        %4985 = vmatprep.subr.mxu0 %v4870
        %4986 = vmatpush1.msra.mxu0 %v4869
        %4987 = vmatprep.subr.mxu0 %v4866
        %4988 = vmatpush1.msra.mxu0 %v4865
        %4989 = vmatprep.subr.mxu0 %v4862
        %4990 = vmatpush1.msra.mxu0 %v4861
        %4991 = vmatprep.subr.mxu0 %v4858
        %4992 = vmatpush1.msra.mxu0 %v4857
        %4993 = vmatprep.subr.mxu0 0.0
        %4994 = vmatpush2.msra.mxu0 0.0
        %4995 = vmatprep.subr.mxu0 0.0
        %4996 = vmatpush2.msra.mxu0 0.0
        %4997 = vmatprep.subr.mxu0 0.0
        %4998 = vmatpush2.msra.mxu0 0.0
        %4999 = vmatprep.subr.mxu0 0.0
        %5000 = vmatpush2.msra.mxu0 0.0
        %5001 = vmatprep.subr.mxu0 0.0
        %5002 = vmatpush2.msra.mxu0 0.0
        %5003 = vmatprep.subr.mxu0 0.0
        %5004 = vmatpush2.msra.mxu0 0.0
        %5005 = vmatprep.subr.mxu0 0.0
        %5006 = vmatpush2.msra.mxu0 0.0
        %5007 = vmatprep.subr.mxu0 0.0
        %5008 = vmatpush2.msra.mxu0 0.0
        %5009 = vmatprep.subr.mxu0 0.0
        %5010 = vmatpush2.msra.mxu0 0.0
        %5011 = vmatprep.subr.mxu0 0.0
        %5012 = vmatpush2.msra.mxu0 0.0
        %5013 = vmatprep.subr.mxu0 0.0
        %5014 = vmatpush2.msra.mxu0 0.0
        %5015 = vmatprep.subr.mxu0 0.0
        %5016 = vmatpush2.msra.mxu0 0.0
        %5017 = vmatprep.subr.mxu0 0.0
        %5018 = vmatpush2.msra.mxu0 0.0
        %5019 = vmatprep.subr.mxu0 0.0
        %5020 = vmatpush2.msra.mxu0 0.0
        %5021 = vmatprep.subr.mxu0 0.0
        %5022 = vmatpush2.msra.mxu0 0.0
        %5023 = vmatprep.subr.mxu0 0.0
        %5024 = vmatpush2.msra.mxu0 0.0
        %5025 = vmatprep.mubr.f32.mxu0 0.0
        %5026 = vmatmul.mubr.f32.gmra.mxu0 %v4888
        %v5027 = vpop.f32.mrf.mxu0
        %v5028 = vadd.f32 0.0, %v5027
        %v5029 = vpop.f32.mrf.mxu0
        %v5030 = vadd.f32 0.0, %v5029
        %5031 = vdwg.mxu0
        %v5032 = vadd.f32 %v4685, %v4957
        %v5033 = vadd.f32 %v4686, %v4959
        %v5034 = vadd.f32 %v4687, %v5028
        %v5035 = vadd.f32 %v4688, %v5030
        %5036 = vst [vmem:[%s533] sm:$0xff] %v5032
        %5037 = vst [vmem:[%s533 + $0x8] sm:$0xff] %v5033
        %5038 = vst [vmem:[%s533 + $0x10] sm:$0xff] %v5034
        %5039 = vst [vmem:[%s533 + $0x18] sm:$0xff] %v5035
        %s5040 = sand.u32 %s287, 1
        %s5041 = scalar_lea.sflag [#allocation7], %s5040
        %s5042 = sand.u32 %s287, 1
        %s5043 = smul.addr %s5042, 32
        %s5044 = scalar_lea.vmem [#allocation17], %s5043
        // Predicated region
        $region93: #{tpu_custom_call.1} parent=63 // pred_check
          %p5045 = pneg %p297
        $region94: #{tpu_custom_call.1} parent=63 // pred_check_branch
          %5047 = sbr.rel (%p5045) target = $region96
        $region95: #{tpu_custom_call.1} parent=63 // pred_region
          %s5049 = ssub.s32 512, 512
          %5050 = vsyncadd %s5041, %s5049
          %s5051 = smul.addr %s33, 4
          %s5052 = smul.addr %s5051, 128
          %s5053 = scalar_lea.hbm %s11, %s5052
          %s5055 = sshll.u32 %s5044, 4
          %s5056 = int_to_ptr.vmem [resolvable:$true] %s5055
          %5058 = dma.vmem_to_hbm [thread:$0]  %s5056, 512, %s5053, %s5041
        $region96: #{tpu_custom_call.1} parent=63 // pred_fallthru
          _
      $region64: #{tpu_custom_call.1} parent=5 // pred_fallthru
        _
      %p5059 = scmp.le.s32.totalorder 2, %s28
      // Predicated region
      $region97: #{tpu_custom_call.1} parent=5 // pred_check
        %p5060 = pneg %p5059
      $region98: #{tpu_custom_call.1} parent=5 // pred_check_branch
        %5062 = sbr.rel (%p5060) target = $region100
      $region99: #{tpu_custom_call.1} parent=5 // pred_region
        %s5063 = ssub.s32 %s28, 2
        // Predicated region
        $region101: #{tpu_custom_call.1} parent=99 // pred_check
          %p5064 = pneg %p303
        $region102: #{tpu_custom_call.1} parent=99 // pred_check_branch
          %5066 = sbr.rel (%p5064) target = $region104
        $region103: #{tpu_custom_call.1} parent=99 // pred_region
          %s5067 = sand.u32 %s288, 1
          %s5068 = scalar_lea.sflag [#allocation7], %s5067
          %s5069 = sand.u32 %s288, 1
          %s5070 = smul.addr %s5069, 32
          %s5071 = scalar_lea.vmem [#allocation17], %s5070
          %5072 = dma.done %s5068, 512
        $region104: #{tpu_custom_call.1} parent=99 // pred_fallthru
          _
      $region100: #{tpu_custom_call.1} parent=5 // pred_fallthru
        _
    $region6: #{tpu_custom_call.1} parent=1 // loop_footer
      %s32 = sadd.s32 1, %s28
    $region7: #{tpu_custom_call.1} parent=1 // loop_footer_branch
      %27 = sbr.rel target = $region3
    $region8: #{tpu_custom_call.1} parent=1 // loop_exit
      _
    %5073 = vsyncpa [#allocation6], 1
    %s5074 = scalar_lea.sflag [#allocation6], 1
    %5075 = vsyncpa %s5074, 1
    %5076 = vsyncpa [#allocation9], 1
    %s5077 = scalar_lea.sflag [#allocation9], 1
    %5078 = vsyncpa %s5077, 1
    %5079 = vsyncpa [#allocation12], 1
    %5080 = vsyncpa [#allocation15], 1
    %5081 = vsyncpa [#allocation7], 1
    %s5082 = scalar_lea.sflag [#allocation7], 1
    %5083 = vsyncpa %s5082, 1

</llo_original>
